<compile_context>
chip_gen: v5e
topology: v5e:2x2
jax: 0.10.0
libtpu: 0.0.40
codegen_flags: <defaults>
</compile_context>

<pallas_src>
import functools

import jax
import jax.numpy as jnp
from jax.experimental import pallas as pl
from jax.experimental.pallas import tpu as pltpu

# ----- Poincare ball constants -----
C = 1.0
SQRT_C = 1.0
EPS = 1e-15
BALL_EPS = 1e-5
BN_EPS = 1e-6
MAX_NORM = (1.0 - BALL_EPS) / SQRT_C
DIST_CLAMP = 32.0        # keeps sinh(dist)^2 summed over hidden finite in f32
BALL_RADIUS = 0.3        # Euclidean features are placed at this radius inside the ball


# ----- numerically-safe helpers (traced inside the kernel) -----
def _asinh(t):
    a = jnp.abs(t)
    s = jnp.where(t < 0.0, -1.0, 1.0)
    return s * jnp.log(a + jnp.sqrt(a * a + 1.0))


def _atanh(t):
    # only applied to tiny (B,1)/(1,1) arrays -> exact divide, precision matters here
    t = jnp.clip(t, -1.0 + 1e-7, 1.0 - 1e-7)
    return 0.5 * jnp.log((1.0 + t) / (1.0 - t))


def _sinh_1exp(t):
    # sinh from a single exp + approximate reciprocal (1 exp + 1 vrcp instead of 2 exps)
    e = jnp.exp(t)
    return 0.5 * (e - pl.reciprocal(e, approx=True))


def _proj_scale(norm):
    # clip a row of known norm back into the open ball; exact divide on a tiny array
    # so the clipped norm can never exceed MAX_NORM.
    return jnp.where(norm > MAX_NORM, MAX_NORM / norm, 1.0)


def _rowsum3(x3):
    # (nt, B, tile) -> (B, 1): lane reduce per tile, then add tiles elementwise.
    return jnp.sum(jnp.sum(x3, axis=2, keepdims=True), axis=0)


# ============================= fused kernel =============================

def _fused_proj_head_kernel(
    nt,
    # inputs
    x_ref,                                            # (B, Din) raw flattened features (f32)
    z1_ref, zn1_ref, izn1_ref, ch1_ref, sh1_ref,      # HLinear1 params (tiled over hidden)
    z2_ref, zn2_ref, izn2_ref, ch2_ref, sh2_ref,      # HLinear2 params (resident)
    g_ref,                                            # (1,) bn gamma in SMEM
    # output
    o_ref,                                            # (B, De)
    # scratch
    xb_ref,                                           # (B, Din) bf16: features on the ball
    lam_ref,                                          # (B, 1) f32: lambda_x of the input
    w_ref,                                            # (nt, B, tile) f32: HLinear1 pre-norm
    wsq_ref,                                          # (B, 1) f32: running ||w||^2
):
    j = pl.program_id(0)

    # ---------- prologue (once): fold the Euclidean->ball placement into the kernel ----------
    @pl.when(j == 0)
    def _init():
        x = x_ref[...]
        xsq = jnp.sum(x * x, axis=-1, keepdims=True)
        xb = (BALL_RADIUS * jax.lax.rsqrt(jnp.maximum(xsq, EPS))) * x
        bsq = jnp.sum(xb * xb, axis=-1, keepdims=True)
        xb_ref[...] = xb.astype(xb_ref.dtype)
        lam_ref[...] = 2.0 * pl.reciprocal(1.0 - C * bsq, approx=True)
        wsq_ref[...] = jnp.zeros_like(wsq_ref)

    # ---------- HLinear1, per hidden tile: HNN++ hyperplane distances ----------
    lam = lam_ref[...]                                                   # (B, 1)
    xz = jnp.dot(xb_ref[...], z1_ref[...],                               # MXU, bf16 x bf16
                 preferred_element_type=jnp.float32)                     # (B, tile) f32
    arg = (SQRT_C * lam * izn1_ref[...]) * xz * ch1_ref[...] \
        - (lam - 1.0) * sh1_ref[...]
    dist = (2.0 / SQRT_C) * zn1_ref[...] * _asinh(arg)
    dist = jnp.clip(dist, -DIST_CLAMP, DIST_CLAMP)
    w = _sinh_1exp(SQRT_C * dist) / SQRT_C                               # (B, tile)
    w_ref[j] = w
    wsq_ref[...] += jnp.sum(w * w, axis=-1, keepdims=True)

    # ---------- finalize (last tile): HLinear1 norm + HBN + HReLU + HLinear2 ----------
    @pl.when(j == nt - 1)
    def _finalize():
        w3 = w_ref[...]                                                  # (nt, B, tile)
        wsq = wsq_ref[...]                                               # (B, 1)

        # HLinear1: y1 = w / (1 + sqrt(1 + c*||w||^2)), projected into the open ball.
        inv_den1 = pl.reciprocal(1.0 + jnp.sqrt(1.0 + C * wsq), approx=True)
        y1n = jnp.sqrt(jnp.maximum(wsq, EPS)) * inv_den1                 # carried ||y1||
        s1 = inv_den1 * _proj_scale(y1n)
        y1n = jnp.minimum(y1n, MAX_NORM)
        y1 = w3 * s1                                                     # (nt, B, tile)
        ysq = y1n * y1n                                                  # carried ||y1||^2

        # ---- HBatchNorm (training-mode batch stats, gyromidpoint recenter) ----
        lam_y = 2.0 * pl.reciprocal(1.0 - C * ysq, approx=True)          # (B, 1)
        num = jnp.sum(lam_y * y1, axis=1, keepdims=True)                 # (nt, 1, tile)
        den = jnp.sum(lam_y - 1.0, axis=0, keepdims=True)                # (1, 1)
        m = num * pl.reciprocal(jnp.maximum(den, EPS), approx=True)
        mn = jnp.sqrt(jnp.maximum(_rowsum3(m * m), EPS))                 # (1, 1)
        mu_s = jnp.tanh(0.5 * _atanh(SQRT_C * mn)) / (SQRT_C * mn)       # 0.5 (x) m scale
        mun = mn * mu_s
        mu_s = mu_s * _proj_scale(mun)
        mun = jnp.minimum(mun, MAX_NORM)
        mu = m * mu_s                                                    # (nt, 1, tile)
        musq = mun * mun                                                 # (1, 1)

        # d = (-mu) mobius_add y1
        a = -mu
        ab = _rowsum3(a * y1)                                            # (B, 1)
        coef_a = 1.0 + 2.0 * C * ab + C * ysq                            # (B, 1)
        coef_b = 1.0 - C * musq                                          # (1, 1)
        den_m = 1.0 + 2.0 * C * ab + C * C * musq * ysq                  # (B, 1)
        d3 = (coef_a * a + coef_b * y1) * pl.reciprocal(den_m, approx=True)
        dn = jnp.sqrt(jnp.maximum(_rowsum3(d3 * d3), EPS))               # (B, 1)
        at = _atanh(SQRT_C * dn)

        # Frechet variance of the geodesic distances to the midpoint
        gdist = (2.0 / SQRT_C) * at                                      # (B, 1)
        var = jnp.sum(gdist * gdist, axis=0, keepdims=True) / float(gdist.shape[0])
        gamma = jnp.maximum(g_ref[0], 0.0)   # clamp so a negative learned gamma is not NaN
        bn_scale = jnp.sqrt(gamma * pl.reciprocal(var + BN_EPS, approx=True))   # (1, 1)

        # logmap0(d) recenter/rescale; HReLU's logmap0(expmap0(.)) cancels, so apply the
        # tangent-space ReLU directly and expmap0 only once.
        u3 = (at * pl.reciprocal(SQRT_C * dn, approx=True) * bn_scale) * d3      # (nt,B,tile)
        v3 = jnp.maximum(u3, 0.0)                                        # HReLU (tangent)
        vn = jnp.sqrt(jnp.maximum(_rowsum3(v3 * v3), EPS))               # (B, 1)
        th = jnp.tanh(SQRT_C * vn)
        h_s = (th / SQRT_C) * pl.reciprocal(vn, approx=True)
        h_s = h_s * _proj_scale(th)
        hn = jnp.minimum(th, MAX_NORM)
        h3 = h_s * v3                                                    # hidden activation
        hsq = hn * hn                                                    # carried ||h||^2

        # ---- HLinear2 (embedding width is small, kept whole) ----
        lam_h = 2.0 * pl.reciprocal(1.0 - C * hsq, approx=True)          # (B, 1)
        xz2 = jnp.zeros(o_ref.shape, jnp.float32)
        for t in range(nt):                                              # static unroll
            xz2 = xz2 + jnp.dot(h3[t].astype(jnp.bfloat16), z2_ref[t],
                                preferred_element_type=jnp.float32)
        arg2 = (SQRT_C * lam_h * izn2_ref[...]) * xz2 * ch2_ref[...] \
            - (lam_h - 1.0) * sh2_ref[...]
        dist2 = (2.0 / SQRT_C) * zn2_ref[...] * _asinh(arg2)
        dist2 = jnp.clip(dist2, -DIST_CLAMP, DIST_CLAMP)
        w2 = _sinh_1exp(SQRT_C * dist2) / SQRT_C                         # (B, De)
        w2sq = jnp.sum(w2 * w2, axis=-1, keepdims=True)
        inv_den2 = pl.reciprocal(1.0 + jnp.sqrt(1.0 + C * w2sq), approx=True)
        y2n = jnp.sqrt(jnp.maximum(w2sq, EPS)) * inv_den2
        o_ref[...] = (w2 * (inv_den2 * _proj_scale(y2n))).astype(o_ref.dtype)


# ============================= wrapper =============================

def _precompute_hlinear_params(z, r):
    """Parameter-only terms, hoisted out of the kernel (cache alongside the weights)."""
    z = z.astype(jnp.float32)
    r = r.astype(jnp.float32).reshape(1, -1)
    zn = jnp.sqrt(jnp.maximum(jnp.sum(z * z, axis=0, keepdims=True), EPS))
    izn = 1.0 / zn
    two_cr = 2.0 * SQRT_C * r
    return zn, izn, jnp.cosh(two_cr), jnp.sinh(two_cr)


def add_proj_head_forward(x_nchw, params, *, tile_n=256):
    """AddProjHead.forward: backbone(Identity) -> HFlatten -> MLP(HLinear,HBN,HReLU,HLinear)."""
    feat = x_nchw                                   # backbone treated as identity (see TODO)
    B = feat.shape[0]
    flat = feat.reshape(B, -1).astype(jnp.float32)  # HFlatten (layout glue)

    z1 = params["z1"].astype(jnp.float32)
    z2 = params["z2"].astype(jnp.float32)
    din, dh = z1.shape
    dh2, de = z2.shape
    assert dh2 == dh and flat.shape[1] == din

    # tile the hidden dim so the dominant z1 weight streams through VMEM in
    # double-buffered, lane-dense (>=128 wide) blocks instead of full residency.
    tn = tile_n if (dh % tile_n == 0 and tile_n % 128 == 0) else dh
    nt = dh // tn

    zn1, izn1, ch1, sh1 = _precompute_hlinear_params(z1, params["r1"])
    zn2, izn2, ch2, sh2 = _precompute_hlinear_params(z2, params["r2"])
    z1_bf = z1.astype(jnp.bfloat16)                        # MXU runs bf16; epilogue stays f32
    z2_bf = z2.reshape(nt, tn, de).astype(jnp.bfloat16)    # tile-major for per-tile accumulation
    gamma = params["bn_gamma"].reshape(-1)[:1].astype(jnp.float32)

    kernel = functools.partial(_fused_proj_head_kernel, nt)

    def _col_tile_spec():
        return pl.BlockSpec((1, tn), lambda j: (0, j))

    def _emb_spec():
        return pl.BlockSpec((1, de), lambda j: (0, 0))

    return pl.pallas_call(
        kernel,
        out_shape=jax.ShapeDtypeStruct((B, de), jnp.float32),
        grid=(nt,),
        in_specs=[
            pl.BlockSpec((B, din), lambda j: (0, 0)),           # flattened features (resident)
            pl.BlockSpec((din, tn), lambda j: (0, j)),          # z1 tile (bf16, streamed)
            _col_tile_spec(),                                   # ||z1_col||
            _col_tile_spec(),                                   # 1 / ||z1_col||
            _col_tile_spec(),                                   # cosh(2*sqrt(c)*r1)
            _col_tile_spec(),                                   # sinh(2*sqrt(c)*r1)
            pl.BlockSpec((nt, tn, de), lambda j: (0, 0, 0)),    # z2 (bf16, resident)
            _emb_spec(),                                        # ||z2_col||
            _emb_spec(),                                        # 1 / ||z2_col||
            _emb_spec(),                                        # cosh(2*sqrt(c)*r2)
            _emb_spec(),                                        # sinh(2*sqrt(c)*r2)
            pl.BlockSpec(memory_space=pltpu.MemorySpace.SMEM),  # bn gamma (scalar)
        ],
        out_specs=pl.BlockSpec((B, de), lambda j: (0, 0)),
        scratch_shapes=[
            pltpu.VMEM((B, din), jnp.bfloat16),    # features placed on the ball (matmul LHS)
            pltpu.VMEM((B, 1), jnp.float32),       # lambda_x
            pltpu.VMEM((nt, B, tn), jnp.float32),  # HLinear1 pre-normalization tiles
            pltpu.VMEM((B, 1), jnp.float32),       # running ||w||^2
        ],
        compiler_params=pltpu.CompilerParams(
            # sequential accumulation (BN batch stats) -> "arbitrary"; cannot megacore-split.
            dimension_semantics=("arbitrary",),
            vmem_limit_bytes=32 * 1024 * 1024,
        ),
    )(flat, z1_bf, zn1, izn1, ch1, sh1, z2_bf, zn2, izn2, ch2, sh2, gamma)


# ============================= main =============================

if __name__ == "__main__":
    key = jax.random.PRNGKey(0)
    B, Cc, H, W = 2, 4, 16, 16
    in_features = Cc * H * W          # 1024
    hidden_size = 512                 # scaled-down analogue of 4096
    embedding_size = 256              # module default embedding size

    k1, k2, k3 = jax.random.split(key, 3)
    x = jax.random.normal(k1, (B, Cc, H, W), dtype=jnp.float32)

    params = {
        "z1": jax.random.normal(k2, (in_features, hidden_size), jnp.float32)
        / jnp.sqrt(float(in_features)),
        "r1": jnp.zeros((1, hidden_size), jnp.float32),
        "z2": jax.random.normal(k3, (hidden_size, embedding_size), jnp.float32)
        / jnp.sqrt(float(hidden_size)),
        "r2": jnp.zeros((1, embedding_size), jnp.float32),
        "bn_gamma": jnp.ones((1, 1), jnp.float32),
    }

    out = add_proj_head_forward(x, params)
    out = jax.block_until_ready(out)

    assert out.shape == (B, embedding_size), out.shape
    assert bool(jnp.all(jnp.isfinite(out)))
    # result must stay inside the unit Poincare ball
    assert bool(jnp.all(jnp.linalg.norm(out, axis=-1) < 1.0))
    print("KERNEL_OK")
</pallas_src>

<mosaic_0001>
module attributes {stable_mosaic.version = 11 : i64} {
  func.func @_fused_proj_head_kernel(%arg0: i32, %arg1: memref<2x1024xf32, #tpu.memory_space<vmem>>, %arg2: memref<1024x256xbf16, #tpu.memory_space<vmem>>, %arg3: memref<1x256xf32, #tpu.memory_space<vmem>>, %arg4: memref<1x256xf32, #tpu.memory_space<vmem>>, %arg5: memref<1x256xf32, #tpu.memory_space<vmem>>, %arg6: memref<1x256xf32, #tpu.memory_space<vmem>>, %arg7: memref<2x256x256xbf16, #tpu.memory_space<vmem>>, %arg8: memref<1x256xf32, #tpu.memory_space<vmem>>, %arg9: memref<1x256xf32, #tpu.memory_space<vmem>>, %arg10: memref<1x256xf32, #tpu.memory_space<vmem>>, %arg11: memref<1x256xf32, #tpu.memory_space<vmem>>, %arg12: memref<1xf32, #tpu.memory_space<smem>>, %arg13: memref<2x256xf32, #tpu.memory_space<vmem>>, %arg14: memref<2x1024xbf16, #tpu.memory_space<vmem>>, %arg15: memref<2x1xf32, #tpu.memory_space<vmem>>, %arg16: memref<2x2x256xf32, #tpu.memory_space<vmem>>, %arg17: memref<2x1xf32, #tpu.memory_space<vmem>>) attributes {dimension_semantics = [#tpu.dimension_semantics<arbitrary>], iteration_bounds = array<i64: 2>, scalar_prefetch = 0 : i64, scratch_operands = 4 : i64, tpu.core_type = #tpu.core_type<tc>, window_params = [{pipeline_mode = #tpu.pipeline_mode<synchronous>, transform_indices = @transform_0, window_bounds = array<i64: 2, 1024>}, {transform_indices = @transform_1, window_bounds = array<i64: 1024, 256>}, {transform_indices = @transform_2, window_bounds = array<i64: 1, 256>}, {transform_indices = @transform_3, window_bounds = array<i64: 1, 256>}, {transform_indices = @transform_4, window_bounds = array<i64: 1, 256>}, {transform_indices = @transform_5, window_bounds = array<i64: 1, 256>}, {pipeline_mode = #tpu.pipeline_mode<synchronous>, transform_indices = @transform_6, window_bounds = array<i64: 2, 256, 256>}, {pipeline_mode = #tpu.pipeline_mode<synchronous>, transform_indices = @transform_7, window_bounds = array<i64: 1, 256>}, {pipeline_mode = #tpu.pipeline_mode<synchronous>, transform_indices = @transform_8, window_bounds = array<i64: 1, 256>}, {pipeline_mode = #tpu.pipeline_mode<synchronous>, transform_indices = @transform_9, window_bounds = array<i64: 1, 256>}, {pipeline_mode = #tpu.pipeline_mode<synchronous>, transform_indices = @transform_10, window_bounds = array<i64: 1, 256>}, {transform_indices = @transform_11, window_bounds = array<i64: 1>}, {pipeline_mode = #tpu.pipeline_mode<synchronous>, transform_indices = @transform_12, window_bounds = array<i64: 2, 256>}]} {
    %c0_i32 = arith.constant 0 : i32
    %0 = arith.cmpi eq, %arg0, %c0_i32 : i32
    %1 = arith.extui %0 : i1 to i32
    %c0_i32_0 = arith.constant 0 : i32
    %2 = arith.cmpi ne, %1, %c0_i32_0 : i32
    scf.if %2 {
      %c0_34 = arith.constant 0 : index
      %c0_35 = arith.constant 0 : index
      %68 = vector.load %arg1[%c0_34, %c0_35] : memref<2x1024xf32, #tpu.memory_space<vmem>>, vector<2x1024xf32>
      %69 = arith.mulf %68, %68 : vector<2x1024xf32>
      %cst_36 = arith.constant dense<0.000000e+00> : vector<2xf32>
      %70 = vector.multi_reduction <add>, %69, %cst_36 [1] : vector<2x1024xf32> to vector<2xf32>
      %71 = vector.shape_cast %70 : vector<2xf32> to vector<2x1xf32>
      %cst_37 = arith.constant 1.000000e-15 : f32
      %72 = vector.broadcast %cst_37 : f32 to vector<2x1xf32>
      %73 = arith.maximumf %71, %72 : vector<2x1xf32>
      %74 = math.rsqrt %73 : vector<2x1xf32>
      %cst_38 = arith.constant 3.000000e-01 : f32
      %75 = vector.broadcast %cst_38 : f32 to vector<2x1xf32>
      %76 = arith.mulf %75, %74 : vector<2x1xf32>
      %77 = vector.broadcast %76 : vector<2x1xf32> to vector<2x1024xf32>
      %78 = arith.mulf %77, %68 : vector<2x1024xf32>
      %79 = arith.mulf %78, %78 : vector<2x1024xf32>
      %cst_39 = arith.constant dense<0.000000e+00> : vector<2xf32>
      %80 = vector.multi_reduction <add>, %79, %cst_39 [1] : vector<2x1024xf32> to vector<2xf32>
      %81 = vector.shape_cast %80 : vector<2xf32> to vector<2x1xf32>
      %82 = arith.truncf %78 : vector<2x1024xf32> to vector<2x1024xbf16>
      %c0_40 = arith.constant 0 : index
      %c0_41 = arith.constant 0 : index
      %83 = vector.load %arg14[%c0_40, %c0_41] : memref<2x1024xbf16, #tpu.memory_space<vmem>>, vector<2x1024xbf16>
      tpu.vector_store %arg14[%c0_40, %c0_41], %82 {strides = array<i32>} : memref<2x1024xbf16, #tpu.memory_space<vmem>>, vector<2x1024xbf16>,
      %cst_42 = arith.constant 1.000000e+00 : f32
      %84 = vector.broadcast %cst_42 : f32 to vector<2x1xf32>
      %85 = arith.mulf %84, %81 : vector<2x1xf32>
      %cst_43 = arith.constant 1.000000e+00 : f32
      %86 = vector.broadcast %cst_43 : f32 to vector<2x1xf32>
      %87 = arith.subf %86, %85 : vector<2x1xf32>
      %88 = tpu.reciprocal %87 {approx = true} : vector<2x1xf32> -> vector<2x1xf32>
      %cst_44 = arith.constant 2.000000e+00 : f32
      %89 = vector.broadcast %cst_44 : f32 to vector<2x1xf32>
      %90 = arith.mulf %89, %88 : vector<2x1xf32>
      %c0_45 = arith.constant 0 : index
      %c0_46 = arith.constant 0 : index
      %91 = vector.load %arg15[%c0_45, %c0_46] : memref<2x1xf32, #tpu.memory_space<vmem>>, vector<2x1xf32>
      tpu.vector_store %arg15[%c0_45, %c0_46], %90 {strides = array<i32>} : memref<2x1xf32, #tpu.memory_space<vmem>>, vector<2x1xf32>,
      %cst_47 = arith.constant 0.000000e+00 : f32
      %92 = vector.broadcast %cst_47 : f32 to vector<2x1xf32>
      %c0_48 = arith.constant 0 : index
      %c0_49 = arith.constant 0 : index
      %93 = vector.load %arg17[%c0_48, %c0_49] : memref<2x1xf32, #tpu.memory_space<vmem>>, vector<2x1xf32>
      tpu.vector_store %arg17[%c0_48, %c0_49], %92 {strides = array<i32>} : memref<2x1xf32, #tpu.memory_space<vmem>>, vector<2x1xf32>,
    } else {
    }
    %c0 = arith.constant 0 : index
    %c0_1 = arith.constant 0 : index
    %3 = vector.load %arg15[%c0, %c0_1] : memref<2x1xf32, #tpu.memory_space<vmem>>, vector<2x1xf32>
    %c0_2 = arith.constant 0 : index
    %c0_3 = arith.constant 0 : index
    %4 = vector.load %arg14[%c0_2, %c0_3] : memref<2x1024xbf16, #tpu.memory_space<vmem>>, vector<2x1024xbf16>
    %c0_4 = arith.constant 0 : index
    %c0_5 = arith.constant 0 : index
    %5 = vector.load %arg2[%c0_4, %c0_5] : memref<1024x256xbf16, #tpu.memory_space<vmem>>, vector<1024x256xbf16>
    %cst = arith.constant dense<0.000000e+00> : vector<2x256xf32>
    %6 = tpu.matmul %4, %5, %cst {dimension_numbers = #tpu.dot_dimension_numbers<[1], [0], [0], [1], [0, 0, 1, 1], [], []>} : vector<2x1024xbf16>, vector<1024x256xbf16>, vector<2x256xf32> -> vector<2x256xf32>
    %cst_6 = arith.constant 1.000000e+00 : f32
    %7 = vector.broadcast %cst_6 : f32 to vector<2x1xf32>
    %8 = arith.mulf %7, %3 : vector<2x1xf32>
    %c0_7 = arith.constant 0 : index
    %c0_8 = arith.constant 0 : index
    %9 = vector.load %arg4[%c0_7, %c0_8] : memref<1x256xf32, #tpu.memory_space<vmem>>, vector<1x256xf32>
    %10 = vector.broadcast %8 : vector<2x1xf32> to vector<2x256xf32>
    %11 = vector.broadcast %9 : vector<1x256xf32> to vector<2x256xf32>
    %12 = arith.mulf %10, %11 : vector<2x256xf32>
    %13 = arith.mulf %12, %6 : vector<2x256xf32>
    %c0_9 = arith.constant 0 : index
    %c0_10 = arith.constant 0 : index
    %14 = vector.load %arg5[%c0_9, %c0_10] : memref<1x256xf32, #tpu.memory_space<vmem>>, vector<1x256xf32>
    %15 = vector.broadcast %14 : vector<1x256xf32> to vector<2x256xf32>
    %16 = arith.mulf %13, %15 : vector<2x256xf32>
    %cst_11 = arith.constant 1.000000e+00 : f32
    %17 = vector.broadcast %cst_11 : f32 to vector<2x1xf32>
    %18 = arith.subf %3, %17 : vector<2x1xf32>
    %c0_12 = arith.constant 0 : index
    %c0_13 = arith.constant 0 : index
    %19 = vector.load %arg6[%c0_12, %c0_13] : memref<1x256xf32, #tpu.memory_space<vmem>>, vector<1x256xf32>
    %20 = vector.broadcast %18 : vector<2x1xf32> to vector<2x256xf32>
    %21 = vector.broadcast %19 : vector<1x256xf32> to vector<2x256xf32>
    %22 = arith.mulf %20, %21 : vector<2x256xf32>
    %23 = arith.subf %16, %22 : vector<2x256xf32>
    %c0_14 = arith.constant 0 : index
    %c0_15 = arith.constant 0 : index
    %24 = vector.load %arg3[%c0_14, %c0_15] : memref<1x256xf32, #tpu.memory_space<vmem>>, vector<1x256xf32>
    %cst_16 = arith.constant 2.000000e+00 : f32
    %25 = vector.broadcast %cst_16 : f32 to vector<1x256xf32>
    %26 = arith.mulf %25, %24 : vector<1x256xf32>
    %27 = math.absf %23 : vector<2x256xf32>
    %cst_17 = arith.constant 0.000000e+00 : f32
    %28 = vector.broadcast %cst_17 : f32 to vector<2x256xf32>
    %29 = arith.cmpf olt, %23, %28 : vector<2x256xf32>
    %cst_18 = arith.constant -1.000000e+00 : f32
    %cst_19 = arith.constant 1.000000e+00 : f32
    %30 = vector.broadcast %cst_18 : f32 to vector<2x256xf32>
    %31 = vector.broadcast %cst_19 : f32 to vector<2x256xf32>
    %32 = arith.select %29, %30, %31 : vector<2x256xi1>, vector<2x256xf32>
    %33 = arith.mulf %27, %27 : vector<2x256xf32>
    %cst_20 = arith.constant 1.000000e+00 : f32
    %34 = vector.broadcast %cst_20 : f32 to vector<2x256xf32>
    %35 = arith.addf %33, %34 : vector<2x256xf32>
    %36 = math.sqrt %35 : vector<2x256xf32>
    %37 = arith.addf %27, %36 : vector<2x256xf32>
    %38 = math.log %37 : vector<2x256xf32>
    %39 = arith.mulf %32, %38 : vector<2x256xf32>
    %40 = vector.broadcast %26 : vector<1x256xf32> to vector<2x256xf32>
    %41 = arith.mulf %40, %39 : vector<2x256xf32>
    %cst_21 = arith.constant -3.200000e+01 : f32
    %cst_22 = arith.constant 3.200000e+01 : f32
    %42 = vector.broadcast %cst_21 : f32 to vector<2x256xf32>
    %43 = arith.maximumf %42, %41 : vector<2x256xf32>
    %44 = vector.broadcast %cst_22 : f32 to vector<2x256xf32>
    %45 = arith.minimumf %44, %43 : vector<2x256xf32>
    %cst_23 = arith.constant 1.000000e+00 : f32
    %46 = vector.broadcast %cst_23 : f32 to vector<2x256xf32>
    %47 = arith.mulf %46, %45 : vector<2x256xf32>
    %48 = math.exp %47 : vector<2x256xf32>
    %49 = tpu.reciprocal %48 {approx = true} : vector<2x256xf32> -> vector<2x256xf32>
    %50 = arith.subf %48, %49 : vector<2x256xf32>
    %cst_24 = arith.constant 5.000000e-01 : f32
    %51 = vector.broadcast %cst_24 : f32 to vector<2x256xf32>
    %52 = arith.mulf %51, %50 : vector<2x256xf32>
    %cst_25 = arith.constant 1.000000e+00 : f32
    %53 = vector.broadcast %cst_25 : f32 to vector<2x256xf32>
    %54 = arith.divf %52, %53 : vector<2x256xf32>
    %55 = arith.index_cast %arg0 : i32 to index
    %c0_26 = arith.constant 0 : index
    %c0_27 = arith.constant 0 : index
    %56 = vector.load %arg16[%55, %c0_26, %c0_27] : memref<2x2x256xf32, #tpu.memory_space<vmem>>, vector<1x2x256xf32>
    %57 = vector.shape_cast %56 : vector<1x2x256xf32> to vector<2x256xf32>
    %58 = vector.shape_cast %54 : vector<2x256xf32> to vector<1x2x256xf32>
    tpu.vector_store %arg16[%55, %c0_26, %c0_27], %58 {strides = array<i32>} : memref<2x2x256xf32, #tpu.memory_space<vmem>>, vector<1x2x256xf32>,
    %c0_28 = arith.constant 0 : index
    %c0_29 = arith.constant 0 : index
    %59 = vector.load %arg17[%c0_28, %c0_29] : memref<2x1xf32, #tpu.memory_space<vmem>>, vector<2x1xf32>
    %60 = arith.mulf %54, %54 : vector<2x256xf32>
    %cst_30 = arith.constant dense<0.000000e+00> : vector<2xf32>
    %61 = vector.multi_reduction <add>, %60, %cst_30 [1] : vector<2x256xf32> to vector<2xf32>
    %62 = vector.shape_cast %61 : vector<2xf32> to vector<2x1xf32>
    %63 = arith.addf %59, %62 : vector<2x1xf32>
    %c0_31 = arith.constant 0 : index
    %c0_32 = arith.constant 0 : index
    %64 = vector.load %arg17[%c0_31, %c0_32] : memref<2x1xf32, #tpu.memory_space<vmem>>, vector<2x1xf32>
    tpu.vector_store %arg17[%c0_31, %c0_32], %63 {strides = array<i32>} : memref<2x1xf32, #tpu.memory_space<vmem>>, vector<2x1xf32>,
    %c1_i32 = arith.constant 1 : i32
    %65 = arith.cmpi eq, %arg0, %c1_i32 : i32
    %66 = arith.extui %65 : i1 to i32
    %c0_i32_33 = arith.constant 0 : i32
    %67 = arith.cmpi ne, %66, %c0_i32_33 : i32
    scf.if %67 {
      %c0_34 = arith.constant 0 : index
      %c0_35 = arith.constant 0 : index
      %c0_36 = arith.constant 0 : index
      %68 = vector.load %arg16[%c0_34, %c0_35, %c0_36] : memref<2x2x256xf32, #tpu.memory_space<vmem>>, vector<2x2x256xf32>
      %c0_37 = arith.constant 0 : index
      %c0_38 = arith.constant 0 : index
      %69 = vector.load %arg17[%c0_37, %c0_38] : memref<2x1xf32, #tpu.memory_space<vmem>>, vector<2x1xf32>
      %cst_39 = arith.constant 1.000000e+00 : f32
      %70 = vector.broadcast %cst_39 : f32 to vector<2x1xf32>
      %71 = arith.mulf %70, %69 : vector<2x1xf32>
      %cst_40 = arith.constant 1.000000e+00 : f32
      %72 = vector.broadcast %cst_40 : f32 to vector<2x1xf32>
      %73 = arith.addf %72, %71 : vector<2x1xf32>
      %74 = math.sqrt %73 : vector<2x1xf32>
      %cst_41 = arith.constant 1.000000e+00 : f32
      %75 = vector.broadcast %cst_41 : f32 to vector<2x1xf32>
      %76 = arith.addf %75, %74 : vector<2x1xf32>
      %77 = tpu.reciprocal %76 {approx = true} : vector<2x1xf32> -> vector<2x1xf32>
      %cst_42 = arith.constant 1.000000e-15 : f32
      %78 = vector.broadcast %cst_42 : f32 to vector<2x1xf32>
      %79 = arith.maximumf %69, %78 : vector<2x1xf32>
      %80 = math.sqrt %79 : vector<2x1xf32>
      %81 = arith.mulf %80, %77 : vector<2x1xf32>
      %cst_43 = arith.constant 0.999989986 : f32
      %82 = vector.broadcast %cst_43 : f32 to vector<2x1xf32>
      %83 = arith.cmpf ogt, %81, %82 : vector<2x1xf32>
      %cst_44 = arith.constant 0.999989986 : f32
      %84 = vector.broadcast %cst_44 : f32 to vector<2x1xf32>
      %85 = arith.divf %84, %81 : vector<2x1xf32>
      %cst_45 = arith.constant 1.000000e+00 : f32
      %86 = vector.broadcast %cst_45 : f32 to vector<2x1xf32>
      %87 = arith.select %83, %85, %86 : vector<2x1xi1>, vector<2x1xf32>
      %88 = arith.mulf %77, %87 : vector<2x1xf32>
      %cst_46 = arith.constant 0.999989986 : f32
      %89 = vector.broadcast %cst_46 : f32 to vector<2x1xf32>
      %90 = arith.minimumf %81, %89 : vector<2x1xf32>
      %91 = vector.shape_cast %88 : vector<2x1xf32> to vector<1x2x1xf32>
      %92 = vector.broadcast %91 : vector<1x2x1xf32> to vector<2x2x256xf32>
      %93 = arith.mulf %68, %92 : vector<2x2x256xf32>
      %94 = arith.mulf %90, %90 : vector<2x1xf32>
      %cst_47 = arith.constant 1.000000e+00 : f32
      %95 = vector.broadcast %cst_47 : f32 to vector<2x1xf32>
      %96 = arith.mulf %95, %94 : vector<2x1xf32>
      %cst_48 = arith.constant 1.000000e+00 : f32
      %97 = vector.broadcast %cst_48 : f32 to vector<2x1xf32>
      %98 = arith.subf %97, %96 : vector<2x1xf32>
      %99 = tpu.reciprocal %98 {approx = true} : vector<2x1xf32> -> vector<2x1xf32>
      %cst_49 = arith.constant 2.000000e+00 : f32
      %100 = vector.broadcast %cst_49 : f32 to vector<2x1xf32>
      %101 = arith.mulf %100, %99 : vector<2x1xf32>
      %102 = vector.shape_cast %101 : vector<2x1xf32> to vector<1x2x1xf32>
      %103 = vector.broadcast %102 : vector<1x2x1xf32> to vector<2x2x256xf32>
      %104 = arith.mulf %103, %93 : vector<2x2x256xf32>
      %cst_50 = arith.constant dense<0.000000e+00> : vector<2x256xf32>
      %105 = vector.multi_reduction <add>, %104, %cst_50 [1] : vector<2x2x256xf32> to vector<2x256xf32>
      %106 = vector.shape_cast %105 : vector<2x256xf32> to vector<2x1x256xf32>
      %cst_51 = arith.constant 1.000000e+00 : f32
      %107 = vector.broadcast %cst_51 : f32 to vector<2x1xf32>
      %108 = arith.subf %101, %107 : vector<2x1xf32>
      %cst_52 = arith.constant dense<0.000000e+00> : vector<1xf32>
      %109 = vector.multi_reduction <add>, %108, %cst_52 [0] : vector<2x1xf32> to vector<1xf32>
      %110 = vector.shape_cast %109 : vector<1xf32> to vector<1x1xf32>
      %cst_53 = arith.constant 1.000000e-15 : f32
      %111 = vector.broadcast %cst_53 : f32 to vector<1x1xf32>
      %112 = arith.maximumf %110, %111 : vector<1x1xf32>
      %113 = tpu.reciprocal %112 {approx = true} : vector<1x1xf32> -> vector<1x1xf32>
      %114 = vector.shape_cast %113 : vector<1x1xf32> to vector<1x1x1xf32>
      %115 = vector.broadcast %114 : vector<1x1x1xf32> to vector<2x1x256xf32>
      %116 = arith.mulf %106, %115 : vector<2x1x256xf32>
      %117 = arith.mulf %116, %116 : vector<2x1x256xf32>
      %cst_54 = arith.constant dense<0.000000e+00> : vector<2x1xf32>
      %118 = vector.multi_reduction <add>, %117, %cst_54 [2] : vector<2x1x256xf32> to vector<2x1xf32>
      %119 = vector.shape_cast %118 : vector<2x1xf32> to vector<2x1x1xf32>
      %cst_55 = arith.constant dense<0.000000e+00> : vector<1x1xf32>
      %120 = vector.multi_reduction <add>, %119, %cst_55 [0] : vector<2x1x1xf32> to vector<1x1xf32>
      %cst_56 = arith.constant 1.000000e-15 : f32
      %121 = vector.broadcast %cst_56 : f32 to vector<1x1xf32>
      %122 = arith.maximumf %120, %121 : vector<1x1xf32>
      %123 = math.sqrt %122 : vector<1x1xf32>
      %cst_57 = arith.constant 1.000000e+00 : f32
      %124 = vector.broadcast %cst_57 : f32 to vector<1x1xf32>
      %125 = arith.mulf %124, %123 : vector<1x1xf32>
      %cst_58 = arith.constant -0.99999988 : f32
      %cst_59 = arith.constant 0.99999988 : f32
      %126 = vector.broadcast %cst_58 : f32 to vector<1x1xf32>
      %127 = arith.maximumf %126, %125 : vector<1x1xf32>
      %128 = vector.broadcast %cst_59 : f32 to vector<1x1xf32>
      %129 = arith.minimumf %128, %127 : vector<1x1xf32>
      %cst_60 = arith.constant 1.000000e+00 : f32
      %130 = vector.broadcast %cst_60 : f32 to vector<1x1xf32>
      %131 = arith.addf %130, %129 : vector<1x1xf32>
      %cst_61 = arith.constant 1.000000e+00 : f32
      %132 = vector.broadcast %cst_61 : f32 to vector<1x1xf32>
      %133 = arith.subf %132, %129 : vector<1x1xf32>
      %134 = arith.divf %131, %133 : vector<1x1xf32>
      %135 = math.log %134 : vector<1x1xf32>
      %cst_62 = arith.constant 5.000000e-01 : f32
      %136 = vector.broadcast %cst_62 : f32 to vector<1x1xf32>
      %137 = arith.mulf %136, %135 : vector<1x1xf32>
      %cst_63 = arith.constant 5.000000e-01 : f32
      %138 = vector.broadcast %cst_63 : f32 to vector<1x1xf32>
      %139 = arith.mulf %138, %137 : vector<1x1xf32>
      %140 = math.tanh %139 : vector<1x1xf32>
      %cst_64 = arith.constant 1.000000e+00 : f32
      %141 = vector.broadcast %cst_64 : f32 to vector<1x1xf32>
      %142 = arith.mulf %141, %123 : vector<1x1xf32>
      %143 = arith.divf %140, %142 : vector<1x1xf32>
      %144 = arith.mulf %123, %143 : vector<1x1xf32>
      %cst_65 = arith.constant 0.999989986 : f32
      %145 = vector.broadcast %cst_65 : f32 to vector<1x1xf32>
      %146 = arith.cmpf ogt, %144, %145 : vector<1x1xf32>
      %cst_66 = arith.constant 0.999989986 : f32
      %147 = vector.broadcast %cst_66 : f32 to vector<1x1xf32>
      %148 = arith.divf %147, %144 : vector<1x1xf32>
      %cst_67 = arith.constant 1.000000e+00 : f32
      %149 = vector.broadcast %cst_67 : f32 to vector<1x1xf32>
      %150 = arith.select %146, %148, %149 : vector<1x1xi1>, vector<1x1xf32>
      %151 = arith.mulf %143, %150 : vector<1x1xf32>
      %cst_68 = arith.constant 0.999989986 : f32
      %152 = vector.broadcast %cst_68 : f32 to vector<1x1xf32>
      %153 = arith.minimumf %144, %152 : vector<1x1xf32>
      %154 = vector.shape_cast %151 : vector<1x1xf32> to vector<1x1x1xf32>
      %155 = vector.broadcast %154 : vector<1x1x1xf32> to vector<2x1x256xf32>
      %156 = arith.mulf %116, %155 : vector<2x1x256xf32>
      %157 = arith.mulf %153, %153 : vector<1x1xf32>
      %cst_69 = arith.constant 0.000000e+00 : f32
      %158 = vector.broadcast %cst_69 : f32 to vector<2x1x256xf32>
      %159 = arith.subf %158, %156 : vector<2x1x256xf32>
      %160 = vector.broadcast %159 : vector<2x1x256xf32> to vector<2x2x256xf32>
      %161 = arith.mulf %160, %93 : vector<2x2x256xf32>
      %cst_70 = arith.constant dense<0.000000e+00> : vector<2x2xf32>
      %162 = vector.multi_reduction <add>, %161, %cst_70 [2] : vector<2x2x256xf32> to vector<2x2xf32>
      %163 = vector.shape_cast %162 : vector<2x2xf32> to vector<2x2x1xf32>
      %cst_71 = arith.constant dense<0.000000e+00> : vector<2x1xf32>
      %164 = vector.multi_reduction <add>, %163, %cst_71 [0] : vector<2x2x1xf32> to vector<2x1xf32>
      %cst_72 = arith.constant 2.000000e+00 : f32
      %165 = vector.broadcast %cst_72 : f32 to vector<2x1xf32>
      %166 = arith.mulf %165, %164 : vector<2x1xf32>
      %cst_73 = arith.constant 1.000000e+00 : f32
      %167 = vector.broadcast %cst_73 : f32 to vector<2x1xf32>
      %168 = arith.addf %167, %166 : vector<2x1xf32>
      %cst_74 = arith.constant 1.000000e+00 : f32
      %169 = vector.broadcast %cst_74 : f32 to vector<2x1xf32>
      %170 = arith.mulf %169, %94 : vector<2x1xf32>
      %171 = arith.addf %168, %170 : vector<2x1xf32>
      %cst_75 = arith.constant 1.000000e+00 : f32
      %172 = vector.broadcast %cst_75 : f32 to vector<1x1xf32>
      %173 = arith.mulf %172, %157 : vector<1x1xf32>
      %cst_76 = arith.constant 1.000000e+00 : f32
      %174 = vector.broadcast %cst_76 : f32 to vector<1x1xf32>
      %175 = arith.subf %174, %173 : vector<1x1xf32>
      %cst_77 = arith.constant 2.000000e+00 : f32
      %176 = vector.broadcast %cst_77 : f32 to vector<2x1xf32>
      %177 = arith.mulf %176, %164 : vector<2x1xf32>
      %cst_78 = arith.constant 1.000000e+00 : f32
      %178 = vector.broadcast %cst_78 : f32 to vector<2x1xf32>
      %179 = arith.addf %178, %177 : vector<2x1xf32>
      %cst_79 = arith.constant 1.000000e+00 : f32
      %180 = vector.broadcast %cst_79 : f32 to vector<1x1xf32>
      %181 = arith.mulf %180, %157 : vector<1x1xf32>
      %182 = vector.broadcast %181 : vector<1x1xf32> to vector<2x1xf32>
      %183 = arith.mulf %182, %94 : vector<2x1xf32>
      %184 = arith.addf %179, %183 : vector<2x1xf32>
      %185 = vector.shape_cast %171 : vector<2x1xf32> to vector<1x2x1xf32>
      %186 = vector.broadcast %185 : vector<1x2x1xf32> to vector<2x2x256xf32>
      %187 = vector.broadcast %159 : vector<2x1x256xf32> to vector<2x2x256xf32>
      %188 = arith.mulf %186, %187 : vector<2x2x256xf32>
      %189 = vector.shape_cast %175 : vector<1x1xf32> to vector<1x1x1xf32>
      %190 = vector.broadcast %189 : vector<1x1x1xf32> to vector<2x2x256xf32>
      %191 = arith.mulf %190, %93 : vector<2x2x256xf32>
      %192 = arith.addf %188, %191 : vector<2x2x256xf32>
      %193 = tpu.reciprocal %184 {approx = true} : vector<2x1xf32> -> vector<2x1xf32>
      %194 = vector.shape_cast %193 : vector<2x1xf32> to vector<1x2x1xf32>
      %195 = vector.broadcast %194 : vector<1x2x1xf32> to vector<2x2x256xf32>
      %196 = arith.mulf %192, %195 : vector<2x2x256xf32>
      %197 = arith.mulf %196, %196 : vector<2x2x256xf32>
      %cst_80 = arith.constant dense<0.000000e+00> : vector<2x2xf32>
      %198 = vector.multi_reduction <add>, %197, %cst_80 [2] : vector<2x2x256xf32> to vector<2x2xf32>
      %199 = vector.shape_cast %198 : vector<2x2xf32> to vector<2x2x1xf32>
      %cst_81 = arith.constant dense<0.000000e+00> : vector<2x1xf32>
      %200 = vector.multi_reduction <add>, %199, %cst_81 [0] : vector<2x2x1xf32> to vector<2x1xf32>
      %cst_82 = arith.constant 1.000000e-15 : f32
      %201 = vector.broadcast %cst_82 : f32 to vector<2x1xf32>
      %202 = arith.maximumf %200, %201 : vector<2x1xf32>
      %203 = math.sqrt %202 : vector<2x1xf32>
      %cst_83 = arith.constant 1.000000e+00 : f32
      %204 = vector.broadcast %cst_83 : f32 to vector<2x1xf32>
      %205 = arith.mulf %204, %203 : vector<2x1xf32>
      %cst_84 = arith.constant -0.99999988 : f32
      %cst_85 = arith.constant 0.99999988 : f32
      %206 = vector.broadcast %cst_84 : f32 to vector<2x1xf32>
      %207 = arith.maximumf %206, %205 : vector<2x1xf32>
      %208 = vector.broadcast %cst_85 : f32 to vector<2x1xf32>
      %209 = arith.minimumf %208, %207 : vector<2x1xf32>
      %cst_86 = arith.constant 1.000000e+00 : f32
      %210 = vector.broadcast %cst_86 : f32 to vector<2x1xf32>
      %211 = arith.addf %210, %209 : vector<2x1xf32>
      %cst_87 = arith.constant 1.000000e+00 : f32
      %212 = vector.broadcast %cst_87 : f32 to vector<2x1xf32>
      %213 = arith.subf %212, %209 : vector<2x1xf32>
      %214 = arith.divf %211, %213 : vector<2x1xf32>
      %215 = math.log %214 : vector<2x1xf32>
      %cst_88 = arith.constant 5.000000e-01 : f32
      %216 = vector.broadcast %cst_88 : f32 to vector<2x1xf32>
      %217 = arith.mulf %216, %215 : vector<2x1xf32>
      %cst_89 = arith.constant 2.000000e+00 : f32
      %218 = vector.broadcast %cst_89 : f32 to vector<2x1xf32>
      %219 = arith.mulf %218, %217 : vector<2x1xf32>
      %220 = arith.mulf %219, %219 : vector<2x1xf32>
      %cst_90 = arith.constant dense<0.000000e+00> : vector<1xf32>
      %221 = vector.multi_reduction <add>, %220, %cst_90 [0] : vector<2x1xf32> to vector<1xf32>
      %222 = vector.shape_cast %221 : vector<1xf32> to vector<1x1xf32>
      %cst_91 = arith.constant 2.000000e+00 : f32
      %223 = vector.broadcast %cst_91 : f32 to vector<1x1xf32>
      %224 = arith.divf %222, %223 : vector<1x1xf32>
      %c0_92 = arith.constant 0 : index
      %225 = memref.load %arg12[%c0_92] : memref<1xf32, #tpu.memory_space<smem>>
      %cst_93 = arith.constant 0.000000e+00 : f32
      %226 = arith.maximumf %225, %cst_93 : f32
      %cst_94 = arith.constant 9.99999997E-7 : f32
      %227 = vector.broadcast %cst_94 : f32 to vector<1x1xf32>
      %228 = arith.addf %224, %227 : vector<1x1xf32>
      %229 = tpu.reciprocal %228 {approx = true} : vector<1x1xf32> -> vector<1x1xf32>
      %230 = vector.broadcast %226 : f32 to vector<1x1xf32>
      %231 = arith.mulf %230, %229 : vector<1x1xf32>
      %232 = math.sqrt %231 : vector<1x1xf32>
      %cst_95 = arith.constant 1.000000e+00 : f32
      %233 = vector.broadcast %cst_95 : f32 to vector<2x1xf32>
      %234 = arith.mulf %233, %203 : vector<2x1xf32>
      %235 = tpu.reciprocal %234 {approx = true} : vector<2x1xf32> -> vector<2x1xf32>
      %236 = arith.mulf %217, %235 : vector<2x1xf32>
      %237 = vector.broadcast %232 : vector<1x1xf32> to vector<2x1xf32>
      %238 = arith.mulf %236, %237 : vector<2x1xf32>
      %239 = vector.shape_cast %238 : vector<2x1xf32> to vector<1x2x1xf32>
      %240 = vector.broadcast %239 : vector<1x2x1xf32> to vector<2x2x256xf32>
      %241 = arith.mulf %240, %196 : vector<2x2x256xf32>
      %cst_96 = arith.constant 0.000000e+00 : f32
      %242 = vector.broadcast %cst_96 : f32 to vector<2x2x256xf32>
      %243 = arith.maximumf %241, %242 : vector<2x2x256xf32>
      %244 = arith.mulf %243, %243 : vector<2x2x256xf32>
      %cst_97 = arith.constant dense<0.000000e+00> : vector<2x2xf32>
      %245 = vector.multi_reduction <add>, %244, %cst_97 [2] : vector<2x2x256xf32> to vector<2x2xf32>
      %246 = vector.shape_cast %245 : vector<2x2xf32> to vector<2x2x1xf32>
      %cst_98 = arith.constant dense<0.000000e+00> : vector<2x1xf32>
      %247 = vector.multi_reduction <add>, %246, %cst_98 [0] : vector<2x2x1xf32> to vector<2x1xf32>
      %cst_99 = arith.constant 1.000000e-15 : f32
      %248 = vector.broadcast %cst_99 : f32 to vector<2x1xf32>
      %249 = arith.maximumf %247, %248 : vector<2x1xf32>
      %250 = math.sqrt %249 : vector<2x1xf32>
      %cst_100 = arith.constant 1.000000e+00 : f32
      %251 = vector.broadcast %cst_100 : f32 to vector<2x1xf32>
      %252 = arith.mulf %251, %250 : vector<2x1xf32>
      %253 = math.tanh %252 : vector<2x1xf32>
      %cst_101 = arith.constant 1.000000e+00 : f32
      %254 = vector.broadcast %cst_101 : f32 to vector<2x1xf32>
      %255 = arith.divf %253, %254 : vector<2x1xf32>
      %256 = tpu.reciprocal %250 {approx = true} : vector<2x1xf32> -> vector<2x1xf32>
      %257 = arith.mulf %255, %256 : vector<2x1xf32>
      %cst_102 = arith.constant 0.999989986 : f32
      %258 = vector.broadcast %cst_102 : f32 to vector<2x1xf32>
      %259 = arith.cmpf ogt, %253, %258 : vector<2x1xf32>
      %cst_103 = arith.constant 0.999989986 : f32
      %260 = vector.broadcast %cst_103 : f32 to vector<2x1xf32>
      %261 = arith.divf %260, %253 : vector<2x1xf32>
      %cst_104 = arith.constant 1.000000e+00 : f32
      %262 = vector.broadcast %cst_104 : f32 to vector<2x1xf32>
      %263 = arith.select %259, %261, %262 : vector<2x1xi1>, vector<2x1xf32>
      %264 = arith.mulf %257, %263 : vector<2x1xf32>
      %cst_105 = arith.constant 0.999989986 : f32
      %265 = vector.broadcast %cst_105 : f32 to vector<2x1xf32>
      %266 = arith.minimumf %253, %265 : vector<2x1xf32>
      %267 = vector.shape_cast %264 : vector<2x1xf32> to vector<1x2x1xf32>
      %268 = vector.broadcast %267 : vector<1x2x1xf32> to vector<2x2x256xf32>
      %269 = arith.mulf %268, %243 : vector<2x2x256xf32>
      %270 = arith.mulf %266, %266 : vector<2x1xf32>
      %cst_106 = arith.constant 1.000000e+00 : f32
      %271 = vector.broadcast %cst_106 : f32 to vector<2x1xf32>
      %272 = arith.mulf %271, %270 : vector<2x1xf32>
      %cst_107 = arith.constant 1.000000e+00 : f32
      %273 = vector.broadcast %cst_107 : f32 to vector<2x1xf32>
      %274 = arith.subf %273, %272 : vector<2x1xf32>
      %275 = tpu.reciprocal %274 {approx = true} : vector<2x1xf32> -> vector<2x1xf32>
      %cst_108 = arith.constant 2.000000e+00 : f32
      %276 = vector.broadcast %cst_108 : f32 to vector<2x1xf32>
      %277 = arith.mulf %276, %275 : vector<2x1xf32>
      %cst_109 = arith.constant 0.000000e+00 : f32
      %278 = vector.broadcast %cst_109 : f32 to vector<2x256xf32>
      %279 = vector.extract_strided_slice %269 {offsets = [0, 0, 0], sizes = [1, 2, 256], strides = [1, 1, 1]} : vector<2x2x256xf32> to vector<1x2x256xf32>
      %280 = vector.shape_cast %279 : vector<1x2x256xf32> to vector<2x256xf32>
      %281 = arith.truncf %280 : vector<2x256xf32> to vector<2x256xbf16>
      %c0_110 = arith.constant 0 : index
      %c0_111 = arith.constant 0 : index
      %c0_112 = arith.constant 0 : index
      %282 = vector.load %arg7[%c0_110, %c0_111, %c0_112] : memref<2x256x256xbf16, #tpu.memory_space<vmem>>, vector<1x256x256xbf16>
      %283 = vector.shape_cast %282 : vector<1x256x256xbf16> to vector<256x256xbf16>
      %cst_113 = arith.constant dense<0.000000e+00> : vector<2x256xf32>
      %284 = tpu.matmul %281, %283, %cst_113 {dimension_numbers = #tpu.dot_dimension_numbers<[1], [0], [0], [1], [0, 0, 1, 1], [], []>} : vector<2x256xbf16>, vector<256x256xbf16>, vector<2x256xf32> -> vector<2x256xf32>
      %285 = arith.addf %278, %284 : vector<2x256xf32>
      %286 = vector.extract_strided_slice %269 {offsets = [1, 0, 0], sizes = [1, 2, 256], strides = [1, 1, 1]} : vector<2x2x256xf32> to vector<1x2x256xf32>
      %287 = vector.shape_cast %286 : vector<1x2x256xf32> to vector<2x256xf32>
      %288 = arith.truncf %287 : vector<2x256xf32> to vector<2x256xbf16>
      %c1 = arith.constant 1 : index
      %c0_114 = arith.constant 0 : index
      %c0_115 = arith.constant 0 : index
      %289 = vector.load %arg7[%c1, %c0_114, %c0_115] : memref<2x256x256xbf16, #tpu.memory_space<vmem>>, vector<1x256x256xbf16>
      %290 = vector.shape_cast %289 : vector<1x256x256xbf16> to vector<256x256xbf16>
      %cst_116 = arith.constant dense<0.000000e+00> : vector<2x256xf32>
      %291 = tpu.matmul %288, %290, %cst_116 {dimension_numbers = #tpu.dot_dimension_numbers<[1], [0], [0], [1], [0, 0, 1, 1], [], []>} : vector<2x256xbf16>, vector<256x256xbf16>, vector<2x256xf32> -> vector<2x256xf32>
      %292 = arith.addf %285, %291 : vector<2x256xf32>
      %cst_117 = arith.constant 1.000000e+00 : f32
      %293 = vector.broadcast %cst_117 : f32 to vector<2x1xf32>
      %294 = arith.mulf %293, %277 : vector<2x1xf32>
      %c0_118 = arith.constant 0 : index
      %c0_119 = arith.constant 0 : index
      %295 = vector.load %arg9[%c0_118, %c0_119] : memref<1x256xf32, #tpu.memory_space<vmem>>, vector<1x256xf32>
      %296 = vector.broadcast %294 : vector<2x1xf32> to vector<2x256xf32>
      %297 = vector.broadcast %295 : vector<1x256xf32> to vector<2x256xf32>
      %298 = arith.mulf %296, %297 : vector<2x256xf32>
      %299 = arith.mulf %298, %292 : vector<2x256xf32>
      %c0_120 = arith.constant 0 : index
      %c0_121 = arith.constant 0 : index
      %300 = vector.load %arg10[%c0_120, %c0_121] : memref<1x256xf32, #tpu.memory_space<vmem>>, vector<1x256xf32>
      %301 = vector.broadcast %300 : vector<1x256xf32> to vector<2x256xf32>
      %302 = arith.mulf %299, %301 : vector<2x256xf32>
      %cst_122 = arith.constant 1.000000e+00 : f32
      %303 = vector.broadcast %cst_122 : f32 to vector<2x1xf32>
      %304 = arith.subf %277, %303 : vector<2x1xf32>
      %c0_123 = arith.constant 0 : index
      %c0_124 = arith.constant 0 : index
      %305 = vector.load %arg11[%c0_123, %c0_124] : memref<1x256xf32, #tpu.memory_space<vmem>>, vector<1x256xf32>
      %306 = vector.broadcast %304 : vector<2x1xf32> to vector<2x256xf32>
      %307 = vector.broadcast %305 : vector<1x256xf32> to vector<2x256xf32>
      %308 = arith.mulf %306, %307 : vector<2x256xf32>
      %309 = arith.subf %302, %308 : vector<2x256xf32>
      %c0_125 = arith.constant 0 : index
      %c0_126 = arith.constant 0 : index
      %310 = vector.load %arg8[%c0_125, %c0_126] : memref<1x256xf32, #tpu.memory_space<vmem>>, vector<1x256xf32>
      %cst_127 = arith.constant 2.000000e+00 : f32
      %311 = vector.broadcast %cst_127 : f32 to vector<1x256xf32>
      %312 = arith.mulf %311, %310 : vector<1x256xf32>
      %313 = math.absf %309 : vector<2x256xf32>
      %cst_128 = arith.constant 0.000000e+00 : f32
      %314 = vector.broadcast %cst_128 : f32 to vector<2x256xf32>
      %315 = arith.cmpf olt, %309, %314 : vector<2x256xf32>
      %cst_129 = arith.constant -1.000000e+00 : f32
      %cst_130 = arith.constant 1.000000e+00 : f32
      %316 = vector.broadcast %cst_129 : f32 to vector<2x256xf32>
      %317 = vector.broadcast %cst_130 : f32 to vector<2x256xf32>
      %318 = arith.select %315, %316, %317 : vector<2x256xi1>, vector<2x256xf32>
      %319 = arith.mulf %313, %313 : vector<2x256xf32>
      %cst_131 = arith.constant 1.000000e+00 : f32
      %320 = vector.broadcast %cst_131 : f32 to vector<2x256xf32>
      %321 = arith.addf %319, %320 : vector<2x256xf32>
      %322 = math.sqrt %321 : vector<2x256xf32>
      %323 = arith.addf %313, %322 : vector<2x256xf32>
      %324 = math.log %323 : vector<2x256xf32>
      %325 = arith.mulf %318, %324 : vector<2x256xf32>
      %326 = vector.broadcast %312 : vector<1x256xf32> to vector<2x256xf32>
      %327 = arith.mulf %326, %325 : vector<2x256xf32>
      %cst_132 = arith.constant -3.200000e+01 : f32
      %cst_133 = arith.constant 3.200000e+01 : f32
      %328 = vector.broadcast %cst_132 : f32 to vector<2x256xf32>
      %329 = arith.maximumf %328, %327 : vector<2x256xf32>
      %330 = vector.broadcast %cst_133 : f32 to vector<2x256xf32>
      %331 = arith.minimumf %330, %329 : vector<2x256xf32>
      %cst_134 = arith.constant 1.000000e+00 : f32
      %332 = vector.broadcast %cst_134 : f32 to vector<2x256xf32>
      %333 = arith.mulf %332, %331 : vector<2x256xf32>
      %334 = math.exp %333 : vector<2x256xf32>
      %335 = tpu.reciprocal %334 {approx = true} : vector<2x256xf32> -> vector<2x256xf32>
      %336 = arith.subf %334, %335 : vector<2x256xf32>
      %cst_135 = arith.constant 5.000000e-01 : f32
      %337 = vector.broadcast %cst_135 : f32 to vector<2x256xf32>
      %338 = arith.mulf %337, %336 : vector<2x256xf32>
      %cst_136 = arith.constant 1.000000e+00 : f32
      %339 = vector.broadcast %cst_136 : f32 to vector<2x256xf32>
      %340 = arith.divf %338, %339 : vector<2x256xf32>
      %341 = arith.mulf %340, %340 : vector<2x256xf32>
      %cst_137 = arith.constant dense<0.000000e+00> : vector<2xf32>
      %342 = vector.multi_reduction <add>, %341, %cst_137 [1] : vector<2x256xf32> to vector<2xf32>
      %343 = vector.shape_cast %342 : vector<2xf32> to vector<2x1xf32>
      %cst_138 = arith.constant 1.000000e+00 : f32
      %344 = vector.broadcast %cst_138 : f32 to vector<2x1xf32>
      %345 = arith.mulf %344, %343 : vector<2x1xf32>
      %cst_139 = arith.constant 1.000000e+00 : f32
      %346 = vector.broadcast %cst_139 : f32 to vector<2x1xf32>
      %347 = arith.addf %346, %345 : vector<2x1xf32>
      %348 = math.sqrt %347 : vector<2x1xf32>
      %cst_140 = arith.constant 1.000000e+00 : f32
      %349 = vector.broadcast %cst_140 : f32 to vector<2x1xf32>
      %350 = arith.addf %349, %348 : vector<2x1xf32>
      %351 = tpu.reciprocal %350 {approx = true} : vector<2x1xf32> -> vector<2x1xf32>
      %cst_141 = arith.constant 1.000000e-15 : f32
      %352 = vector.broadcast %cst_141 : f32 to vector<2x1xf32>
      %353 = arith.maximumf %343, %352 : vector<2x1xf32>
      %354 = math.sqrt %353 : vector<2x1xf32>
      %355 = arith.mulf %354, %351 : vector<2x1xf32>
      %cst_142 = arith.constant 0.999989986 : f32
      %356 = vector.broadcast %cst_142 : f32 to vector<2x1xf32>
      %357 = arith.cmpf ogt, %355, %356 : vector<2x1xf32>
      %cst_143 = arith.constant 0.999989986 : f32
      %358 = vector.broadcast %cst_143 : f32 to vector<2x1xf32>
      %359 = arith.divf %358, %355 : vector<2x1xf32>
      %cst_144 = arith.constant 1.000000e+00 : f32
      %360 = vector.broadcast %cst_144 : f32 to vector<2x1xf32>
      %361 = arith.select %357, %359, %360 : vector<2x1xi1>, vector<2x1xf32>
      %362 = arith.mulf %351, %361 : vector<2x1xf32>
      %363 = vector.broadcast %362 : vector<2x1xf32> to vector<2x256xf32>
      %364 = arith.mulf %340, %363 : vector<2x256xf32>
      %c0_145 = arith.constant 0 : index
      %c0_146 = arith.constant 0 : index
      %365 = vector.load %arg13[%c0_145, %c0_146] : memref<2x256xf32, #tpu.memory_space<vmem>>, vector<2x256xf32>
      tpu.vector_store %arg13[%c0_145, %c0_146], %364 {strides = array<i32>} : memref<2x256xf32, #tpu.memory_space<vmem>>, vector<2x256xf32>,
    } else {
    }
    return
  }
  func.func @transform_0(%arg0: i32) -> (i32, i32) {
    %c0_i32 = arith.constant 0 : i32
    %c0_i32_0 = arith.constant 0 : i32
    %c0_i32_1 = arith.constant 0 : i32
    return %c0_i32, %c0_i32_0 : i32, i32
  }
  func.func @transform_1(%arg0: i32) -> (i32, i32) {
    %c0_i32 = arith.constant 0 : i32
    %c0_i32_0 = arith.constant 0 : i32
    return %c0_i32, %arg0 : i32, i32
  }
  func.func @transform_2(%arg0: i32) -> (i32, i32) {
    %c0_i32 = arith.constant 0 : i32
    %c0_i32_0 = arith.constant 0 : i32
    return %c0_i32, %arg0 : i32, i32
  }
  func.func @transform_3(%arg0: i32) -> (i32, i32) {
    %c0_i32 = arith.constant 0 : i32
    %c0_i32_0 = arith.constant 0 : i32
    return %c0_i32, %arg0 : i32, i32
  }
  func.func @transform_4(%arg0: i32) -> (i32, i32) {
    %c0_i32 = arith.constant 0 : i32
    %c0_i32_0 = arith.constant 0 : i32
    return %c0_i32, %arg0 : i32, i32
  }
  func.func @transform_5(%arg0: i32) -> (i32, i32) {
    %c0_i32 = arith.constant 0 : i32
    %c0_i32_0 = arith.constant 0 : i32
    return %c0_i32, %arg0 : i32, i32
  }
  func.func @transform_6(%arg0: i32) -> (i32, i32, i32) {
    %c0_i32 = arith.constant 0 : i32
    %c0_i32_0 = arith.constant 0 : i32
    %c0_i32_1 = arith.constant 0 : i32
    %c0_i32_2 = arith.constant 0 : i32
    return %c0_i32, %c0_i32_0, %c0_i32_1 : i32, i32, i32
  }
  func.func @transform_7(%arg0: i32) -> (i32, i32) {
    %c0_i32 = arith.constant 0 : i32
    %c0_i32_0 = arith.constant 0 : i32
    %c0_i32_1 = arith.constant 0 : i32
    return %c0_i32, %c0_i32_0 : i32, i32
  }
  func.func @transform_8(%arg0: i32) -> (i32, i32) {
    %c0_i32 = arith.constant 0 : i32
    %c0_i32_0 = arith.constant 0 : i32
    %c0_i32_1 = arith.constant 0 : i32
    return %c0_i32, %c0_i32_0 : i32, i32
  }
  func.func @transform_9(%arg0: i32) -> (i32, i32) {
    %c0_i32 = arith.constant 0 : i32
    %c0_i32_0 = arith.constant 0 : i32
    %c0_i32_1 = arith.constant 0 : i32
    return %c0_i32, %c0_i32_0 : i32, i32
  }
  func.func @transform_10(%arg0: i32) -> (i32, i32) {
    %c0_i32 = arith.constant 0 : i32
    %c0_i32_0 = arith.constant 0 : i32
    %c0_i32_1 = arith.constant 0 : i32
    return %c0_i32, %c0_i32_0 : i32, i32
  }
  func.func @transform_11(%arg0: i32) -> i32 {
    %c0_i32 = arith.constant 0 : i32
    %c0_i32_0 = arith.constant 0 : i32
    return %c0_i32 : i32
  }
  func.func @transform_12(%arg0: i32) -> (i32, i32) {
    %c0_i32 = arith.constant 0 : i32
    %c0_i32_0 = arith.constant 0 : i32
    %c0_i32_1 = arith.constant 0 : i32
    return %c0_i32, %c0_i32_0 : i32, i32
  }
}

</mosaic_0001>

<llo_original>
// kernel: tpu_custom_call.1
$region0: #{tpu_custom_call.1}
  #allocation0 [shape = 'u32[]', space=smem, size = 0x4, offset = 0x4, fixed_abs, tag = 'smem constant byte address 0x4 - core index']
  #allocation1 [shape = 'u32[72,128]{1,0:T(1,128)}', space=vmem, size = 0x9000, scoped, tag = 'internal scratch']
  #allocation2 [shape = 'bf16[2,1024]{1,0:T(2,128)(2,1)}', space=vmem, size = 0x1000, scoped, tag = 'scratch operand']
  #allocation3 [shape = 'f32[2,1]{1,0:T(2,128)}', space=vmem, size = 0x400, scoped, tag = 'scratch operand']
  #allocation4 [shape = 'f32[2,2,256]{2,1,0:T(2,128)}', space=vmem, size = 0x1000, scoped, tag = 'scratch operand']
  #allocation5 [shape = 'f32[2,1]{1,0:T(2,128)}', space=vmem, size = 0x400, scoped, tag = 'scratch operand']
  #allocation6 [shape = 'f32[1]{0:T(128)S(6)}', space=smem, size = 0x200, scoped, tag = 'scoped memory for tpu_custom_call.1']
  %s0 = inlined_call_operand.hbm [shape: f32[2,1024], index: 0, kind: input, shape index: {}]
  %s1 = inlined_call_operand.hbm [shape: bf16[1024,512], index: 1, kind: input, shape index: {}]
  %s2 = inlined_call_operand.hbm [shape: f32[1,512], index: 2, kind: input, shape index: {}]
  %s3 = inlined_call_operand.vmem [shape: f32[1,512], index: 3, kind: input, shape index: {}]
  %s4 = inlined_call_operand.hbm [shape: f32[1,512], index: 4, kind: input, shape index: {}]
  %s5 = inlined_call_operand.hbm [shape: f32[1,512], index: 5, kind: input, shape index: {}]
  %s6 = inlined_call_operand.hbm [shape: bf16[2,256,256], index: 6, kind: input, shape index: {}]
  %s7 = inlined_call_operand.vmem [shape: f32[1,256], index: 7, kind: input, shape index: {}]
  %s8 = inlined_call_operand.vmem [shape: f32[1,256], index: 8, kind: input, shape index: {}]
  %s9 = inlined_call_operand.vmem [shape: f32[1,256], index: 9, kind: input, shape index: {}]
  %s10 = inlined_call_operand.hbm [shape: f32[1,256], index: 10, kind: input, shape index: {}]
  %s11 = inlined_call_operand.<no memory space> [shape: f32[1], index: 11, kind: input, shape index: {}]
  %s12 = inlined_call_operand.hbm [shape: f32[2,256], index: 12, kind: output, shape index: {}]
  %s13 = sld [smem:[#allocation0]]
  $region117: #{tpu_custom_call.1} parent=0
    _
  %s15 = ssub.s32 1, %s13
  %s16 = scalar_select 0, %s15, %s13
  %17 = sst [smem:[#allocation6]] %s11
  $region1: #{tpu_custom_call.1} parent=0
    #allocation7 [shape = 'u8[8192]{0}', space=vmem, size = 0x2000, scoped, tag = 'input window, operand 0, single buffered']
    #allocation8 [shape = 's32[2]{0}', space=sflag, size = 0x8, scoped, tag = 'scoped memory for tpu_custom_call.1']
    #allocation9 [shape = 's32[2]{0}', space=sflag, size = 0x8, scoped, tag = 'scoped memory for tpu_custom_call.1']
    #allocation10 [shape = 'u8[1048576]{0}', space=vmem, size = 0x100000, scoped, tag = 'input window, operand 1']
    #allocation11 [shape = 's32[2]{0}', space=sflag, size = 0x8, scoped, tag = 'scoped memory for tpu_custom_call.1']
    #allocation12 [shape = 'u8[2048]{0}', space=vmem, size = 0x800, scoped, tag = 'input window, operand 2']
    #allocation13 [shape = 'u8[2048]{0}', space=vmem, size = 0x800, scoped, tag = 'input window, operand 4']
    #allocation14 [shape = 's32[2]{0}', space=sflag, size = 0x8, scoped, tag = 'scoped memory for tpu_custom_call.1']
    #allocation15 [shape = 'u8[2048]{0}', space=vmem, size = 0x800, scoped, tag = 'input window, operand 5']
    #allocation16 [shape = 'u8[262144]{0}', space=vmem, size = 0x40000, scoped, tag = 'input window, operand 6, single buffered']
    #allocation17 [shape = 's32[1]{0}', space=sflag, size = 0x4, scoped, tag = 'scoped memory for tpu_custom_call.1']
    #allocation18 [shape = 'u8[1024]{0}', space=vmem, size = 0x400, scoped, tag = 'input window, operand 10, single buffered']
    #allocation19 [shape = 'u8[2048]{0}', space=vmem, size = 0x800, scoped, tag = 'output window, operand 0, single buffered']
    %18 = vsyncpa [#allocation8], 0
    %19 = vsyncpa [#allocation11], 0
    %s20 = scalar_lea.sflag [#allocation11], 1
    %21 = vsyncpa %s20, 0
    %22 = vsyncpa [#allocation14], 0
    %s23 = scalar_lea.sflag [#allocation14], 1
    %24 = vsyncpa %s23, 0
    %25 = vsyncpa [#allocation17], 0
    %26 = vsyncpa [#allocation9], 0
    loop: start=0, step=1, limit=4
    $region2: #{tpu_custom_call.1} parent=1 // loop_pre_header
      _
    $region3: #{tpu_custom_call.1} parent=1 // loop_header
      %s28 = sphi 0, %s32
      %p29 = scmp.ge.s32.totalorder %s28, 4
      %s36 = sphi 0, %s36
      %s38 = sphi 0, %s36
      %s39 = sphi 0, %s38
      %s53 = sphi 0, %s39
      %s59 = sphi 0, %s61
      %s62 = sphi 0, %s59
      %s63 = sphi 0, %s62
      %s79 = sphi 0, %s63
      %s85 = sphi 0, %s87
      %s88 = sphi 0, %s85
      %s89 = sphi 0, %s88
      %s105 = sphi 0, %s89
      %s111 = sphi 0, %s113
      %s114 = sphi 0, %s111
      %s115 = sphi 0, %s114
      %s131 = sphi 0, %s115
      %s137 = sphi 0, %s139
      %s140 = sphi 0, %s137
      %s141 = sphi 0, %s140
      %s157 = sphi 0, %s141
      %s163 = sphi 0, %s165
      %s166 = sphi 0, %s163
      %s167 = sphi 0, %s166
      %s183 = sphi 0, %s167
      %s187 = sphi 0, %s187
      %s189 = sphi 0, %s187
      %s190 = sphi 0, %s189
      %s204 = sphi 0, %s190
      %s208 = sphi 0, %s208
      %s210 = sphi 0, %s208
      %s211 = sphi 0, %s210
      %s225 = sphi 0, %s211
      %s229 = sphi 0, %s229
      %s231 = sphi 0, %s229
      %s232 = sphi 0, %s231
      %s246 = sphi 0, %s232
      %s250 = sphi 0, %s250
      %s252 = sphi 0, %s250
      %s253 = sphi 0, %s252
      %s267 = sphi 0, %s253
      %s271 = sphi 0, %s271
      %s273 = sphi 0, %s271
      %s274 = sphi 0, %s273
      %s288 = sphi 0, %s274
      %s292 = sphi 0, %s292
      %s294 = sphi 0, %s292
      %s295 = sphi 0, %s294
      %s309 = sphi 0, %s295
      %s313 = sphi 0, %s313
      %s315 = sphi 0, %s313
      %s316 = sphi 0, %s315
      %s330 = sphi 0, %s316
    $region4: #{tpu_custom_call.1} parent=1 // loop_header_branch
      %31 = sbr.rel (%p29) target = $region8
    $region5: #{tpu_custom_call.1} parent=1 // loop_body
      %s33 = ssub.s32 %s28, 1
      %s34 = ssub.s32 %s28, 2
      %s35 = sadd.s32 %s28, 1
      %s37 = sadd.s32 %s36, 1
      %p40 = scmp.eq.s32.totalorder %s28, 1
      %p41 = scmp.ne.s32.totalorder %s36, %s38
      %p42 = scmp.eq.s32.totalorder %s28, 0
      %p43 = por %p41, %p42
      %p44 = scmp.ne.s32.totalorder %s36, %s38
      %p45 = scmp.eq.s32.totalorder %s33, 1
      %p46 = por %p44, %p45
      %p47 = scmp.ne.s32.totalorder %s38, %s39
      %p48 = scmp.eq.s32.totalorder %s33, 0
      %p49 = por %p47, %p48
      %p50 = scmp.ne.s32.totalorder %s38, %s39
      %p51 = scmp.eq.s32.totalorder %s34, 1
      %p52 = por %p50, %p51
      %p54 = scmp.ne.s32.totalorder %s39, %s53
      %p55 = scmp.eq.s32.totalorder %s34, 0
      %p56 = por %p54, %p55
      %s57 = ssub.s32 %s28, %s35
      %p58 = scmp.eq.s32.totalorder %s57, 0
      %s60 = sadd.s32 %s59, 1
      %s61 = scalar_select %p58, %s59, %s60
      %p64 = pneg %p58
      %p65 = scmp.eq.s32.totalorder %s28, 1
      %p66 = por %p64, %p65
      %p67 = scmp.ne.s32.totalorder %s59, %s62
      %p68 = scmp.eq.s32.totalorder %s28, 0
      %p69 = por %p67, %p68
      %p70 = scmp.ne.s32.totalorder %s59, %s62
      %p71 = scmp.eq.s32.totalorder %s33, 1
      %p72 = por %p70, %p71
      %p73 = scmp.ne.s32.totalorder %s62, %s63
      %p74 = scmp.eq.s32.totalorder %s33, 0
      %p75 = por %p73, %p74
      %p76 = scmp.ne.s32.totalorder %s62, %s63
      %p77 = scmp.eq.s32.totalorder %s34, 1
      %p78 = por %p76, %p77
      %p80 = scmp.ne.s32.totalorder %s63, %s79
      %p81 = scmp.eq.s32.totalorder %s34, 0
      %p82 = por %p80, %p81
      %s83 = ssub.s32 %s28, %s35
      %p84 = scmp.eq.s32.totalorder %s83, 0
      %s86 = sadd.s32 %s85, 1
      %s87 = scalar_select %p84, %s85, %s86
      %p90 = pneg %p84
      %p91 = scmp.eq.s32.totalorder %s28, 1
      %p92 = por %p90, %p91
      %p93 = scmp.ne.s32.totalorder %s85, %s88
      %p94 = scmp.eq.s32.totalorder %s28, 0
      %p95 = por %p93, %p94
      %p96 = scmp.ne.s32.totalorder %s85, %s88
      %p97 = scmp.eq.s32.totalorder %s33, 1
      %p98 = por %p96, %p97
      %p99 = scmp.ne.s32.totalorder %s88, %s89
      %p100 = scmp.eq.s32.totalorder %s33, 0
      %p101 = por %p99, %p100
      %p102 = scmp.ne.s32.totalorder %s88, %s89
      %p103 = scmp.eq.s32.totalorder %s34, 1
      %p104 = por %p102, %p103
      %p106 = scmp.ne.s32.totalorder %s89, %s105
      %p107 = scmp.eq.s32.totalorder %s34, 0
      %p108 = por %p106, %p107
      %s109 = ssub.s32 %s28, %s35
      %p110 = scmp.eq.s32.totalorder %s109, 0
      %s112 = sadd.s32 %s111, 1
      %s113 = scalar_select %p110, %s111, %s112
      %p116 = pneg %p110
      %p117 = scmp.eq.s32.totalorder %s28, 1
      %p118 = por %p116, %p117
      %p119 = scmp.ne.s32.totalorder %s111, %s114
      %p120 = scmp.eq.s32.totalorder %s28, 0
      %p121 = por %p119, %p120
      %p122 = scmp.ne.s32.totalorder %s111, %s114
      %p123 = scmp.eq.s32.totalorder %s33, 1
      %p124 = por %p122, %p123
      %p125 = scmp.ne.s32.totalorder %s114, %s115
      %p126 = scmp.eq.s32.totalorder %s33, 0
      %p127 = por %p125, %p126
      %p128 = scmp.ne.s32.totalorder %s114, %s115
      %p129 = scmp.eq.s32.totalorder %s34, 1
      %p130 = por %p128, %p129
      %p132 = scmp.ne.s32.totalorder %s115, %s131
      %p133 = scmp.eq.s32.totalorder %s34, 0
      %p134 = por %p132, %p133
      %s135 = ssub.s32 %s28, %s35
      %p136 = scmp.eq.s32.totalorder %s135, 0
      %s138 = sadd.s32 %s137, 1
      %s139 = scalar_select %p136, %s137, %s138
      %p142 = pneg %p136
      %p143 = scmp.eq.s32.totalorder %s28, 1
      %p144 = por %p142, %p143
      %p145 = scmp.ne.s32.totalorder %s137, %s140
      %p146 = scmp.eq.s32.totalorder %s28, 0
      %p147 = por %p145, %p146
      %p148 = scmp.ne.s32.totalorder %s137, %s140
      %p149 = scmp.eq.s32.totalorder %s33, 1
      %p150 = por %p148, %p149
      %p151 = scmp.ne.s32.totalorder %s140, %s141
      %p152 = scmp.eq.s32.totalorder %s33, 0
      %p153 = por %p151, %p152
      %p154 = scmp.ne.s32.totalorder %s140, %s141
      %p155 = scmp.eq.s32.totalorder %s34, 1
      %p156 = por %p154, %p155
      %p158 = scmp.ne.s32.totalorder %s141, %s157
      %p159 = scmp.eq.s32.totalorder %s34, 0
      %p160 = por %p158, %p159
      %s161 = ssub.s32 %s28, %s35
      %p162 = scmp.eq.s32.totalorder %s161, 0
      %s164 = sadd.s32 %s163, 1
      %s165 = scalar_select %p162, %s163, %s164
      %p168 = pneg %p162
      %p169 = scmp.eq.s32.totalorder %s28, 1
      %p170 = por %p168, %p169
      %p171 = scmp.ne.s32.totalorder %s163, %s166
      %p172 = scmp.eq.s32.totalorder %s28, 0
      %p173 = por %p171, %p172
      %p174 = scmp.ne.s32.totalorder %s163, %s166
      %p175 = scmp.eq.s32.totalorder %s33, 1
      %p176 = por %p174, %p175
      %p177 = scmp.ne.s32.totalorder %s166, %s167
      %p178 = scmp.eq.s32.totalorder %s33, 0
      %p179 = por %p177, %p178
      %p180 = scmp.ne.s32.totalorder %s166, %s167
      %p181 = scmp.eq.s32.totalorder %s34, 1
      %p182 = por %p180, %p181
      %p184 = scmp.ne.s32.totalorder %s167, %s183
      %p185 = scmp.eq.s32.totalorder %s34, 0
      %p186 = por %p184, %p185
      %s188 = sadd.s32 %s187, 1
      %p191 = scmp.eq.s32.totalorder %s28, 1
      %p192 = scmp.ne.s32.totalorder %s187, %s189
      %p193 = scmp.eq.s32.totalorder %s28, 0
      %p194 = por %p192, %p193
      %p195 = scmp.ne.s32.totalorder %s187, %s189
      %p196 = scmp.eq.s32.totalorder %s33, 1
      %p197 = por %p195, %p196
      %p198 = scmp.ne.s32.totalorder %s189, %s190
      %p199 = scmp.eq.s32.totalorder %s33, 0
      %p200 = por %p198, %p199
      %p201 = scmp.ne.s32.totalorder %s189, %s190
      %p202 = scmp.eq.s32.totalorder %s34, 1
      %p203 = por %p201, %p202
      %p205 = scmp.ne.s32.totalorder %s190, %s204
      %p206 = scmp.eq.s32.totalorder %s34, 0
      %p207 = por %p205, %p206
      %s209 = sadd.s32 %s208, 1
      %p212 = scmp.eq.s32.totalorder %s28, 1
      %p213 = scmp.ne.s32.totalorder %s208, %s210
      %p214 = scmp.eq.s32.totalorder %s28, 0
      %p215 = por %p213, %p214
      %p216 = scmp.ne.s32.totalorder %s208, %s210
      %p217 = scmp.eq.s32.totalorder %s33, 1
      %p218 = por %p216, %p217
      %p219 = scmp.ne.s32.totalorder %s210, %s211
      %p220 = scmp.eq.s32.totalorder %s33, 0
      %p221 = por %p219, %p220
      %p222 = scmp.ne.s32.totalorder %s210, %s211
      %p223 = scmp.eq.s32.totalorder %s34, 1
      %p224 = por %p222, %p223
      %p226 = scmp.ne.s32.totalorder %s211, %s225
      %p227 = scmp.eq.s32.totalorder %s34, 0
      %p228 = por %p226, %p227
      %s230 = sadd.s32 %s229, 1
      %p233 = scmp.eq.s32.totalorder %s28, 1
      %p234 = scmp.ne.s32.totalorder %s229, %s231
      %p235 = scmp.eq.s32.totalorder %s28, 0
      %p236 = por %p234, %p235
      %p237 = scmp.ne.s32.totalorder %s229, %s231
      %p238 = scmp.eq.s32.totalorder %s33, 1
      %p239 = por %p237, %p238
      %p240 = scmp.ne.s32.totalorder %s231, %s232
      %p241 = scmp.eq.s32.totalorder %s33, 0
      %p242 = por %p240, %p241
      %p243 = scmp.ne.s32.totalorder %s231, %s232
      %p244 = scmp.eq.s32.totalorder %s34, 1
      %p245 = por %p243, %p244
      %p247 = scmp.ne.s32.totalorder %s232, %s246
      %p248 = scmp.eq.s32.totalorder %s34, 0
      %p249 = por %p247, %p248
      %s251 = sadd.s32 %s250, 1
      %p254 = scmp.eq.s32.totalorder %s28, 1
      %p255 = scmp.ne.s32.totalorder %s250, %s252
      %p256 = scmp.eq.s32.totalorder %s28, 0
      %p257 = por %p255, %p256
      %p258 = scmp.ne.s32.totalorder %s250, %s252
      %p259 = scmp.eq.s32.totalorder %s33, 1
      %p260 = por %p258, %p259
      %p261 = scmp.ne.s32.totalorder %s252, %s253
      %p262 = scmp.eq.s32.totalorder %s33, 0
      %p263 = por %p261, %p262
      %p264 = scmp.ne.s32.totalorder %s252, %s253
      %p265 = scmp.eq.s32.totalorder %s34, 1
      %p266 = por %p264, %p265
      %p268 = scmp.ne.s32.totalorder %s253, %s267
      %p269 = scmp.eq.s32.totalorder %s34, 0
      %p270 = por %p268, %p269
      %s272 = sadd.s32 %s271, 1
      %p275 = scmp.eq.s32.totalorder %s28, 1
      %p276 = scmp.ne.s32.totalorder %s271, %s273
      %p277 = scmp.eq.s32.totalorder %s28, 0
      %p278 = por %p276, %p277
      %p279 = scmp.ne.s32.totalorder %s271, %s273
      %p280 = scmp.eq.s32.totalorder %s33, 1
      %p281 = por %p279, %p280
      %p282 = scmp.ne.s32.totalorder %s273, %s274
      %p283 = scmp.eq.s32.totalorder %s33, 0
      %p284 = por %p282, %p283
      %p285 = scmp.ne.s32.totalorder %s273, %s274
      %p286 = scmp.eq.s32.totalorder %s34, 1
      %p287 = por %p285, %p286
      %p289 = scmp.ne.s32.totalorder %s274, %s288
      %p290 = scmp.eq.s32.totalorder %s34, 0
      %p291 = por %p289, %p290
      %s293 = sadd.s32 %s292, 1
      %p296 = scmp.eq.s32.totalorder %s28, 1
      %p297 = scmp.ne.s32.totalorder %s292, %s294
      %p298 = scmp.eq.s32.totalorder %s28, 0
      %p299 = por %p297, %p298
      %p300 = scmp.ne.s32.totalorder %s292, %s294
      %p301 = scmp.eq.s32.totalorder %s33, 1
      %p302 = por %p300, %p301
      %p303 = scmp.ne.s32.totalorder %s294, %s295
      %p304 = scmp.eq.s32.totalorder %s33, 0
      %p305 = por %p303, %p304
      %p306 = scmp.ne.s32.totalorder %s294, %s295
      %p307 = scmp.eq.s32.totalorder %s34, 1
      %p308 = por %p306, %p307
      %p310 = scmp.ne.s32.totalorder %s295, %s309
      %p311 = scmp.eq.s32.totalorder %s34, 0
      %p312 = por %p310, %p311
      %s314 = sadd.s32 %s313, 1
      %p317 = scmp.eq.s32.totalorder %s28, 1
      %p318 = scmp.ne.s32.totalorder %s313, %s315
      %p319 = scmp.eq.s32.totalorder %s28, 0
      %p320 = por %p318, %p319
      %p321 = scmp.ne.s32.totalorder %s313, %s315
      %p322 = scmp.eq.s32.totalorder %s33, 1
      %p323 = por %p321, %p322
      %p324 = scmp.ne.s32.totalorder %s315, %s316
      %p325 = scmp.eq.s32.totalorder %s33, 0
      %p326 = por %p324, %p325
      %p327 = scmp.ne.s32.totalorder %s315, %s316
      %p328 = scmp.eq.s32.totalorder %s34, 1
      %p329 = por %p327, %p328
      %p331 = scmp.ne.s32.totalorder %s316, %s330
      %p332 = scmp.eq.s32.totalorder %s34, 0
      %p333 = por %p331, %p332
      %p334 = scmp.le.s32.totalorder 1, %s28
      %p335 = scmp.lt.s32.totalorder %s28, 3
      %p336 = pnand %p334, %p335
      %p337 = pneg %p336
      // Predicated region
      $region9: #{tpu_custom_call.1} parent=5 // pred_check
        _
      $region10: #{tpu_custom_call.1} parent=5 // pred_check_branch
        %339 = sbr.rel (%p336) target = $region12
      $region11: #{tpu_custom_call.1} parent=5 // pred_region
        %s340 = ssub.s32 %s28, 1
        // Predicated region
        $region13: #{tpu_custom_call.1} parent=11 // pred_check
          %p341 = pneg %p49
        $region14: #{tpu_custom_call.1} parent=11 // pred_check_branch
          %343 = sbr.rel (%p341) target = $region16
        $region15: #{tpu_custom_call.1} parent=11 // pred_region
          %345 = vsyncadd [#allocation8], 0
          %s347 = sshll.u32 %s0, 4
          %s348 = int_to_ptr.hbm [resolvable:$true] %s347
          %s349 = sshll.u32 [#allocation7], 4
          %s350 = int_to_ptr.vmem [resolvable:$true] %s349
          %352 = dma.hbm_to_vmem [thread:$0]  %s348, 256, %s350, [#allocation8]
        $region16: #{tpu_custom_call.1} parent=11 // pred_fallthru
          _
        // Predicated region
        $region17: #{tpu_custom_call.1} parent=11 // pred_check
          %p353 = pneg %p200
        $region18: #{tpu_custom_call.1} parent=11 // pred_check_branch
          %355 = sbr.rel (%p353) target = $region20
        $region19: #{tpu_custom_call.1} parent=11 // pred_region
          %357 = vsyncadd [#allocation17], 0
          %s358 = sshll.u32 %s6, 4
          %s359 = int_to_ptr.hbm [resolvable:$true] %s358
          %s360 = sshll.u32 [#allocation16], 4
          %s361 = int_to_ptr.vmem [resolvable:$true] %s360
          %366 = dma.hbm_to_vmem [thread:$0]  %s359, 8192, %s361, [#allocation17], 128, 128, 8
        $region20: #{tpu_custom_call.1} parent=11 // pred_fallthru
          _
        // Predicated region
        $region21: #{tpu_custom_call.1} parent=11 // pred_check
          %p367 = pneg %p221
        $region22: #{tpu_custom_call.1} parent=11 // pred_check_branch
          %369 = sbr.rel (%p367) target = $region24
        $region23: #{tpu_custom_call.1} parent=11 // pred_region
          _
        $region24: #{tpu_custom_call.1} parent=11 // pred_fallthru
          _
        // Predicated region
        $region25: #{tpu_custom_call.1} parent=11 // pred_check
          %p370 = pneg %p242
        $region26: #{tpu_custom_call.1} parent=11 // pred_check_branch
          %372 = sbr.rel (%p370) target = $region28
        $region27: #{tpu_custom_call.1} parent=11 // pred_region
          _
        $region28: #{tpu_custom_call.1} parent=11 // pred_fallthru
          _
        // Predicated region
        $region29: #{tpu_custom_call.1} parent=11 // pred_check
          %p373 = pneg %p263
        $region30: #{tpu_custom_call.1} parent=11 // pred_check_branch
          %375 = sbr.rel (%p373) target = $region32
        $region31: #{tpu_custom_call.1} parent=11 // pred_region
          _
        $region32: #{tpu_custom_call.1} parent=11 // pred_fallthru
          _
        // Predicated region
        $region33: #{tpu_custom_call.1} parent=11 // pred_check
          %p376 = pneg %p284
        $region34: #{tpu_custom_call.1} parent=11 // pred_check_branch
          %378 = sbr.rel (%p376) target = $region36
        $region35: #{tpu_custom_call.1} parent=11 // pred_region
          %380 = vsyncadd [#allocation17], 0
          %s382 = sshll.u32 %s10, 4
          %s383 = int_to_ptr.hbm [resolvable:$true] %s382
          %s384 = sshll.u32 [#allocation18], 4
          %s385 = int_to_ptr.vmem [resolvable:$true] %s384
          %387 = dma.hbm_to_vmem [thread:$0]  %s383, 32, %s385, [#allocation17]
        $region36: #{tpu_custom_call.1} parent=11 // pred_fallthru
          _
        // Predicated region
        $region37: #{tpu_custom_call.1} parent=11 // pred_check
          %p388 = pneg %p305
        $region38: #{tpu_custom_call.1} parent=11 // pred_check_branch
          %390 = sbr.rel (%p388) target = $region40
        $region39: #{tpu_custom_call.1} parent=11 // pred_region
          _
        $region40: #{tpu_custom_call.1} parent=11 // pred_fallthru
          _
      $region12: #{tpu_custom_call.1} parent=5 // pred_fallthru
        _
      %p391 = scmp.lt.s32.totalorder %s28, 2
      // Predicated region
      $region41: #{tpu_custom_call.1} parent=5 // pred_check
        %p392 = pneg %p391
      $region42: #{tpu_custom_call.1} parent=5 // pred_check_branch
        %394 = sbr.rel (%p392) target = $region44
      $region43: #{tpu_custom_call.1} parent=5 // pred_region
        // Predicated region
        $region45: #{tpu_custom_call.1} parent=43 // pred_check
          %p395 = pneg %p69
        $region46: #{tpu_custom_call.1} parent=43 // pred_check_branch
          %397 = sbr.rel (%p395) target = $region48
        $region47: #{tpu_custom_call.1} parent=43 // pred_region
          %s398 = sand.u32 %s28, 1
          %s399 = scalar_lea.sflag [#allocation11], %s398
          %s400 = sand.u32 %s59, 1
          %s401 = smul.addr %s400, 1024
          %s402 = scalar_lea.vmem [#allocation10], %s401
          %s403 = smul.u32 2, %s28
          %405 = vsyncadd %s399, 0
          %s406 = smul.addr %s403, 4
          %s407 = scalar_lea.hbm %s1, %s406
          %s408 = sshll.u32 %s407, 4
          %s409 = int_to_ptr.hbm [resolvable:$true] %s408
          %s410 = sshll.u32 %s402, 4
          %s411 = int_to_ptr.vmem [resolvable:$true] %s410
          %416 = dma.hbm_to_vmem [thread:$0]  %s409, 16384, %s411, %s399, 256, 128, 8
        $region48: #{tpu_custom_call.1} parent=43 // pred_fallthru
          _
        // Predicated region
        $region49: #{tpu_custom_call.1} parent=43 // pred_check
          %p417 = pneg %p95
        $region50: #{tpu_custom_call.1} parent=43 // pred_check_branch
          %419 = sbr.rel (%p417) target = $region52
        $region51: #{tpu_custom_call.1} parent=43 // pred_region
          %s420 = sand.u32 %s28, 1
          %s421 = scalar_lea.sflag [#allocation11], %s420
          %s422 = sand.u32 %s85, 1
          %s423 = smul.addr %s422, 2
          %s424 = scalar_lea.vmem [#allocation12], %s423
          %s425 = smul.u32 2, %s28
          %427 = vsyncadd %s421, 0
          %s428 = scalar_lea.hbm %s2, %s425
          %s430 = sshll.u32 %s428, 4
          %s431 = int_to_ptr.hbm [resolvable:$true] %s430
          %s432 = sshll.u32 %s424, 4
          %s433 = int_to_ptr.vmem [resolvable:$true] %s432
          %435 = dma.hbm_to_vmem [thread:$0]  %s431, 32, %s433, %s421
        $region52: #{tpu_custom_call.1} parent=43 // pred_fallthru
          _
        // Predicated region
        $region53: #{tpu_custom_call.1} parent=43 // pred_check
          %p436 = pneg %p121
        $region54: #{tpu_custom_call.1} parent=43 // pred_check_branch
          %438 = sbr.rel (%p436) target = $region56
        $region55: #{tpu_custom_call.1} parent=43 // pred_region
          %s439 = smul.u32 2, %s28
          %p440 = scmp.lt.s32.totalorder %s439, 3
          %s441 = scalar_select %p440, %s439, 3
          %s442 = scalar_lea.vmem %s3, %s441
          %s443 = smul.u32 2, %s28
        $region56: #{tpu_custom_call.1} parent=43 // pred_fallthru
          _
        // Predicated region
        $region57: #{tpu_custom_call.1} parent=43 // pred_check
          %p444 = pneg %p147
        $region58: #{tpu_custom_call.1} parent=43 // pred_check_branch
          %446 = sbr.rel (%p444) target = $region60
        $region59: #{tpu_custom_call.1} parent=43 // pred_region
          %s447 = sand.u32 %s28, 1
          %s448 = scalar_lea.sflag [#allocation14], %s447
          %s449 = sand.u32 %s137, 1
          %s450 = smul.addr %s449, 2
          %s451 = scalar_lea.vmem [#allocation13], %s450
          %s452 = smul.u32 2, %s28
          %454 = vsyncadd %s448, 0
          %s455 = scalar_lea.hbm %s4, %s452
          %s457 = sshll.u32 %s455, 4
          %s458 = int_to_ptr.hbm [resolvable:$true] %s457
          %s459 = sshll.u32 %s451, 4
          %s460 = int_to_ptr.vmem [resolvable:$true] %s459
          %462 = dma.hbm_to_vmem [thread:$0]  %s458, 32, %s460, %s448
        $region60: #{tpu_custom_call.1} parent=43 // pred_fallthru
          _
        // Predicated region
        $region61: #{tpu_custom_call.1} parent=43 // pred_check
          %p463 = pneg %p173
        $region62: #{tpu_custom_call.1} parent=43 // pred_check_branch
          %465 = sbr.rel (%p463) target = $region64
        $region63: #{tpu_custom_call.1} parent=43 // pred_region
          %s466 = sand.u32 %s28, 1
          %s467 = scalar_lea.sflag [#allocation14], %s466
          %s468 = sand.u32 %s163, 1
          %s469 = smul.addr %s468, 2
          %s470 = scalar_lea.vmem [#allocation15], %s469
          %s471 = smul.u32 2, %s28
          %473 = vsyncadd %s467, 0
          %s474 = scalar_lea.hbm %s5, %s471
          %s476 = sshll.u32 %s474, 4
          %s477 = int_to_ptr.hbm [resolvable:$true] %s476
          %s478 = sshll.u32 %s470, 4
          %s479 = int_to_ptr.vmem [resolvable:$true] %s478
          %481 = dma.hbm_to_vmem [thread:$0]  %s477, 32, %s479, %s467
        $region64: #{tpu_custom_call.1} parent=43 // pred_fallthru
          _
      $region44: #{tpu_custom_call.1} parent=5 // pred_fallthru
        _
      %p482 = scmp.le.s32.totalorder 1, %s28
      %p483 = scmp.lt.s32.totalorder %s28, 3
      %p484 = pnand %p482, %p483
      %p485 = pneg %p484
      // Predicated region
      $region65: #{tpu_custom_call.1} parent=5 // pred_check
        _
      $region66: #{tpu_custom_call.1} parent=5 // pred_check_branch
        %487 = sbr.rel (%p484) target = $region68
      $region67: #{tpu_custom_call.1} parent=5 // pred_region
        %s488 = ssub.s32 %s28, 1
        // Predicated region
        $region69: #{tpu_custom_call.1} parent=67 // pred_check
          %p489 = pneg %p49
        $region70: #{tpu_custom_call.1} parent=67 // pred_check_branch
          %491 = sbr.rel (%p489) target = $region72
        $region71: #{tpu_custom_call.1} parent=67 // pred_region
          %493 = dma.done [#allocation8], 256
        $region72: #{tpu_custom_call.1} parent=67 // pred_fallthru
          _
        %s494 = sand.u32 %s33, 1
        %s495 = scalar_lea.sflag [#allocation11], %s494
        %s496 = sand.u32 %s62, 1
        %s497 = smul.addr %s496, 1024
        %s498 = scalar_lea.vmem [#allocation10], %s497
        // Predicated region
        $region73: #{tpu_custom_call.1} parent=67 // pred_check
          %p499 = pneg %p75
        $region74: #{tpu_custom_call.1} parent=67 // pred_check_branch
          %501 = sbr.rel (%p499) target = $region76
        $region75: #{tpu_custom_call.1} parent=67 // pred_region
          %503 = dma.done %s495, 16384
        $region76: #{tpu_custom_call.1} parent=67 // pred_fallthru
          _
        %s504 = sand.u32 %s33, 1
        %s505 = scalar_lea.sflag [#allocation11], %s504
        %s506 = sand.u32 %s88, 1
        %s507 = smul.addr %s506, 2
        %s508 = scalar_lea.vmem [#allocation12], %s507
        // Predicated region
        $region77: #{tpu_custom_call.1} parent=67 // pred_check
          %p509 = pneg %p101
        $region78: #{tpu_custom_call.1} parent=67 // pred_check_branch
          %511 = sbr.rel (%p509) target = $region80
        $region79: #{tpu_custom_call.1} parent=67 // pred_region
          %513 = dma.done %s505, 32
        $region80: #{tpu_custom_call.1} parent=67 // pred_fallthru
          _
        %s514 = sand.u32 %s33, 1
        %s515 = scalar_lea.sflag [#allocation14], %s514
        %s516 = sand.u32 %s140, 1
        %s517 = smul.addr %s516, 2
        %s518 = scalar_lea.vmem [#allocation13], %s517
        // Predicated region
        $region81: #{tpu_custom_call.1} parent=67 // pred_check
          %p519 = pneg %p153
        $region82: #{tpu_custom_call.1} parent=67 // pred_check_branch
          %521 = sbr.rel (%p519) target = $region84
        $region83: #{tpu_custom_call.1} parent=67 // pred_region
          %523 = dma.done %s515, 32
        $region84: #{tpu_custom_call.1} parent=67 // pred_fallthru
          _
        %s524 = sand.u32 %s33, 1
        %s525 = scalar_lea.sflag [#allocation14], %s524
        %s526 = sand.u32 %s166, 1
        %s527 = smul.addr %s526, 2
        %s528 = scalar_lea.vmem [#allocation15], %s527
        // Predicated region
        $region85: #{tpu_custom_call.1} parent=67 // pred_check
          %p529 = pneg %p179
        $region86: #{tpu_custom_call.1} parent=67 // pred_check_branch
          %531 = sbr.rel (%p529) target = $region88
        $region87: #{tpu_custom_call.1} parent=67 // pred_region
          %533 = dma.done %s525, 32
        $region88: #{tpu_custom_call.1} parent=67 // pred_fallthru
          _
        // Predicated region
        $region89: #{tpu_custom_call.1} parent=67 // pred_check
          %p534 = pneg %p200
        $region90: #{tpu_custom_call.1} parent=67 // pred_check_branch
          %536 = sbr.rel (%p534) target = $region92
        $region91: #{tpu_custom_call.1} parent=67 // pred_region
          %538 = dma.done [#allocation17], 8192
        $region92: #{tpu_custom_call.1} parent=67 // pred_fallthru
          _
        // Predicated region
        $region93: #{tpu_custom_call.1} parent=67 // pred_check
          %p539 = pneg %p284
        $region94: #{tpu_custom_call.1} parent=67 // pred_check_branch
          %541 = sbr.rel (%p539) target = $region96
        $region95: #{tpu_custom_call.1} parent=67 // pred_region
          %543 = dma.done [#allocation17], 32
        $region96: #{tpu_custom_call.1} parent=67 // pred_fallthru
          _
        %p544 = pneg %p49
        %p545 = pneg %p46
        %s546 = sand.u32 %s33, 1
        %s547 = scalar_lea.sflag [#allocation11], %s546
        %s548 = sand.u32 %s62, 1
        %s549 = smul.addr %s548, 1024
        %s550 = scalar_lea.vmem [#allocation10], %s549
        %p551 = pneg %p75
        %p552 = pneg %p72
        %s553 = sand.u32 %s33, 1
        %s554 = scalar_lea.sflag [#allocation11], %s553
        %s555 = sand.u32 %s88, 1
        %s556 = smul.addr %s555, 2
        %s557 = scalar_lea.vmem [#allocation12], %s556
        %p558 = pneg %p101
        %p559 = pneg %p98
        %s560 = smul.u32 2, %s33
        %p561 = scmp.lt.s32.totalorder %s560, 3
        %s562 = scalar_select %p561, %s560, 3
        %s563 = scalar_lea.vmem %s3, %s562
        %p564 = pneg %p127
        %p565 = pneg %p124
        %s566 = sand.u32 %s33, 1
        %s567 = scalar_lea.sflag [#allocation14], %s566
        %s568 = sand.u32 %s140, 1
        %s569 = smul.addr %s568, 2
        %s570 = scalar_lea.vmem [#allocation13], %s569
        %p571 = pneg %p153
        %p572 = pneg %p150
        %s573 = sand.u32 %s33, 1
        %s574 = scalar_lea.sflag [#allocation14], %s573
        %s575 = sand.u32 %s166, 1
        %s576 = smul.addr %s575, 2
        %s577 = scalar_lea.vmem [#allocation15], %s576
        %p578 = pneg %p179
        %p579 = pneg %p176
        %p580 = pneg %p200
        %p581 = pneg %p197
        %p582 = pneg %p221
        %p583 = pneg %p218
        %p584 = pneg %p242
        %p585 = pneg %p239
        %p586 = pneg %p263
        %p587 = pneg %p260
        %p588 = pneg %p284
        %p589 = pneg %p281
        %p590 = pneg %p305
        %p591 = pneg %p302
        %p592 = pneg %p326
        %p593 = pneg %p323
        %s594 = smul.u32 2, %s33
        %s595 = smul.u32 2, %s33
        %s596 = smul.u32 2, %s33
        %p597 = scmp.lt.s32.totalorder %s596, 3
        %s598 = scalar_select %p597, %s596, 3
        %s599 = scalar_lea.vmem %s3, %s598
        %s600 = smul.u32 2, %s33
        %s601 = smul.u32 2, %s33
        %s602 = smul.u32 2, %s33
        %p603 = scmp.eq.s32.totalorder %s33, 0
        // Predicated region
        $region97: #{tpu_custom_call.1} parent=67 // pred_check
          %p604 = pneg %p603
        $region98: #{tpu_custom_call.1} parent=67 // pred_check_branch
          %606 = sbr.rel (%p604) target = $region100
        $region99: #{tpu_custom_call.1} parent=67 // pred_region
          %v607 = vld [vmem:[#allocation7] sm:$0xff]
          %v608 = vld [vmem:[#allocation7 + $0x8] sm:$0xff]
          %v609 = vmul.f32 %v607, %v607
          %v610 = vmul.f32 %v608, %v608
          %613 = vst [vmem:[#allocation1] ss:$4 sm:$0xff] %v609
          %s614 = scalar_lea.vmem [#allocation1], 32
          %615 = vst [vmem:[%s614] ss:$4 sm:$0xff] %v610
          %v616 = vld.sshfl [vmem:[#allocation1] sm:$0xff pattern:$0x73625140]
          %v617 = vld.sshfl [vmem:[#allocation1 + $0x8] sm:$0xff pattern:$0x73625140]
          %v618 = vld.sshfl [vmem:[#allocation1 + $0x10] sm:$0xff pattern:$0x73625140]
          %v619 = vld.sshfl [vmem:[#allocation1 + $0x18] sm:$0xff pattern:$0x73625140]
          %v620 = vld.sshfl [vmem:[#allocation1 + $0x20] sm:$0xff pattern:$0x73625140]
          %v621 = vld.sshfl [vmem:[#allocation1 + $0x28] sm:$0xff pattern:$0x73625140]
          %v622 = vld.sshfl [vmem:[#allocation1 + $0x30] sm:$0xff pattern:$0x73625140]
          %v623 = vld.sshfl [vmem:[#allocation1 + $0x38] sm:$0xff pattern:$0x73625140]
          %vm632 = vcmask 1041408
          %v633 = vsel %vm632, %v616, 0.0
          %v634 = vsel %vm632, %v617, 0.0
          %v635 = vadd.f32 %v633, %v634
          %v636 = vsel %vm632, %v618, 0.0
          %v637 = vadd.f32 %v635, %v636
          %v638 = vsel %vm632, %v619, 0.0
          %v639 = vadd.f32 %v637, %v638
          %v640 = vsel %vm632, %v620, 0.0
          %v641 = vadd.f32 %v639, %v640
          %v642 = vsel %vm632, %v621, 0.0
          %v643 = vadd.f32 %v641, %v642
          %v644 = vsel %vm632, %v622, 0.0
          %v645 = vadd.f32 %v643, %v644
          %v646 = vsel %vm632, %v623, 0.0
          %v647 = vadd.f32 %v645, %v646
          %648 = vadd.xlane.f32.xlu0 %v647
          %v649 = vpop.xlane.xlu0 %648
          %v650 = vmax.f32 %v649, 1e-15
          %v651 = vrsqrt.pop %v650
          %v652 = vmul.f32 %v651, %v650
          %v653 = vmul.f32 %v652, %v651
          %v654 = vmul.f32 0.5, %v653
          %v655 = vsub.f32 1.5, %v654
          %v656 = vmul.f32 %v651, %v655
          %vm657 = vweird.f32 %v650
          %vm658 = vweird.f32 %v651
          %vm659 = vmor %vm657, %vm658
          %v660 = vsel %vm659, %v651, %v656
          %v661 = vmul.f32 %v660, 0.3
          %664 = vst [vmem:[#allocation1] ss:$4 sm:$0xff] %v607
          %s665 = scalar_lea.vmem [#allocation1], 32
          %666 = vst [vmem:[%s665] ss:$4 sm:$0xff] %v608
          %v667 = vld.sshfl [vmem:[#allocation1] sm:$0xff pattern:$0x73625140]
          %v668 = vld.sshfl [vmem:[#allocation1 + $0x8] sm:$0xff pattern:$0x73625140]
          %v669 = vld.sshfl [vmem:[#allocation1 + $0x10] sm:$0xff pattern:$0x73625140]
          %v670 = vld.sshfl [vmem:[#allocation1 + $0x18] sm:$0xff pattern:$0x73625140]
          %v671 = vld.sshfl [vmem:[#allocation1 + $0x20] sm:$0xff pattern:$0x73625140]
          %v672 = vld.sshfl [vmem:[#allocation1 + $0x28] sm:$0xff pattern:$0x73625140]
          %v673 = vld.sshfl [vmem:[#allocation1 + $0x30] sm:$0xff pattern:$0x73625140]
          %v674 = vld.sshfl [vmem:[#allocation1 + $0x38] sm:$0xff pattern:$0x73625140]
          %v683 = vmul.f32 %v661, %v667
          %v684 = vmul.f32 %v661, %v668
          %v685 = vmul.f32 %v661, %v669
          %v686 = vmul.f32 %v661, %v670
          %v687 = vmul.f32 %v661, %v671
          %v688 = vmul.f32 %v661, %v672
          %v689 = vmul.f32 %v661, %v673
          %v690 = vmul.f32 %v661, %v674
          %v691 = vmul.f32 %v683, %v683
          %v692 = vmul.f32 %v684, %v684
          %v693 = vmul.f32 %v685, %v685
          %v694 = vmul.f32 %v686, %v686
          %v695 = vmul.f32 %v687, %v687
          %v696 = vmul.f32 %v688, %v688
          %v697 = vmul.f32 %v689, %v689
          %v698 = vmul.f32 %v690, %v690
          %v699 = vsel %vm632, %v691, 0.0
          %v700 = vsel %vm632, %v692, 0.0
          %v701 = vadd.f32 %v699, %v700
          %v702 = vsel %vm632, %v693, 0.0
          %v703 = vadd.f32 %v701, %v702
          %v704 = vsel %vm632, %v694, 0.0
          %v705 = vadd.f32 %v703, %v704
          %v706 = vsel %vm632, %v695, 0.0
          %v707 = vadd.f32 %v705, %v706
          %v708 = vsel %vm632, %v696, 0.0
          %v709 = vadd.f32 %v707, %v708
          %v710 = vsel %vm632, %v697, 0.0
          %v711 = vadd.f32 %v709, %v710
          %v712 = vsel %vm632, %v698, 0.0
          %v713 = vadd.f32 %v711, %v712
          %714 = vadd.xlane.f32.xlu0 %v713
          %v715 = vpop.xlane.xlu0 %714
          %v716 = vpack.c.bf16 %v684, %v683
          %v717 = vpack.c.bf16 %v686, %v685
          %v718 = vpack.c.bf16 %v688, %v687
          %v719 = vpack.c.bf16 %v690, %v689
          %v724 = vrot.slane %v716, 3
          %v725 = vrot.slane %v717, 6
          %v726 = vrot.slane %v717, 1
          %v727 = vrot.slane %v718, 4
          %v728 = vrot.slane %v718, 7
          %v729 = vrot.slane %v719, 2
          %v730 = vrot.slane %v719, 5
          %vm731 = vcmask 1040384
          %v734 = vsel %vm731, %v716, %v724
          %vm735 = vcmask 1042434
          %v738 = vsel %vm735, %v725, %v726
          %v739 = vsel %vm632, %v734, %v738
          %vm740 = vcmask 1044484
          %v743 = vsel %vm740, %v727, %v728
          %vm744 = vcmask 1046534
          %v747 = vsel %vm744, %v729, %v730
          %vm748 = vcmask 1045508
          %v749 = vsel %vm748, %v743, %v747
          %vm750 = vcmask 1043456
          %v751 = vsel %vm750, %v739, %v749
          %753 = vst [vmem:[#allocation2] sm:$0xff] %v751
          %v754 = vsub.f32 1.0, %v715
          %v755 = vrcp.pop %v754
          %v756 = vmul.f32 %v755, 2.0
          %vm757 = vcmask 1024
          %758 = vst.msk [vmem:[#allocation3] sm:$0x3] %vm757, %v756
          %759 = vst.msk [vmem:[#allocation5] sm:$0x3] %vm757, 0.0
        $region100: #{tpu_custom_call.1} parent=67 // pred_fallthru
          _
        %v760 = vld [vmem:[#allocation3] sm:$0x3]
        %v761 = vld [vmem:[#allocation2] sm:$0xff]
        %v762 = vld [vmem:[%s498] sm:$0xff]
        %v763 = vld [vmem:[%s498 + $0x8] sm:$0xff]
        %v764 = vld [vmem:[%s498 + $0x10] sm:$0xff]
        %v765 = vld [vmem:[%s498 + $0x18] sm:$0xff]
        %v766 = vld [vmem:[%s498 + $0x20] sm:$0xff]
        %v767 = vld [vmem:[%s498 + $0x28] sm:$0xff]
        %v768 = vld [vmem:[%s498 + $0x30] sm:$0xff]
        %v769 = vld [vmem:[%s498 + $0x38] sm:$0xff]
        %v770 = vld [vmem:[%s498 + $0x40] sm:$0xff]
        %v771 = vld [vmem:[%s498 + $0x48] sm:$0xff]
        %v772 = vld [vmem:[%s498 + $0x50] sm:$0xff]
        %v773 = vld [vmem:[%s498 + $0x58] sm:$0xff]
        %v774 = vld [vmem:[%s498 + $0x60] sm:$0xff]
        %v775 = vld [vmem:[%s498 + $0x68] sm:$0xff]
        %v776 = vld [vmem:[%s498 + $0x70] sm:$0xff]
        %v777 = vld [vmem:[%s498 + $0x78] sm:$0xff]
        %v778 = vld [vmem:[%s498 + $0x80] sm:$0xff]
        %v779 = vld [vmem:[%s498 + $0x88] sm:$0xff]
        %v780 = vld [vmem:[%s498 + $0x90] sm:$0xff]
        %v781 = vld [vmem:[%s498 + $0x98] sm:$0xff]
        %v782 = vld [vmem:[%s498 + $0xa0] sm:$0xff]
        %v783 = vld [vmem:[%s498 + $0xa8] sm:$0xff]
        %v784 = vld [vmem:[%s498 + $0xb0] sm:$0xff]
        %v785 = vld [vmem:[%s498 + $0xb8] sm:$0xff]
        %v786 = vld [vmem:[%s498 + $0xc0] sm:$0xff]
        %v787 = vld [vmem:[%s498 + $0xc8] sm:$0xff]
        %v788 = vld [vmem:[%s498 + $0xd0] sm:$0xff]
        %v789 = vld [vmem:[%s498 + $0xd8] sm:$0xff]
        %v790 = vld [vmem:[%s498 + $0xe0] sm:$0xff]
        %v791 = vld [vmem:[%s498 + $0xe8] sm:$0xff]
        %v792 = vld [vmem:[%s498 + $0xf0] sm:$0xff]
        %v793 = vld [vmem:[%s498 + $0xf8] sm:$0xff]
        %v794 = vld [vmem:[%s498 + $0x100] sm:$0xff]
        %v795 = vld [vmem:[%s498 + $0x108] sm:$0xff]
        %v796 = vld [vmem:[%s498 + $0x110] sm:$0xff]
        %v797 = vld [vmem:[%s498 + $0x118] sm:$0xff]
        %v798 = vld [vmem:[%s498 + $0x120] sm:$0xff]
        %v799 = vld [vmem:[%s498 + $0x128] sm:$0xff]
        %v800 = vld [vmem:[%s498 + $0x130] sm:$0xff]
        %v801 = vld [vmem:[%s498 + $0x138] sm:$0xff]
        %v802 = vld [vmem:[%s498 + $0x140] sm:$0xff]
        %v803 = vld [vmem:[%s498 + $0x148] sm:$0xff]
        %v804 = vld [vmem:[%s498 + $0x150] sm:$0xff]
        %v805 = vld [vmem:[%s498 + $0x158] sm:$0xff]
        %v806 = vld [vmem:[%s498 + $0x160] sm:$0xff]
        %v807 = vld [vmem:[%s498 + $0x168] sm:$0xff]
        %v808 = vld [vmem:[%s498 + $0x170] sm:$0xff]
        %v809 = vld [vmem:[%s498 + $0x178] sm:$0xff]
        %v810 = vld [vmem:[%s498 + $0x180] sm:$0xff]
        %v811 = vld [vmem:[%s498 + $0x188] sm:$0xff]
        %v812 = vld [vmem:[%s498 + $0x190] sm:$0xff]
        %v813 = vld [vmem:[%s498 + $0x198] sm:$0xff]
        %v814 = vld [vmem:[%s498 + $0x1a0] sm:$0xff]
        %v815 = vld [vmem:[%s498 + $0x1a8] sm:$0xff]
        %v816 = vld [vmem:[%s498 + $0x1b0] sm:$0xff]
        %v817 = vld [vmem:[%s498 + $0x1b8] sm:$0xff]
        %v818 = vld [vmem:[%s498 + $0x1c0] sm:$0xff]
        %v819 = vld [vmem:[%s498 + $0x1c8] sm:$0xff]
        %v820 = vld [vmem:[%s498 + $0x1d0] sm:$0xff]
        %v821 = vld [vmem:[%s498 + $0x1d8] sm:$0xff]
        %v822 = vld [vmem:[%s498 + $0x1e0] sm:$0xff]
        %v823 = vld [vmem:[%s498 + $0x1e8] sm:$0xff]
        %v824 = vld [vmem:[%s498 + $0x1f0] sm:$0xff]
        %v825 = vld [vmem:[%s498 + $0x1f8] sm:$0xff]
        %v826 = vld [vmem:[%s498 + $0x200] sm:$0xff]
        %v827 = vld [vmem:[%s498 + $0x208] sm:$0xff]
        %v828 = vld [vmem:[%s498 + $0x210] sm:$0xff]
        %v829 = vld [vmem:[%s498 + $0x218] sm:$0xff]
        %v830 = vld [vmem:[%s498 + $0x220] sm:$0xff]
        %v831 = vld [vmem:[%s498 + $0x228] sm:$0xff]
        %v832 = vld [vmem:[%s498 + $0x230] sm:$0xff]
        %v833 = vld [vmem:[%s498 + $0x238] sm:$0xff]
        %v834 = vld [vmem:[%s498 + $0x240] sm:$0xff]
        %v835 = vld [vmem:[%s498 + $0x248] sm:$0xff]
        %v836 = vld [vmem:[%s498 + $0x250] sm:$0xff]
        %v837 = vld [vmem:[%s498 + $0x258] sm:$0xff]
        %v838 = vld [vmem:[%s498 + $0x260] sm:$0xff]
        %v839 = vld [vmem:[%s498 + $0x268] sm:$0xff]
        %v840 = vld [vmem:[%s498 + $0x270] sm:$0xff]
        %v841 = vld [vmem:[%s498 + $0x278] sm:$0xff]
        %v842 = vld [vmem:[%s498 + $0x280] sm:$0xff]
        %v843 = vld [vmem:[%s498 + $0x288] sm:$0xff]
        %v844 = vld [vmem:[%s498 + $0x290] sm:$0xff]
        %v845 = vld [vmem:[%s498 + $0x298] sm:$0xff]
        %v846 = vld [vmem:[%s498 + $0x2a0] sm:$0xff]
        %v847 = vld [vmem:[%s498 + $0x2a8] sm:$0xff]
        %v848 = vld [vmem:[%s498 + $0x2b0] sm:$0xff]
        %v849 = vld [vmem:[%s498 + $0x2b8] sm:$0xff]
        %v850 = vld [vmem:[%s498 + $0x2c0] sm:$0xff]
        %v851 = vld [vmem:[%s498 + $0x2c8] sm:$0xff]
        %v852 = vld [vmem:[%s498 + $0x2d0] sm:$0xff]
        %v853 = vld [vmem:[%s498 + $0x2d8] sm:$0xff]
        %v854 = vld [vmem:[%s498 + $0x2e0] sm:$0xff]
        %v855 = vld [vmem:[%s498 + $0x2e8] sm:$0xff]
        %v856 = vld [vmem:[%s498 + $0x2f0] sm:$0xff]
        %v857 = vld [vmem:[%s498 + $0x2f8] sm:$0xff]
        %v858 = vld [vmem:[%s498 + $0x300] sm:$0xff]
        %v859 = vld [vmem:[%s498 + $0x308] sm:$0xff]
        %v860 = vld [vmem:[%s498 + $0x310] sm:$0xff]
        %v861 = vld [vmem:[%s498 + $0x318] sm:$0xff]
        %v862 = vld [vmem:[%s498 + $0x320] sm:$0xff]
        %v863 = vld [vmem:[%s498 + $0x328] sm:$0xff]
        %v864 = vld [vmem:[%s498 + $0x330] sm:$0xff]
        %v865 = vld [vmem:[%s498 + $0x338] sm:$0xff]
        %v866 = vld [vmem:[%s498 + $0x340] sm:$0xff]
        %v867 = vld [vmem:[%s498 + $0x348] sm:$0xff]
        %v868 = vld [vmem:[%s498 + $0x350] sm:$0xff]
        %v869 = vld [vmem:[%s498 + $0x358] sm:$0xff]
        %v870 = vld [vmem:[%s498 + $0x360] sm:$0xff]
        %v871 = vld [vmem:[%s498 + $0x368] sm:$0xff]
        %v872 = vld [vmem:[%s498 + $0x370] sm:$0xff]
        %v873 = vld [vmem:[%s498 + $0x378] sm:$0xff]
        %v874 = vld [vmem:[%s498 + $0x380] sm:$0xff]
        %v875 = vld [vmem:[%s498 + $0x388] sm:$0xff]
        %v876 = vld [vmem:[%s498 + $0x390] sm:$0xff]
        %v877 = vld [vmem:[%s498 + $0x398] sm:$0xff]
        %v878 = vld [vmem:[%s498 + $0x3a0] sm:$0xff]
        %v879 = vld [vmem:[%s498 + $0x3a8] sm:$0xff]
        %v880 = vld [vmem:[%s498 + $0x3b0] sm:$0xff]
        %v881 = vld [vmem:[%s498 + $0x3b8] sm:$0xff]
        %v882 = vld [vmem:[%s498 + $0x3c0] sm:$0xff]
        %v883 = vld [vmem:[%s498 + $0x3c8] sm:$0xff]
        %v884 = vld [vmem:[%s498 + $0x3d0] sm:$0xff]
        %v885 = vld [vmem:[%s498 + $0x3d8] sm:$0xff]
        %v886 = vld [vmem:[%s498 + $0x3e0] sm:$0xff]
        %v887 = vld [vmem:[%s498 + $0x3e8] sm:$0xff]
        %v888 = vld [vmem:[%s498 + $0x3f0] sm:$0xff]
        %v889 = vld [vmem:[%s498 + $0x3f8] sm:$0xff]
        %891 = vst [vmem:[#allocation1] ss:$9 sm:$0xff] %v761
        %v892 = vld [vmem:[#allocation1] sm:$0xff]
        %v893 = vld [vmem:[#allocation1 + $0x9] sm:$0xff]
        %v894 = vld [vmem:[#allocation1 + $0x12] sm:$0xff]
        %v895 = vld [vmem:[#allocation1 + $0x1b] sm:$0xff]
        %v896 = vld [vmem:[#allocation1 + $0x24] sm:$0xff]
        %v897 = vld [vmem:[#allocation1 + $0x2d] sm:$0xff]
        %v898 = vld [vmem:[#allocation1 + $0x36] sm:$0xff]
        %v899 = vld [vmem:[#allocation1 + $0x3f] sm:$0xff]
        %v1036 = vunpack.c.l.b16 %v762
        %v1037 = vunpack.c.h.b16 %v762
        %v1038 = vunpack.c.l.b16 %v763
        %v1039 = vunpack.c.h.b16 %v763
        %v1040 = vunpack.c.l.b16 %v764
        %v1041 = vunpack.c.h.b16 %v764
        %v1042 = vunpack.c.l.b16 %v765
        %v1043 = vunpack.c.h.b16 %v765
        %v1044 = vunpack.c.l.b16 %v766
        %v1045 = vunpack.c.h.b16 %v766
        %v1046 = vunpack.c.l.b16 %v767
        %v1047 = vunpack.c.h.b16 %v767
        %v1048 = vunpack.c.l.b16 %v768
        %v1049 = vunpack.c.h.b16 %v768
        %v1050 = vunpack.c.l.b16 %v769
        %v1051 = vunpack.c.h.b16 %v769
        %v1052 = vunpack.c.l.b16 %v770
        %v1053 = vunpack.c.h.b16 %v770
        %v1054 = vunpack.c.l.b16 %v771
        %v1055 = vunpack.c.h.b16 %v771
        %v1056 = vunpack.c.l.b16 %v772
        %v1057 = vunpack.c.h.b16 %v772
        %v1058 = vunpack.c.l.b16 %v773
        %v1059 = vunpack.c.h.b16 %v773
        %v1060 = vunpack.c.l.b16 %v774
        %v1061 = vunpack.c.h.b16 %v774
        %v1062 = vunpack.c.l.b16 %v775
        %v1063 = vunpack.c.h.b16 %v775
        %v1064 = vunpack.c.l.b16 %v776
        %v1065 = vunpack.c.h.b16 %v776
        %v1066 = vunpack.c.l.b16 %v777
        %v1067 = vunpack.c.h.b16 %v777
        %v1068 = vunpack.c.l.b16 %v778
        %v1069 = vunpack.c.h.b16 %v778
        %v1070 = vunpack.c.l.b16 %v779
        %v1071 = vunpack.c.h.b16 %v779
        %v1072 = vunpack.c.l.b16 %v780
        %v1073 = vunpack.c.h.b16 %v780
        %v1074 = vunpack.c.l.b16 %v781
        %v1075 = vunpack.c.h.b16 %v781
        %v1076 = vunpack.c.l.b16 %v782
        %v1077 = vunpack.c.h.b16 %v782
        %v1078 = vunpack.c.l.b16 %v783
        %v1079 = vunpack.c.h.b16 %v783
        %v1080 = vunpack.c.l.b16 %v784
        %v1081 = vunpack.c.h.b16 %v784
        %v1082 = vunpack.c.l.b16 %v785
        %v1083 = vunpack.c.h.b16 %v785
        %v1084 = vunpack.c.l.b16 %v786
        %v1085 = vunpack.c.h.b16 %v786
        %v1086 = vunpack.c.l.b16 %v787
        %v1087 = vunpack.c.h.b16 %v787
        %v1088 = vunpack.c.l.b16 %v788
        %v1089 = vunpack.c.h.b16 %v788
        %v1090 = vunpack.c.l.b16 %v789
        %v1091 = vunpack.c.h.b16 %v789
        %v1092 = vunpack.c.l.b16 %v790
        %v1093 = vunpack.c.h.b16 %v790
        %v1094 = vunpack.c.l.b16 %v791
        %v1095 = vunpack.c.h.b16 %v791
        %v1096 = vunpack.c.l.b16 %v792
        %v1097 = vunpack.c.h.b16 %v792
        %v1098 = vunpack.c.l.b16 %v793
        %v1099 = vunpack.c.h.b16 %v793
        %v1100 = vunpack.c.l.b16 %v794
        %v1101 = vunpack.c.h.b16 %v794
        %v1102 = vunpack.c.l.b16 %v795
        %v1103 = vunpack.c.h.b16 %v795
        %v1104 = vunpack.c.l.b16 %v796
        %v1105 = vunpack.c.h.b16 %v796
        %v1106 = vunpack.c.l.b16 %v797
        %v1107 = vunpack.c.h.b16 %v797
        %v1108 = vunpack.c.l.b16 %v798
        %v1109 = vunpack.c.h.b16 %v798
        %v1110 = vunpack.c.l.b16 %v799
        %v1111 = vunpack.c.h.b16 %v799
        %v1112 = vunpack.c.l.b16 %v800
        %v1113 = vunpack.c.h.b16 %v800
        %v1114 = vunpack.c.l.b16 %v801
        %v1115 = vunpack.c.h.b16 %v801
        %v1116 = vunpack.c.l.b16 %v802
        %v1117 = vunpack.c.h.b16 %v802
        %v1118 = vunpack.c.l.b16 %v803
        %v1119 = vunpack.c.h.b16 %v803
        %v1120 = vunpack.c.l.b16 %v804
        %v1121 = vunpack.c.h.b16 %v804
        %v1122 = vunpack.c.l.b16 %v805
        %v1123 = vunpack.c.h.b16 %v805
        %v1124 = vunpack.c.l.b16 %v806
        %v1125 = vunpack.c.h.b16 %v806
        %v1126 = vunpack.c.l.b16 %v807
        %v1127 = vunpack.c.h.b16 %v807
        %v1128 = vunpack.c.l.b16 %v808
        %v1129 = vunpack.c.h.b16 %v808
        %v1130 = vunpack.c.l.b16 %v809
        %v1131 = vunpack.c.h.b16 %v809
        %v1132 = vunpack.c.l.b16 %v810
        %v1133 = vunpack.c.h.b16 %v810
        %v1134 = vunpack.c.l.b16 %v811
        %v1135 = vunpack.c.h.b16 %v811
        %v1136 = vunpack.c.l.b16 %v812
        %v1137 = vunpack.c.h.b16 %v812
        %v1138 = vunpack.c.l.b16 %v813
        %v1139 = vunpack.c.h.b16 %v813
        %v1140 = vunpack.c.l.b16 %v814
        %v1141 = vunpack.c.h.b16 %v814
        %v1142 = vunpack.c.l.b16 %v815
        %v1143 = vunpack.c.h.b16 %v815
        %v1144 = vunpack.c.l.b16 %v816
        %v1145 = vunpack.c.h.b16 %v816
        %v1146 = vunpack.c.l.b16 %v817
        %v1147 = vunpack.c.h.b16 %v817
        %v1148 = vunpack.c.l.b16 %v818
        %v1149 = vunpack.c.h.b16 %v818
        %v1150 = vunpack.c.l.b16 %v819
        %v1151 = vunpack.c.h.b16 %v819
        %v1152 = vunpack.c.l.b16 %v820
        %v1153 = vunpack.c.h.b16 %v820
        %v1154 = vunpack.c.l.b16 %v821
        %v1155 = vunpack.c.h.b16 %v821
        %v1156 = vunpack.c.l.b16 %v822
        %v1157 = vunpack.c.h.b16 %v822
        %v1158 = vunpack.c.l.b16 %v823
        %v1159 = vunpack.c.h.b16 %v823
        %v1160 = vunpack.c.l.b16 %v824
        %v1161 = vunpack.c.h.b16 %v824
        %v1162 = vunpack.c.l.b16 %v825
        %v1163 = vunpack.c.h.b16 %v825
        %v1164 = vunpack.c.l.b16 %v826
        %v1165 = vunpack.c.h.b16 %v826
        %v1166 = vunpack.c.l.b16 %v827
        %v1167 = vunpack.c.h.b16 %v827
        %v1168 = vunpack.c.l.b16 %v828
        %v1169 = vunpack.c.h.b16 %v828
        %v1170 = vunpack.c.l.b16 %v829
        %v1171 = vunpack.c.h.b16 %v829
        %v1172 = vunpack.c.l.b16 %v830
        %v1173 = vunpack.c.h.b16 %v830
        %v1174 = vunpack.c.l.b16 %v831
        %v1175 = vunpack.c.h.b16 %v831
        %v1176 = vunpack.c.l.b16 %v832
        %v1177 = vunpack.c.h.b16 %v832
        %v1178 = vunpack.c.l.b16 %v833
        %v1179 = vunpack.c.h.b16 %v833
        %v1180 = vunpack.c.l.b16 %v834
        %v1181 = vunpack.c.h.b16 %v834
        %v1182 = vunpack.c.l.b16 %v835
        %v1183 = vunpack.c.h.b16 %v835
        %v1184 = vunpack.c.l.b16 %v836
        %v1185 = vunpack.c.h.b16 %v836
        %v1186 = vunpack.c.l.b16 %v837
        %v1187 = vunpack.c.h.b16 %v837
        %v1188 = vunpack.c.l.b16 %v838
        %v1189 = vunpack.c.h.b16 %v838
        %v1190 = vunpack.c.l.b16 %v839
        %v1191 = vunpack.c.h.b16 %v839
        %v1192 = vunpack.c.l.b16 %v840
        %v1193 = vunpack.c.h.b16 %v840
        %v1194 = vunpack.c.l.b16 %v841
        %v1195 = vunpack.c.h.b16 %v841
        %v1196 = vunpack.c.l.b16 %v842
        %v1197 = vunpack.c.h.b16 %v842
        %v1198 = vunpack.c.l.b16 %v843
        %v1199 = vunpack.c.h.b16 %v843
        %v1200 = vunpack.c.l.b16 %v844
        %v1201 = vunpack.c.h.b16 %v844
        %v1202 = vunpack.c.l.b16 %v845
        %v1203 = vunpack.c.h.b16 %v845
        %v1204 = vunpack.c.l.b16 %v846
        %v1205 = vunpack.c.h.b16 %v846
        %v1206 = vunpack.c.l.b16 %v847
        %v1207 = vunpack.c.h.b16 %v847
        %v1208 = vunpack.c.l.b16 %v848
        %v1209 = vunpack.c.h.b16 %v848
        %v1210 = vunpack.c.l.b16 %v849
        %v1211 = vunpack.c.h.b16 %v849
        %v1212 = vunpack.c.l.b16 %v850
        %v1213 = vunpack.c.h.b16 %v850
        %v1214 = vunpack.c.l.b16 %v851
        %v1215 = vunpack.c.h.b16 %v851
        %v1216 = vunpack.c.l.b16 %v852
        %v1217 = vunpack.c.h.b16 %v852
        %v1218 = vunpack.c.l.b16 %v853
        %v1219 = vunpack.c.h.b16 %v853
        %v1220 = vunpack.c.l.b16 %v854
        %v1221 = vunpack.c.h.b16 %v854
        %v1222 = vunpack.c.l.b16 %v855
        %v1223 = vunpack.c.h.b16 %v855
        %v1224 = vunpack.c.l.b16 %v856
        %v1225 = vunpack.c.h.b16 %v856
        %v1226 = vunpack.c.l.b16 %v857
        %v1227 = vunpack.c.h.b16 %v857
        %v1228 = vunpack.c.l.b16 %v858
        %v1229 = vunpack.c.h.b16 %v858
        %v1230 = vunpack.c.l.b16 %v859
        %v1231 = vunpack.c.h.b16 %v859
        %v1232 = vunpack.c.l.b16 %v860
        %v1233 = vunpack.c.h.b16 %v860
        %v1234 = vunpack.c.l.b16 %v861
        %v1235 = vunpack.c.h.b16 %v861
        %v1236 = vunpack.c.l.b16 %v862
        %v1237 = vunpack.c.h.b16 %v862
        %v1238 = vunpack.c.l.b16 %v863
        %v1239 = vunpack.c.h.b16 %v863
        %v1240 = vunpack.c.l.b16 %v864
        %v1241 = vunpack.c.h.b16 %v864
        %v1242 = vunpack.c.l.b16 %v865
        %v1243 = vunpack.c.h.b16 %v865
        %v1244 = vunpack.c.l.b16 %v866
        %v1245 = vunpack.c.h.b16 %v866
        %v1246 = vunpack.c.l.b16 %v867
        %v1247 = vunpack.c.h.b16 %v867
        %v1248 = vunpack.c.l.b16 %v868
        %v1249 = vunpack.c.h.b16 %v868
        %v1250 = vunpack.c.l.b16 %v869
        %v1251 = vunpack.c.h.b16 %v869
        %v1252 = vunpack.c.l.b16 %v870
        %v1253 = vunpack.c.h.b16 %v870
        %v1254 = vunpack.c.l.b16 %v871
        %v1255 = vunpack.c.h.b16 %v871
        %v1256 = vunpack.c.l.b16 %v872
        %v1257 = vunpack.c.h.b16 %v872
        %v1258 = vunpack.c.l.b16 %v873
        %v1259 = vunpack.c.h.b16 %v873
        %v1260 = vunpack.c.l.b16 %v874
        %v1261 = vunpack.c.h.b16 %v874
        %v1262 = vunpack.c.l.b16 %v875
        %v1263 = vunpack.c.h.b16 %v875
        %v1264 = vunpack.c.l.b16 %v876
        %v1265 = vunpack.c.h.b16 %v876
        %v1266 = vunpack.c.l.b16 %v877
        %v1267 = vunpack.c.h.b16 %v877
        %v1268 = vunpack.c.l.b16 %v878
        %v1269 = vunpack.c.h.b16 %v878
        %v1270 = vunpack.c.l.b16 %v879
        %v1271 = vunpack.c.h.b16 %v879
        %v1272 = vunpack.c.l.b16 %v880
        %v1273 = vunpack.c.h.b16 %v880
        %v1274 = vunpack.c.l.b16 %v881
        %v1275 = vunpack.c.h.b16 %v881
        %v1276 = vunpack.c.l.b16 %v882
        %v1277 = vunpack.c.h.b16 %v882
        %v1278 = vunpack.c.l.b16 %v883
        %v1279 = vunpack.c.h.b16 %v883
        %v1280 = vunpack.c.l.b16 %v884
        %v1281 = vunpack.c.h.b16 %v884
        %v1282 = vunpack.c.l.b16 %v885
        %v1283 = vunpack.c.h.b16 %v885
        %v1284 = vunpack.c.l.b16 %v886
        %v1285 = vunpack.c.h.b16 %v886
        %v1286 = vunpack.c.l.b16 %v887
        %v1287 = vunpack.c.h.b16 %v887
        %v1288 = vunpack.c.l.b16 %v888
        %v1289 = vunpack.c.h.b16 %v888
        %v1290 = vunpack.c.l.b16 %v889
        %v1291 = vunpack.c.h.b16 %v889
        %v1292 = vpack.c.b16 %v1038, %v1036
        %v1293 = vpack.c.b16 %v1039, %v1037
        %v1294 = vpack.c.b16 %v1042, %v1040
        %v1295 = vpack.c.b16 %v1043, %v1041
        %v1296 = vpack.c.b16 %v1046, %v1044
        %v1297 = vpack.c.b16 %v1047, %v1045
        %v1298 = vpack.c.b16 %v1050, %v1048
        %v1299 = vpack.c.b16 %v1051, %v1049
        %v1300 = vpack.c.b16 %v1054, %v1052
        %v1301 = vpack.c.b16 %v1055, %v1053
        %v1302 = vpack.c.b16 %v1058, %v1056
        %v1303 = vpack.c.b16 %v1059, %v1057
        %v1304 = vpack.c.b16 %v1062, %v1060
        %v1305 = vpack.c.b16 %v1063, %v1061
        %v1306 = vpack.c.b16 %v1066, %v1064
        %v1307 = vpack.c.b16 %v1067, %v1065
        %v1308 = vpack.c.b16 %v1070, %v1068
        %v1309 = vpack.c.b16 %v1071, %v1069
        %v1310 = vpack.c.b16 %v1074, %v1072
        %v1311 = vpack.c.b16 %v1075, %v1073
        %v1312 = vpack.c.b16 %v1078, %v1076
        %v1313 = vpack.c.b16 %v1079, %v1077
        %v1314 = vpack.c.b16 %v1082, %v1080
        %v1315 = vpack.c.b16 %v1083, %v1081
        %v1316 = vpack.c.b16 %v1086, %v1084
        %v1317 = vpack.c.b16 %v1087, %v1085
        %v1318 = vpack.c.b16 %v1090, %v1088
        %v1319 = vpack.c.b16 %v1091, %v1089
        %v1320 = vpack.c.b16 %v1094, %v1092
        %v1321 = vpack.c.b16 %v1095, %v1093
        %v1322 = vpack.c.b16 %v1098, %v1096
        %v1323 = vpack.c.b16 %v1099, %v1097
        %v1324 = vpack.c.b16 %v1102, %v1100
        %v1325 = vpack.c.b16 %v1103, %v1101
        %v1326 = vpack.c.b16 %v1106, %v1104
        %v1327 = vpack.c.b16 %v1107, %v1105
        %v1328 = vpack.c.b16 %v1110, %v1108
        %v1329 = vpack.c.b16 %v1111, %v1109
        %v1330 = vpack.c.b16 %v1114, %v1112
        %v1331 = vpack.c.b16 %v1115, %v1113
        %v1332 = vpack.c.b16 %v1118, %v1116
        %v1333 = vpack.c.b16 %v1119, %v1117
        %v1334 = vpack.c.b16 %v1122, %v1120
        %v1335 = vpack.c.b16 %v1123, %v1121
        %v1336 = vpack.c.b16 %v1126, %v1124
        %v1337 = vpack.c.b16 %v1127, %v1125
        %v1338 = vpack.c.b16 %v1130, %v1128
        %v1339 = vpack.c.b16 %v1131, %v1129
        %v1340 = vpack.c.b16 %v1134, %v1132
        %v1341 = vpack.c.b16 %v1135, %v1133
        %v1342 = vpack.c.b16 %v1138, %v1136
        %v1343 = vpack.c.b16 %v1139, %v1137
        %v1344 = vpack.c.b16 %v1142, %v1140
        %v1345 = vpack.c.b16 %v1143, %v1141
        %v1346 = vpack.c.b16 %v1146, %v1144
        %v1347 = vpack.c.b16 %v1147, %v1145
        %v1348 = vpack.c.b16 %v1150, %v1148
        %v1349 = vpack.c.b16 %v1151, %v1149
        %v1350 = vpack.c.b16 %v1154, %v1152
        %v1351 = vpack.c.b16 %v1155, %v1153
        %v1352 = vpack.c.b16 %v1158, %v1156
        %v1353 = vpack.c.b16 %v1159, %v1157
        %v1354 = vpack.c.b16 %v1162, %v1160
        %v1355 = vpack.c.b16 %v1163, %v1161
        %v1356 = vpack.c.b16 %v1166, %v1164
        %v1357 = vpack.c.b16 %v1167, %v1165
        %v1358 = vpack.c.b16 %v1170, %v1168
        %v1359 = vpack.c.b16 %v1171, %v1169
        %v1360 = vpack.c.b16 %v1174, %v1172
        %v1361 = vpack.c.b16 %v1175, %v1173
        %v1362 = vpack.c.b16 %v1178, %v1176
        %v1363 = vpack.c.b16 %v1179, %v1177
        %v1364 = vpack.c.b16 %v1182, %v1180
        %v1365 = vpack.c.b16 %v1183, %v1181
        %v1366 = vpack.c.b16 %v1186, %v1184
        %v1367 = vpack.c.b16 %v1187, %v1185
        %v1368 = vpack.c.b16 %v1190, %v1188
        %v1369 = vpack.c.b16 %v1191, %v1189
        %v1370 = vpack.c.b16 %v1194, %v1192
        %v1371 = vpack.c.b16 %v1195, %v1193
        %v1372 = vpack.c.b16 %v1198, %v1196
        %v1373 = vpack.c.b16 %v1199, %v1197
        %v1374 = vpack.c.b16 %v1202, %v1200
        %v1375 = vpack.c.b16 %v1203, %v1201
        %v1376 = vpack.c.b16 %v1206, %v1204
        %v1377 = vpack.c.b16 %v1207, %v1205
        %v1378 = vpack.c.b16 %v1210, %v1208
        %v1379 = vpack.c.b16 %v1211, %v1209
        %v1380 = vpack.c.b16 %v1214, %v1212
        %v1381 = vpack.c.b16 %v1215, %v1213
        %v1382 = vpack.c.b16 %v1218, %v1216
        %v1383 = vpack.c.b16 %v1219, %v1217
        %v1384 = vpack.c.b16 %v1222, %v1220
        %v1385 = vpack.c.b16 %v1223, %v1221
        %v1386 = vpack.c.b16 %v1226, %v1224
        %v1387 = vpack.c.b16 %v1227, %v1225
        %v1388 = vpack.c.b16 %v1230, %v1228
        %v1389 = vpack.c.b16 %v1231, %v1229
        %v1390 = vpack.c.b16 %v1234, %v1232
        %v1391 = vpack.c.b16 %v1235, %v1233
        %v1392 = vpack.c.b16 %v1238, %v1236
        %v1393 = vpack.c.b16 %v1239, %v1237
        %v1394 = vpack.c.b16 %v1242, %v1240
        %v1395 = vpack.c.b16 %v1243, %v1241
        %v1396 = vpack.c.b16 %v1246, %v1244
        %v1397 = vpack.c.b16 %v1247, %v1245
        %v1398 = vpack.c.b16 %v1250, %v1248
        %v1399 = vpack.c.b16 %v1251, %v1249
        %v1400 = vpack.c.b16 %v1254, %v1252
        %v1401 = vpack.c.b16 %v1255, %v1253
        %v1402 = vpack.c.b16 %v1258, %v1256
        %v1403 = vpack.c.b16 %v1259, %v1257
        %v1404 = vpack.c.b16 %v1262, %v1260
        %v1405 = vpack.c.b16 %v1263, %v1261
        %v1406 = vpack.c.b16 %v1266, %v1264
        %v1407 = vpack.c.b16 %v1267, %v1265
        %v1408 = vpack.c.b16 %v1270, %v1268
        %v1409 = vpack.c.b16 %v1271, %v1269
        %v1410 = vpack.c.b16 %v1274, %v1272
        %v1411 = vpack.c.b16 %v1275, %v1273
        %v1412 = vpack.c.b16 %v1278, %v1276
        %v1413 = vpack.c.b16 %v1279, %v1277
        %v1414 = vpack.c.b16 %v1282, %v1280
        %v1415 = vpack.c.b16 %v1283, %v1281
        %v1416 = vpack.c.b16 %v1286, %v1284
        %v1417 = vpack.c.b16 %v1287, %v1285
        %v1418 = vpack.c.b16 %v1290, %v1288
        %v1419 = vpack.c.b16 %v1291, %v1289
        %1548 = vmatpush.bf16.msra.mxu0 %v1306
        %1549 = vmatpush.bf16.msra.mxu0 %v1304
        %1550 = vmatpush.bf16.msra.mxu0 %v1302
        %1551 = vmatpush.bf16.msra.mxu0 %v1300
        %1552 = vmatpush.bf16.msra.mxu0 %v1298
        %1553 = vmatpush.bf16.msra.mxu0 %v1296
        %1554 = vmatpush.bf16.msra.mxu0 %v1294
        %1555 = vmatpush.bf16.msra.mxu0 %v1292
        %1556 = vmatmul.bf16.gmra.mxu0 %v892
        %v1557 = vpop.f32.mrf.mxu0
        %v1558 = vadd.f32 0.0, %v1557
        %v1559 = vpop.f32.mrf.mxu0
        %1560 = vdwg.mxu0
        %1561 = vmatpush.bf16.msra.mxu0 %v1322
        %1562 = vmatpush.bf16.msra.mxu0 %v1320
        %1563 = vmatpush.bf16.msra.mxu0 %v1318
        %1564 = vmatpush.bf16.msra.mxu0 %v1316
        %1565 = vmatpush.bf16.msra.mxu0 %v1314
        %1566 = vmatpush.bf16.msra.mxu0 %v1312
        %1567 = vmatpush.bf16.msra.mxu0 %v1310
        %1568 = vmatpush.bf16.msra.mxu0 %v1308
        %1569 = vmatmul.bf16.gmra.mxu0 %v893
        %v1570 = vpop.f32.mrf.mxu0
        %v1571 = vadd.f32 %v1558, %v1570
        %v1572 = vpop.f32.mrf.mxu0
        %1573 = vdwg.mxu0
        %1574 = vmatpush.bf16.msra.mxu0 %v1338
        %1575 = vmatpush.bf16.msra.mxu0 %v1336
        %1576 = vmatpush.bf16.msra.mxu0 %v1334
        %1577 = vmatpush.bf16.msra.mxu0 %v1332
        %1578 = vmatpush.bf16.msra.mxu0 %v1330
        %1579 = vmatpush.bf16.msra.mxu0 %v1328
        %1580 = vmatpush.bf16.msra.mxu0 %v1326
        %1581 = vmatpush.bf16.msra.mxu0 %v1324
        %1582 = vmatmul.bf16.gmra.mxu0 %v894
        %v1583 = vpop.f32.mrf.mxu0
        %v1584 = vadd.f32 %v1571, %v1583
        %v1585 = vpop.f32.mrf.mxu0
        %1586 = vdwg.mxu0
        %1587 = vmatpush.bf16.msra.mxu0 %v1354
        %1588 = vmatpush.bf16.msra.mxu0 %v1352
        %1589 = vmatpush.bf16.msra.mxu0 %v1350
        %1590 = vmatpush.bf16.msra.mxu0 %v1348
        %1591 = vmatpush.bf16.msra.mxu0 %v1346
        %1592 = vmatpush.bf16.msra.mxu0 %v1344
        %1593 = vmatpush.bf16.msra.mxu0 %v1342
        %1594 = vmatpush.bf16.msra.mxu0 %v1340
        %1595 = vmatmul.bf16.gmra.mxu0 %v895
        %v1596 = vpop.f32.mrf.mxu0
        %v1597 = vadd.f32 %v1584, %v1596
        %v1598 = vpop.f32.mrf.mxu0
        %1599 = vdwg.mxu0
        %1600 = vmatpush.bf16.msra.mxu0 %v1370
        %1601 = vmatpush.bf16.msra.mxu0 %v1368
        %1602 = vmatpush.bf16.msra.mxu0 %v1366
        %1603 = vmatpush.bf16.msra.mxu0 %v1364
        %1604 = vmatpush.bf16.msra.mxu0 %v1362
        %1605 = vmatpush.bf16.msra.mxu0 %v1360
        %1606 = vmatpush.bf16.msra.mxu0 %v1358
        %1607 = vmatpush.bf16.msra.mxu0 %v1356
        %1608 = vmatmul.bf16.gmra.mxu0 %v896
        %v1609 = vpop.f32.mrf.mxu0
        %v1610 = vadd.f32 %v1597, %v1609
        %v1611 = vpop.f32.mrf.mxu0
        %1612 = vdwg.mxu0
        %1613 = vmatpush.bf16.msra.mxu0 %v1386
        %1614 = vmatpush.bf16.msra.mxu0 %v1384
        %1615 = vmatpush.bf16.msra.mxu0 %v1382
        %1616 = vmatpush.bf16.msra.mxu0 %v1380
        %1617 = vmatpush.bf16.msra.mxu0 %v1378
        %1618 = vmatpush.bf16.msra.mxu0 %v1376
        %1619 = vmatpush.bf16.msra.mxu0 %v1374
        %1620 = vmatpush.bf16.msra.mxu0 %v1372
        %1621 = vmatmul.bf16.gmra.mxu0 %v897
        %v1622 = vpop.f32.mrf.mxu0
        %v1623 = vadd.f32 %v1610, %v1622
        %v1624 = vpop.f32.mrf.mxu0
        %1625 = vdwg.mxu0
        %1626 = vmatpush.bf16.msra.mxu0 %v1402
        %1627 = vmatpush.bf16.msra.mxu0 %v1400
        %1628 = vmatpush.bf16.msra.mxu0 %v1398
        %1629 = vmatpush.bf16.msra.mxu0 %v1396
        %1630 = vmatpush.bf16.msra.mxu0 %v1394
        %1631 = vmatpush.bf16.msra.mxu0 %v1392
        %1632 = vmatpush.bf16.msra.mxu0 %v1390
        %1633 = vmatpush.bf16.msra.mxu0 %v1388
        %1634 = vmatmul.bf16.gmra.mxu0 %v898
        %v1635 = vpop.f32.mrf.mxu0
        %v1636 = vadd.f32 %v1623, %v1635
        %v1637 = vpop.f32.mrf.mxu0
        %1638 = vdwg.mxu0
        %1639 = vmatpush.bf16.msra.mxu0 %v1418
        %1640 = vmatpush.bf16.msra.mxu0 %v1416
        %1641 = vmatpush.bf16.msra.mxu0 %v1414
        %1642 = vmatpush.bf16.msra.mxu0 %v1412
        %1643 = vmatpush.bf16.msra.mxu0 %v1410
        %1644 = vmatpush.bf16.msra.mxu0 %v1408
        %1645 = vmatpush.bf16.msra.mxu0 %v1406
        %1646 = vmatpush.bf16.msra.mxu0 %v1404
        %1647 = vmatmul.bf16.gmra.mxu0 %v899
        %v1648 = vpop.f32.mrf.mxu0
        %v1649 = vadd.f32 %v1636, %v1648
        %v1650 = vpop.f32.mrf.mxu0
        %1651 = vdwg.mxu0
        %1652 = vmatpush.bf16.msra.mxu0 %v1307
        %1653 = vmatpush.bf16.msra.mxu0 %v1305
        %1654 = vmatpush.bf16.msra.mxu0 %v1303
        %1655 = vmatpush.bf16.msra.mxu0 %v1301
        %1656 = vmatpush.bf16.msra.mxu0 %v1299
        %1657 = vmatpush.bf16.msra.mxu0 %v1297
        %1658 = vmatpush.bf16.msra.mxu0 %v1295
        %1659 = vmatpush.bf16.msra.mxu0 %v1293
        %1660 = vmatmul.bf16.gmra.mxu0 %v892
        %v1661 = vpop.f32.mrf.mxu0
        %v1662 = vadd.f32 0.0, %v1661
        %v1663 = vpop.f32.mrf.mxu0
        %1664 = vdwg.mxu0
        %1665 = vmatpush.bf16.msra.mxu0 %v1323
        %1666 = vmatpush.bf16.msra.mxu0 %v1321
        %1667 = vmatpush.bf16.msra.mxu0 %v1319
        %1668 = vmatpush.bf16.msra.mxu0 %v1317
        %1669 = vmatpush.bf16.msra.mxu0 %v1315
        %1670 = vmatpush.bf16.msra.mxu0 %v1313
        %1671 = vmatpush.bf16.msra.mxu0 %v1311
        %1672 = vmatpush.bf16.msra.mxu0 %v1309
        %1673 = vmatmul.bf16.gmra.mxu0 %v893
        %v1674 = vpop.f32.mrf.mxu0
        %v1675 = vadd.f32 %v1662, %v1674
        %v1676 = vpop.f32.mrf.mxu0
        %1677 = vdwg.mxu0
        %1678 = vmatpush.bf16.msra.mxu0 %v1339
        %1679 = vmatpush.bf16.msra.mxu0 %v1337
        %1680 = vmatpush.bf16.msra.mxu0 %v1335
        %1681 = vmatpush.bf16.msra.mxu0 %v1333
        %1682 = vmatpush.bf16.msra.mxu0 %v1331
        %1683 = vmatpush.bf16.msra.mxu0 %v1329
        %1684 = vmatpush.bf16.msra.mxu0 %v1327
        %1685 = vmatpush.bf16.msra.mxu0 %v1325
        %1686 = vmatmul.bf16.gmra.mxu0 %v894
        %v1687 = vpop.f32.mrf.mxu0
        %v1688 = vadd.f32 %v1675, %v1687
        %v1689 = vpop.f32.mrf.mxu0
        %1690 = vdwg.mxu0
        %1691 = vmatpush.bf16.msra.mxu0 %v1355
        %1692 = vmatpush.bf16.msra.mxu0 %v1353
        %1693 = vmatpush.bf16.msra.mxu0 %v1351
        %1694 = vmatpush.bf16.msra.mxu0 %v1349
        %1695 = vmatpush.bf16.msra.mxu0 %v1347
        %1696 = vmatpush.bf16.msra.mxu0 %v1345
        %1697 = vmatpush.bf16.msra.mxu0 %v1343
        %1698 = vmatpush.bf16.msra.mxu0 %v1341
        %1699 = vmatmul.bf16.gmra.mxu0 %v895
        %v1700 = vpop.f32.mrf.mxu0
        %v1701 = vadd.f32 %v1688, %v1700
        %v1702 = vpop.f32.mrf.mxu0
        %1703 = vdwg.mxu0
        %1704 = vmatpush.bf16.msra.mxu0 %v1371
        %1705 = vmatpush.bf16.msra.mxu0 %v1369
        %1706 = vmatpush.bf16.msra.mxu0 %v1367
        %1707 = vmatpush.bf16.msra.mxu0 %v1365
        %1708 = vmatpush.bf16.msra.mxu0 %v1363
        %1709 = vmatpush.bf16.msra.mxu0 %v1361
        %1710 = vmatpush.bf16.msra.mxu0 %v1359
        %1711 = vmatpush.bf16.msra.mxu0 %v1357
        %1712 = vmatmul.bf16.gmra.mxu0 %v896
        %v1713 = vpop.f32.mrf.mxu0
        %v1714 = vadd.f32 %v1701, %v1713
        %v1715 = vpop.f32.mrf.mxu0
        %1716 = vdwg.mxu0
        %1717 = vmatpush.bf16.msra.mxu0 %v1387
        %1718 = vmatpush.bf16.msra.mxu0 %v1385
        %1719 = vmatpush.bf16.msra.mxu0 %v1383
        %1720 = vmatpush.bf16.msra.mxu0 %v1381
        %1721 = vmatpush.bf16.msra.mxu0 %v1379
        %1722 = vmatpush.bf16.msra.mxu0 %v1377
        %1723 = vmatpush.bf16.msra.mxu0 %v1375
        %1724 = vmatpush.bf16.msra.mxu0 %v1373
        %1725 = vmatmul.bf16.gmra.mxu0 %v897
        %v1726 = vpop.f32.mrf.mxu0
        %v1727 = vadd.f32 %v1714, %v1726
        %v1728 = vpop.f32.mrf.mxu0
        %1729 = vdwg.mxu0
        %1730 = vmatpush.bf16.msra.mxu0 %v1403
        %1731 = vmatpush.bf16.msra.mxu0 %v1401
        %1732 = vmatpush.bf16.msra.mxu0 %v1399
        %1733 = vmatpush.bf16.msra.mxu0 %v1397
        %1734 = vmatpush.bf16.msra.mxu0 %v1395
        %1735 = vmatpush.bf16.msra.mxu0 %v1393
        %1736 = vmatpush.bf16.msra.mxu0 %v1391
        %1737 = vmatpush.bf16.msra.mxu0 %v1389
        %1738 = vmatmul.bf16.gmra.mxu0 %v898
        %v1739 = vpop.f32.mrf.mxu0
        %v1740 = vadd.f32 %v1727, %v1739
        %v1741 = vpop.f32.mrf.mxu0
        %1742 = vdwg.mxu0
        %1743 = vmatpush.bf16.msra.mxu0 %v1419
        %1744 = vmatpush.bf16.msra.mxu0 %v1417
        %1745 = vmatpush.bf16.msra.mxu0 %v1415
        %1746 = vmatpush.bf16.msra.mxu0 %v1413
        %1747 = vmatpush.bf16.msra.mxu0 %v1411
        %1748 = vmatpush.bf16.msra.mxu0 %v1409
        %1749 = vmatpush.bf16.msra.mxu0 %v1407
        %1750 = vmatpush.bf16.msra.mxu0 %v1405
        %1751 = vmatmul.bf16.gmra.mxu0 %v899
        %v1752 = vpop.f32.mrf.mxu0
        %v1753 = vadd.f32 %v1740, %v1752
        %v1754 = vpop.f32.mrf.mxu0
        %1755 = vdwg.mxu0
        %v1756 = vld [vmem:[%s599] sm:$0x3]
        %1758 = vset.pattern.permute.xlu0 0
        %1759 = vperm.xlu0 %1758, %v760
        %v1760 = vpop.permute.xlu0 %1759
        %v1763 = vperm.slane %v1756, 0
        %v1764 = vperm.slane %v1756, 1
        %v1767 = vmul.f32 %v1760, %v1763
        %v1768 = vmul.f32 %v1760, %v1764
        %v1769 = vmul.f32 %v1767, %v1649
        %v1770 = vmul.f32 %v1768, %v1753
        %v1771 = vld [vmem:[%s518] sm:$0x3]
        %v1773 = vperm.slane %v1771, 0
        %v1774 = vperm.slane %v1771, 1
        %v1777 = vmul.f32 %v1769, %v1773
        %v1778 = vmul.f32 %v1770, %v1774
        %v1779 = vsub.f32 %v760, 1.0
        %v1780 = vld [vmem:[%s528] sm:$0x3]
        %1782 = vset.pattern.permute.xlu0 0
        %1783 = vperm.xlu0 %1782, %v1779
        %v1784 = vpop.permute.xlu0 %1783
        %v1787 = vperm.slane %v1780, 0
        %v1788 = vperm.slane %v1780, 1
        %v1791 = vmul.f32 %v1784, %v1787
        %v1792 = vmul.f32 %v1784, %v1788
        %v1793 = vsub.f32 %v1777, %v1791
        %v1794 = vsub.f32 %v1778, %v1792
        %v1795 = vld [vmem:[%s508] sm:$0x3]
        %v1796 = vmul.f32 %v1795, 2.0
        %v1797 = vand.u32 2147483647, %v1793
        %v1798 = vand.u32 2147483647, %v1794
        %vm1799 = vcmp.lt.f32.partialorder %v1793, 0.0
        %vm1800 = vcmp.lt.f32.partialorder %v1794, 0.0
        %v1801 = vsel %vm1799, -1.0, 1.0
        %v1802 = vsel %vm1800, -1.0, 1.0
        %v1803 = vmul.f32 %v1797, %v1797
        %v1804 = vmul.f32 %v1798, %v1798
        %v1805 = vadd.f32 %v1803, 1.0
        %v1806 = vadd.f32 %v1804, 1.0
        %v1807 = vrsqrt.pop %v1805
        %v1808 = vmul.f32 %v1807, %v1805
        %v1809 = vmul.f32 %v1808, %v1807
        %v1810 = vmul.f32 0.5, %v1809
        %v1811 = vsub.f32 1.5, %v1810
        %v1812 = vmul.f32 %v1807, %v1811
        %v1813 = vmul.f32 %v1805, %v1812
        %vm1814 = vcmp.eq.f32.partialorder %v1805, inf
        %v1815 = vsel %vm1814, %v1805, %v1813
        %vm1816 = vcmp.eq.f32.partialorder %v1805, 0.0
        %v1817 = vand.u32 %v1805, 2147483648
        %v1818 = vsel %vm1816, %v1817, %v1815
        %v1819 = vrsqrt.pop %v1806
        %v1820 = vmul.f32 %v1819, %v1806
        %v1821 = vmul.f32 %v1820, %v1819
        %v1822 = vmul.f32 0.5, %v1821
        %v1823 = vsub.f32 1.5, %v1822
        %v1824 = vmul.f32 %v1819, %v1823
        %v1825 = vmul.f32 %v1806, %v1824
        %vm1826 = vcmp.eq.f32.partialorder %v1806, inf
        %v1827 = vsel %vm1826, %v1806, %v1825
        %vm1828 = vcmp.eq.f32.partialorder %v1806, 0.0
        %v1829 = vand.u32 %v1806, 2147483648
        %v1830 = vsel %vm1828, %v1829, %v1827
        %v1831 = vadd.f32 %v1797, %v1818
        %v1832 = vadd.f32 %v1798, %v1830
        %v1833 = vlog2.pop %v1831
        %v1834 = vmul.f32 %v1833, 0.6931472
        %v1835 = vlog2.pop %v1832
        %v1836 = vmul.f32 %v1835, 0.6931472
        %v1837 = vmul.f32 %v1801, %v1834
        %v1838 = vmul.f32 %v1802, %v1836
        %v1840 = vperm.slane %v1796, 0
        %v1841 = vperm.slane %v1796, 1
        %v1844 = vmul.f32 %v1840, %v1837
        %v1845 = vmul.f32 %v1841, %v1838
        %v1846 = vmax.f32 %v1844, -32.0
        %v1847 = vmax.f32 %v1845, -32.0
        %v1848 = vmin.f32 %v1846, 32.0
        %v1849 = vmin.f32 %v1847, 32.0
        %v1850 = vmul.f32 %v1848, 1.442695
        %v1851 = vpow.pop %v1850
        %v1852 = vmul.f32 %v1849, 1.442695
        %v1853 = vpow.pop %v1852
        %v1854 = vrcp.pop %v1851
        %v1855 = vrcp.pop %v1853
        %v1856 = vsub.f32 %v1851, %v1854
        %v1857 = vsub.f32 %v1853, %v1855
        %v1858 = vmul.f32 %v1856, 0.5
        %v1859 = vmul.f32 %v1857, 0.5
        %v1862 = vrot.slane %v1859, 6
        %vm1863 = vcmask 1041408
        %v1864 = vsel %vm1863, %v1858, %v1862
        %s1866 = smul.u32 %s33, 2
        %s1867 = smul.addr %s1866, 2
        %s1868 = scalar_lea.vmem [#allocation4], %s1867
        %1869 = vst [vmem:[%s1868] sm:$0xf] %v1864
        %v1870 = vld [vmem:[#allocation5] sm:$0x3]
        %v1871 = vmul.f32 %v1858, %v1858
        %v1872 = vmul.f32 %v1859, %v1859
        %v1873 = vsel %vm1863, %v1871, 0.0
        %v1874 = vsel %vm1863, %v1872, 0.0
        %v1875 = vadd.f32 %v1873, %v1874
        %1876 = vadd.xlane.f32.xlu0 %v1875
        %v1877 = vpop.xlane.xlu0 %1876
        %v1878 = vadd.f32 %v1870, %v1877
        %vm1879 = vcmask 1024
        %1880 = vst.msk [vmem:[#allocation5] sm:$0x3] %vm1879, %v1878
        %p1881 = scmp.eq.s32.totalorder %s33, 1
        // Predicated region
        $region101: #{tpu_custom_call.1} parent=67 // pred_check
          %p1882 = pneg %p1881
        $region102: #{tpu_custom_call.1} parent=67 // pred_check_branch
          %1884 = sbr.rel (%p1882) target = $region104
        $region103: #{tpu_custom_call.1} parent=67 // pred_region
          %v1885 = vld [vmem:[#allocation4] sm:$0xf]
          %v1886 = vld [vmem:[#allocation4 + $0x4] sm:$0xf]
          %v1887 = vld [vmem:[#allocation5] sm:$0x3]
          %v1888 = vadd.f32 %v1887, 1.0
          %v1889 = vrsqrt.pop %v1888
          %v1890 = vmul.f32 %v1889, %v1888
          %v1891 = vmul.f32 %v1890, %v1889
          %v1892 = vmul.f32 0.5, %v1891
          %v1893 = vsub.f32 1.5, %v1892
          %v1894 = vmul.f32 %v1889, %v1893
          %v1895 = vmul.f32 %v1888, %v1894
          %vm1896 = vcmp.eq.f32.partialorder %v1888, inf
          %v1897 = vsel %vm1896, %v1888, %v1895
          %vm1898 = vcmp.eq.f32.partialorder %v1888, 0.0
          %v1899 = vand.u32 %v1888, 2147483648
          %v1900 = vsel %vm1898, %v1899, %v1897
          %v1901 = vadd.f32 %v1900, 1.0
          %v1902 = vrcp.pop %v1901
          %v1903 = vmax.f32 %v1887, 1e-15
          %v1904 = vrsqrt.pop %v1903
          %v1905 = vmul.f32 %v1904, %v1903
          %v1906 = vmul.f32 %v1905, %v1904
          %v1907 = vmul.f32 0.5, %v1906
          %v1908 = vsub.f32 1.5, %v1907
          %v1909 = vmul.f32 %v1904, %v1908
          %v1910 = vmul.f32 %v1903, %v1909
          %vm1911 = vcmp.eq.f32.partialorder %v1903, inf
          %v1912 = vsel %vm1911, %v1903, %v1910
          %vm1913 = vcmp.eq.f32.partialorder %v1903, 0.0
          %v1914 = vand.u32 %v1903, 2147483648
          %v1915 = vsel %vm1913, %v1914, %v1912
          %v1916 = vmul.f32 %v1915, %v1902
          %vm1917 = vcmp.gt.f32.partialorder %v1916, 0.99999
          %v1918 = vrcp.pop %v1916
          %v1919 = vmul.f32 %v1916, %v1918
          %v1920 = vsub.f32 1.0, %v1919
          %v1921 = vmul.f32 %v1918, %v1920
          %v1922 = vadd.f32 %v1918, %v1921
          %vm1923 = vweird.f32 %v1916
          %vm1924 = vweird.f32 %v1918
          %vm1925 = vmor %vm1923, %vm1924
          %v1926 = vsel %vm1925, %v1918, %v1922
          %v1927 = vand.u32 2147483647, %v1916
          %vm1928 = vcmp.eq.f32.partialorder %v1927, 8.507059e+37
          %v1929 = vand.u32 %v1916, 2147483648
          %v1930 = vor.u32 1.1754944e-38, %v1929
          %v1931 = vsel %vm1928, %v1930, %v1926
          %v1932 = vmul.f32 0.99999, %v1931
          %v1933 = vsel %vm1917, %v1932, 1.0
          %v1934 = vmul.f32 %v1902, %v1933
          %v1935 = vmin.f32 %v1916, 0.99999
          %1937 = vset.pattern.permute.xlu0 0
          %1938 = vperm.xlu0 %1937, %v1934
          %v1939 = vpop.permute.xlu0 %1938
          %v1941 = vunpack.c.l.s4 269488144
          %v1942 = vunpack.c.0.s8 %v1941
          %v1943 = vperm.slane %v1939, %v1942
          %v1945 = vmul.f32 %v1885, %v1943
          %v1946 = vmul.f32 %v1886, %v1943
          %v1947 = vmul.f32 %v1935, %v1935
          %v1948 = vsub.f32 1.0, %v1947
          %v1949 = vrcp.pop %v1948
          %v1950 = vmul.f32 %v1949, 2.0
          %1952 = vset.pattern.permute.xlu0 0
          %1953 = vperm.xlu0 %1952, %v1950
          %v1954 = vpop.permute.xlu0 %1953
          %1958 = vst [vmem:[#allocation1] ss:$4 sm:$0xff] %v1945
          %v1959 = vld.sshfl [vmem:[#allocation1] sm:$0xff pattern:$0x73625140]
          %v1960 = vld.sshfl [vmem:[#allocation1 + $0x8] sm:$0xff pattern:$0x73625140]
          %s1961 = scalar_lea.vmem [#allocation1], 32
          %1962 = vst [vmem:[%s1961] ss:$4 sm:$0xff] %v1946
          %v1963 = vld.sshfl [vmem:[#allocation1 + $0x20] sm:$0xff pattern:$0x73625140]
          %v1964 = vld.sshfl [vmem:[#allocation1 + $0x28] sm:$0xff pattern:$0x73625140]
          %v1969 = vmul.f32 %v1954, %v1959
          %v1970 = vmul.f32 %v1954, %v1960
          %v1971 = vmul.f32 %v1954, %v1963
          %v1972 = vmul.f32 %v1954, %v1964
          %v1973 = vsel %vm1863, %v1969, 0.0
          %v1974 = vrot.slane %v1973, 4
          %v1975 = vadd.f32 %v1973, %v1974
          %v1976 = vrot.slane %v1975, 2
          %v1977 = vadd.f32 %v1975, %v1976
          %v1978 = vrot.slane %v1977, 1
          %v1979 = vadd.f32 %v1977, %v1978
          %v1980 = vsel %vm1863, %v1970, 0.0
          %v1981 = vrot.slane %v1980, 4
          %v1982 = vadd.f32 %v1980, %v1981
          %v1983 = vrot.slane %v1982, 2
          %v1984 = vadd.f32 %v1982, %v1983
          %v1985 = vrot.slane %v1984, 1
          %v1986 = vadd.f32 %v1984, %v1985
          %v1987 = vsel %vm1863, %v1971, 0.0
          %v1988 = vrot.slane %v1987, 4
          %v1989 = vadd.f32 %v1987, %v1988
          %v1990 = vrot.slane %v1989, 2
          %v1991 = vadd.f32 %v1989, %v1990
          %v1992 = vrot.slane %v1991, 1
          %v1993 = vadd.f32 %v1991, %v1992
          %v1994 = vsel %vm1863, %v1972, 0.0
          %v1995 = vrot.slane %v1994, 4
          %v1996 = vadd.f32 %v1994, %v1995
          %v1997 = vrot.slane %v1996, 2
          %v1998 = vadd.f32 %v1996, %v1997
          %v1999 = vrot.slane %v1998, 1
          %v2000 = vadd.f32 %v1998, %v1999
          %v2001 = vsub.f32 %v1950, 1.0
          %v2002 = vsel %vm1879, %v2001, 0.0
          %v2003 = vrot.slane %v2002, 4
          %v2004 = vadd.f32 %v2002, %v2003
          %v2005 = vrot.slane %v2004, 2
          %v2006 = vadd.f32 %v2004, %v2005
          %v2007 = vrot.slane %v2006, 1
          %v2008 = vadd.f32 %v2006, %v2007
          %v2009 = vmax.f32 %v2008, 1e-15
          %v2010 = vrcp.pop %v2009
          %2012 = vset.pattern.permute.xlu0 0
          %2013 = vperm.xlu0 %2012, %v2010
          %v2014 = vpop.permute.xlu0 %2013
          %v2016 = vmul.f32 %v1979, %v2014
          %v2017 = vmul.f32 %v1986, %v2014
          %v2018 = vmul.f32 %v1993, %v2014
          %v2019 = vmul.f32 %v2000, %v2014
          %v2020 = vmul.f32 %v2016, %v2016
          %v2021 = vmul.f32 %v2017, %v2017
          %v2022 = vmul.f32 %v2018, %v2018
          %v2023 = vmul.f32 %v2019, %v2019
          %v2024 = vadd.f32 %v2020, %v2021
          %2025 = vadd.xlane.f32.xlu0 %v2024
          %v2026 = vpop.xlane.xlu0 %2025
          %v2027 = vadd.f32 %v2022, %v2023
          %2028 = vadd.xlane.f32.xlu0 %v2027
          %v2029 = vpop.xlane.xlu0 %2028
          %v2030 = vadd.f32 %v2026, %v2029
          %v2031 = vmax.f32 %v2030, 1e-15
          %v2032 = vrsqrt.pop %v2031
          %v2033 = vmul.f32 %v2032, %v2031
          %v2034 = vmul.f32 %v2033, %v2032
          %v2035 = vmul.f32 0.5, %v2034
          %v2036 = vsub.f32 1.5, %v2035
          %v2037 = vmul.f32 %v2032, %v2036
          %v2038 = vmul.f32 %v2031, %v2037
          %vm2039 = vcmp.eq.f32.partialorder %v2031, inf
          %v2040 = vsel %vm2039, %v2031, %v2038
          %vm2041 = vcmp.eq.f32.partialorder %v2031, 0.0
          %v2042 = vand.u32 %v2031, 2147483648
          %v2043 = vsel %vm2041, %v2042, %v2040
          %v2044 = vmax.f32 %v2043, -0.9999999
          %v2045 = vmin.f32 %v2044, 0.9999999
          %v2046 = vadd.f32 %v2045, 1.0
          %v2047 = vsub.f32 1.0, %v2045
          %v2048 = vrcp.pop %v2047
          %v2049 = vmul.f32 %v2047, %v2048
          %v2050 = vsub.f32 1.0, %v2049
          %v2051 = vmul.f32 %v2048, %v2050
          %v2052 = vadd.f32 %v2048, %v2051
          %vm2053 = vweird.f32 %v2047
          %vm2054 = vweird.f32 %v2048
          %vm2055 = vmor %vm2053, %vm2054
          %v2056 = vsel %vm2055, %v2048, %v2052
          %v2057 = vand.u32 2147483647, %v2047
          %vm2058 = vcmp.eq.f32.partialorder %v2057, 8.507059e+37
          %v2059 = vand.u32 %v2047, 2147483648
          %v2060 = vor.u32 1.1754944e-38, %v2059
          %v2061 = vsel %vm2058, %v2060, %v2056
          %v2062 = vmul.f32 %v2046, %v2061
          %v2063 = vlog2.pop %v2062
          %v2064 = vmul.f32 %v2063, 0.6931472
          %v2065 = vmul.f32 %v2064, 0.5
          %v2066 = vmul.f32 %v2065, 0.5
          %v2067 = vtanh.pop %v2066
          %v2068 = vrcp.pop %v2043
          %v2069 = vmul.f32 %v2043, %v2068
          %v2070 = vsub.f32 1.0, %v2069
          %v2071 = vmul.f32 %v2068, %v2070
          %v2072 = vadd.f32 %v2068, %v2071
          %vm2073 = vweird.f32 %v2043
          %vm2074 = vweird.f32 %v2068
          %vm2075 = vmor %vm2073, %vm2074
          %v2076 = vsel %vm2075, %v2068, %v2072
          %v2077 = vand.u32 2147483647, %v2043
          %vm2078 = vcmp.eq.f32.partialorder %v2077, 8.507059e+37
          %v2079 = vand.u32 %v2043, 2147483648
          %v2080 = vor.u32 1.1754944e-38, %v2079
          %v2081 = vsel %vm2078, %v2080, %v2076
          %v2082 = vmul.f32 %v2067, %v2081
          %v2083 = vmul.f32 %v2043, %v2082
          %vm2084 = vcmp.gt.f32.partialorder %v2083, 0.99999
          %v2085 = vrcp.pop %v2083
          %v2086 = vmul.f32 %v2083, %v2085
          %v2087 = vsub.f32 1.0, %v2086
          %v2088 = vmul.f32 %v2085, %v2087
          %v2089 = vadd.f32 %v2085, %v2088
          %vm2090 = vweird.f32 %v2083
          %vm2091 = vweird.f32 %v2085
          %vm2092 = vmor %vm2090, %vm2091
          %v2093 = vsel %vm2092, %v2085, %v2089
          %v2094 = vand.u32 2147483647, %v2083
          %vm2095 = vcmp.eq.f32.partialorder %v2094, 8.507059e+37
          %v2096 = vand.u32 %v2083, 2147483648
          %v2097 = vor.u32 1.1754944e-38, %v2096
          %v2098 = vsel %vm2095, %v2097, %v2093
          %v2099 = vmul.f32 0.99999, %v2098
          %v2100 = vsel %vm2084, %v2099, 1.0
          %v2101 = vmul.f32 %v2082, %v2100
          %v2102 = vmin.f32 %v2083, 0.99999
          %v2103 = vmul.f32 %v2016, %v2101
          %v2104 = vmul.f32 %v2017, %v2101
          %v2105 = vmul.f32 %v2018, %v2101
          %v2106 = vmul.f32 %v2019, %v2101
          %v2107 = vmul.f32 %v2102, %v2102
          %v2108 = vsub.f32 0.0, %v2103
          %v2109 = vsub.f32 0.0, %v2104
          %v2110 = vsub.f32 0.0, %v2105
          %v2111 = vsub.f32 0.0, %v2106
          %2112 = vst [vmem:[#allocation1] ss:$4 sm:$0xff] %v1945
          %v2113 = vld.sshfl [vmem:[#allocation1] sm:$0xff pattern:$0x73625140]
          %v2114 = vld.sshfl [vmem:[#allocation1 + $0x8] sm:$0xff pattern:$0x73625140]
          %s2115 = scalar_lea.vmem [#allocation1], 32
          %2116 = vst [vmem:[%s2115] ss:$4 sm:$0xff] %v1946
          %v2117 = vld.sshfl [vmem:[#allocation1 + $0x20] sm:$0xff pattern:$0x73625140]
          %v2118 = vld.sshfl [vmem:[#allocation1 + $0x28] sm:$0xff pattern:$0x73625140]
          %v2123 = vmul.f32 %v2108, %v2113
          %v2124 = vmul.f32 %v2109, %v2114
          %v2125 = vmul.f32 %v2110, %v2117
          %v2126 = vmul.f32 %v2111, %v2118
          %v2127 = vsel %vm1863, %v2123, 0.0
          %v2128 = vsel %vm1863, %v2124, 0.0
          %v2129 = vadd.f32 %v2127, %v2128
          %2130 = vadd.xlane.f32.xlu0 %v2129
          %v2131 = vpop.xlane.xlu0 %2130
          %v2132 = vsel %vm1863, %v2125, 0.0
          %v2133 = vsel %vm1863, %v2126, 0.0
          %v2134 = vadd.f32 %v2132, %v2133
          %2135 = vadd.xlane.f32.xlu0 %v2134
          %v2136 = vpop.xlane.xlu0 %2135
          %v2137 = vsel %vm1863, %v2131, 0.0
          %v2138 = vsel %vm1863, %v2136, 0.0
          %v2139 = vadd.f32 %v2137, %v2138
          %v2140 = vmul.f32 %v2139, 2.0
          %v2141 = vadd.f32 %v2140, 1.0
          %v2142 = vadd.f32 %v2141, %v1947
          %v2143 = vsub.f32 1.0, %v2107
          %v2144 = vmul.f32 %v2107, %v1947
          %v2145 = vadd.f32 %v2141, %v2144
          %2147 = vset.pattern.permute.xlu0 0
          %2148 = vperm.xlu0 %2147, %v2142
          %v2149 = vpop.permute.xlu0 %2148
          %v2151 = vmul.f32 %v2149, %v2108
          %v2152 = vmul.f32 %v2149, %v2109
          %v2153 = vmul.f32 %v2149, %v2110
          %v2154 = vmul.f32 %v2149, %v2111
          %v2155 = vmul.f32 %v2143, %v1945
          %v2156 = vmul.f32 %v2143, %v1946
          %2159 = vst [vmem:[#allocation1] ss:$4 sm:$0xff] %v2155
          %v2160 = vld.sshfl [vmem:[#allocation1] sm:$0xff pattern:$0x73625140]
          %v2161 = vld.sshfl [vmem:[#allocation1 + $0x8] sm:$0xff pattern:$0x73625140]
          %s2162 = scalar_lea.vmem [#allocation1], 32
          %2163 = vst [vmem:[%s2162] ss:$4 sm:$0xff] %v2156
          %v2164 = vld.sshfl [vmem:[#allocation1 + $0x20] sm:$0xff pattern:$0x73625140]
          %v2165 = vld.sshfl [vmem:[#allocation1 + $0x28] sm:$0xff pattern:$0x73625140]
          %v2170 = vadd.f32 %v2151, %v2160
          %v2171 = vadd.f32 %v2152, %v2161
          %v2172 = vadd.f32 %v2153, %v2164
          %v2173 = vadd.f32 %v2154, %v2165
          %v2174 = vrcp.pop %v2145
          %2176 = vset.pattern.permute.xlu0 0
          %2177 = vperm.xlu0 %2176, %v2174
          %v2178 = vpop.permute.xlu0 %2177
          %v2180 = vmul.f32 %v2170, %v2178
          %v2181 = vmul.f32 %v2171, %v2178
          %v2182 = vmul.f32 %v2172, %v2178
          %v2183 = vmul.f32 %v2173, %v2178
          %v2184 = vmul.f32 %v2180, %v2180
          %v2185 = vmul.f32 %v2181, %v2181
          %v2186 = vmul.f32 %v2182, %v2182
          %v2187 = vmul.f32 %v2183, %v2183
          %v2188 = vsel %vm1863, %v2184, 0.0
          %v2189 = vsel %vm1863, %v2185, 0.0
          %v2190 = vadd.f32 %v2188, %v2189
          %2191 = vadd.xlane.f32.xlu0 %v2190
          %v2192 = vpop.xlane.xlu0 %2191
          %v2193 = vsel %vm1863, %v2186, 0.0
          %v2194 = vsel %vm1863, %v2187, 0.0
          %v2195 = vadd.f32 %v2193, %v2194
          %2196 = vadd.xlane.f32.xlu0 %v2195
          %v2197 = vpop.xlane.xlu0 %2196
          %v2198 = vsel %vm1863, %v2192, 0.0
          %v2199 = vsel %vm1863, %v2197, 0.0
          %v2200 = vadd.f32 %v2198, %v2199
          %v2201 = vmax.f32 %v2200, 1e-15
          %v2202 = vrsqrt.pop %v2201
          %v2203 = vmul.f32 %v2202, %v2201
          %v2204 = vmul.f32 %v2203, %v2202
          %v2205 = vmul.f32 0.5, %v2204
          %v2206 = vsub.f32 1.5, %v2205
          %v2207 = vmul.f32 %v2202, %v2206
          %v2208 = vmul.f32 %v2201, %v2207
          %vm2209 = vcmp.eq.f32.partialorder %v2201, inf
          %v2210 = vsel %vm2209, %v2201, %v2208
          %vm2211 = vcmp.eq.f32.partialorder %v2201, 0.0
          %v2212 = vand.u32 %v2201, 2147483648
          %v2213 = vsel %vm2211, %v2212, %v2210
          %v2214 = vmax.f32 %v2213, -0.9999999
          %v2215 = vmin.f32 %v2214, 0.9999999
          %v2216 = vadd.f32 %v2215, 1.0
          %v2217 = vsub.f32 1.0, %v2215
          %v2218 = vrcp.pop %v2217
          %v2219 = vmul.f32 %v2217, %v2218
          %v2220 = vsub.f32 1.0, %v2219
          %v2221 = vmul.f32 %v2218, %v2220
          %v2222 = vadd.f32 %v2218, %v2221
          %vm2223 = vweird.f32 %v2217
          %vm2224 = vweird.f32 %v2218
          %vm2225 = vmor %vm2223, %vm2224
          %v2226 = vsel %vm2225, %v2218, %v2222
          %v2227 = vand.u32 2147483647, %v2217
          %vm2228 = vcmp.eq.f32.partialorder %v2227, 8.507059e+37
          %v2229 = vand.u32 %v2217, 2147483648
          %v2230 = vor.u32 1.1754944e-38, %v2229
          %v2231 = vsel %vm2228, %v2230, %v2226
          %v2232 = vmul.f32 %v2216, %v2231
          %v2233 = vlog2.pop %v2232
          %v2234 = vmul.f32 %v2233, 0.6931472
          %v2235 = vmul.f32 %v2234, 0.5
          %v2236 = vmul.f32 %v2235, 2.0
          %v2237 = vmul.f32 %v2236, %v2236
          %v2238 = vsel %vm1863, %v2237, 0.0
          %v2239 = vrot.slane %v2238, 4
          %v2240 = vadd.f32 %v2238, %v2239
          %v2241 = vrot.slane %v2240, 2
          %v2242 = vadd.f32 %v2240, %v2241
          %v2243 = vrot.slane %v2242, 1
          %v2244 = vadd.f32 %v2242, %v2243
          %v2245 = vrcp.pop 2.0
          %v2246 = vmul.f32 2.0, %v2245
          %v2247 = vsub.f32 1.0, %v2246
          %v2248 = vmul.f32 %v2245, %v2247
          %v2249 = vadd.f32 %v2245, %v2248
          %vm2250 = vweird.f32 %v2245
          %v2251 = vsel %vm2250, %v2245, %v2249
          %v2252 = vmul.f32 %v2244, %v2251
          %s2253 = sld [smem:[#allocation6]]
          %s2254 = smax.f32 %s2253, 0.0
          %v2255 = vadd.f32 %v2252, 1e-06
          %v2256 = vrcp.pop %v2255
          %v2257 = vstv %s2254
          %v2258 = vmul.f32 %v2257, %v2256
          %v2259 = vrsqrt.pop %v2258
          %v2260 = vmul.f32 %v2259, %v2258
          %v2261 = vmul.f32 %v2260, %v2259
          %v2262 = vmul.f32 0.5, %v2261
          %v2263 = vsub.f32 1.5, %v2262
          %v2264 = vmul.f32 %v2259, %v2263
          %v2265 = vmul.f32 %v2258, %v2264
          %vm2266 = vcmp.eq.f32.partialorder %v2258, inf
          %v2267 = vsel %vm2266, %v2258, %v2265
          %vm2268 = vcmp.eq.f32.partialorder %v2258, 0.0
          %v2269 = vand.u32 %v2258, 2147483648
          %v2270 = vsel %vm2268, %v2269, %v2267
          %v2271 = vrcp.pop %v2213
          %v2272 = vmul.f32 %v2235, %v2271
          %v2273 = vmul.f32 %v2272, %v2270
          %v2274 = vmul.f32 %v2273, %v2180
          %v2275 = vmul.f32 %v2273, %v2181
          %v2276 = vmul.f32 %v2273, %v2182
          %v2277 = vmul.f32 %v2273, %v2183
          %v2278 = vmax.f32 %v2274, 0.0
          %v2279 = vmax.f32 %v2275, 0.0
          %v2280 = vmax.f32 %v2276, 0.0
          %v2281 = vmax.f32 %v2277, 0.0
          %v2282 = vmul.f32 %v2278, %v2278
          %v2283 = vmul.f32 %v2279, %v2279
          %v2284 = vmul.f32 %v2280, %v2280
          %v2285 = vmul.f32 %v2281, %v2281
          %v2286 = vsel %vm1863, %v2282, 0.0
          %v2287 = vsel %vm1863, %v2283, 0.0
          %v2288 = vadd.f32 %v2286, %v2287
          %2289 = vadd.xlane.f32.xlu0 %v2288
          %v2290 = vpop.xlane.xlu0 %2289
          %v2291 = vsel %vm1863, %v2284, 0.0
          %v2292 = vsel %vm1863, %v2285, 0.0
          %v2293 = vadd.f32 %v2291, %v2292
          %2294 = vadd.xlane.f32.xlu0 %v2293
          %v2295 = vpop.xlane.xlu0 %2294
          %v2296 = vsel %vm1863, %v2290, 0.0
          %v2297 = vsel %vm1863, %v2295, 0.0
          %v2298 = vadd.f32 %v2296, %v2297
          %v2299 = vmax.f32 %v2298, 1e-15
          %v2300 = vrsqrt.pop %v2299
          %v2301 = vmul.f32 %v2300, %v2299
          %v2302 = vmul.f32 %v2301, %v2300
          %v2303 = vmul.f32 0.5, %v2302
          %v2304 = vsub.f32 1.5, %v2303
          %v2305 = vmul.f32 %v2300, %v2304
          %v2306 = vmul.f32 %v2299, %v2305
          %vm2307 = vcmp.eq.f32.partialorder %v2299, inf
          %v2308 = vsel %vm2307, %v2299, %v2306
          %vm2309 = vcmp.eq.f32.partialorder %v2299, 0.0
          %v2310 = vand.u32 %v2299, 2147483648
          %v2311 = vsel %vm2309, %v2310, %v2308
          %v2312 = vtanh.pop %v2311
          %v2313 = vrcp.pop %v2311
          %v2314 = vmul.f32 %v2312, %v2313
          %vm2315 = vcmp.gt.f32.partialorder %v2312, 0.99999
          %v2316 = vrcp.pop %v2312
          %v2317 = vmul.f32 %v2312, %v2316
          %v2318 = vsub.f32 1.0, %v2317
          %v2319 = vmul.f32 %v2316, %v2318
          %v2320 = vadd.f32 %v2316, %v2319
          %vm2321 = vweird.f32 %v2312
          %vm2322 = vweird.f32 %v2316
          %vm2323 = vmor %vm2321, %vm2322
          %v2324 = vsel %vm2323, %v2316, %v2320
          %v2325 = vand.u32 2147483647, %v2312
          %vm2326 = vcmp.eq.f32.partialorder %v2325, 8.507059e+37
          %v2327 = vand.u32 %v2312, 2147483648
          %v2328 = vor.u32 1.1754944e-38, %v2327
          %v2329 = vsel %vm2326, %v2328, %v2324
          %v2330 = vmul.f32 0.99999, %v2329
          %v2331 = vsel %vm2315, %v2330, 1.0
          %v2332 = vmul.f32 %v2314, %v2331
          %v2333 = vmin.f32 %v2312, 0.99999
          %v2334 = vmul.f32 %v2332, %v2278
          %v2335 = vmul.f32 %v2332, %v2279
          %v2336 = vmul.f32 %v2332, %v2280
          %v2337 = vmul.f32 %v2332, %v2281
          %v2338 = vmul.f32 %v2333, %v2333
          %v2339 = vsub.f32 1.0, %v2338
          %v2340 = vrcp.pop %v2339
          %v2341 = vmul.f32 %v2340, 2.0
          %v2342 = vpack.c.bf16 %v2334, %v2334
          %v2343 = vpack.c.bf16 %v2335, %v2335
          %v2344 = vld [vmem:[#allocation16] sm:$0xff]
          %v2345 = vld [vmem:[#allocation16 + $0x8] sm:$0xff]
          %v2346 = vld [vmem:[#allocation16 + $0x10] sm:$0xff]
          %v2347 = vld [vmem:[#allocation16 + $0x18] sm:$0xff]
          %v2348 = vld [vmem:[#allocation16 + $0x20] sm:$0xff]
          %v2349 = vld [vmem:[#allocation16 + $0x28] sm:$0xff]
          %v2350 = vld [vmem:[#allocation16 + $0x30] sm:$0xff]
          %v2351 = vld [vmem:[#allocation16 + $0x38] sm:$0xff]
          %v2352 = vld [vmem:[#allocation16 + $0x40] sm:$0xff]
          %v2353 = vld [vmem:[#allocation16 + $0x48] sm:$0xff]
          %v2354 = vld [vmem:[#allocation16 + $0x50] sm:$0xff]
          %v2355 = vld [vmem:[#allocation16 + $0x58] sm:$0xff]
          %v2356 = vld [vmem:[#allocation16 + $0x60] sm:$0xff]
          %v2357 = vld [vmem:[#allocation16 + $0x68] sm:$0xff]
          %v2358 = vld [vmem:[#allocation16 + $0x70] sm:$0xff]
          %v2359 = vld [vmem:[#allocation16 + $0x78] sm:$0xff]
          %v2360 = vld [vmem:[#allocation16 + $0x80] sm:$0xff]
          %v2361 = vld [vmem:[#allocation16 + $0x88] sm:$0xff]
          %v2362 = vld [vmem:[#allocation16 + $0x90] sm:$0xff]
          %v2363 = vld [vmem:[#allocation16 + $0x98] sm:$0xff]
          %v2364 = vld [vmem:[#allocation16 + $0xa0] sm:$0xff]
          %v2365 = vld [vmem:[#allocation16 + $0xa8] sm:$0xff]
          %v2366 = vld [vmem:[#allocation16 + $0xb0] sm:$0xff]
          %v2367 = vld [vmem:[#allocation16 + $0xb8] sm:$0xff]
          %v2368 = vld [vmem:[#allocation16 + $0xc0] sm:$0xff]
          %v2369 = vld [vmem:[#allocation16 + $0xc8] sm:$0xff]
          %v2370 = vld [vmem:[#allocation16 + $0xd0] sm:$0xff]
          %v2371 = vld [vmem:[#allocation16 + $0xd8] sm:$0xff]
          %v2372 = vld [vmem:[#allocation16 + $0xe0] sm:$0xff]
          %v2373 = vld [vmem:[#allocation16 + $0xe8] sm:$0xff]
          %v2374 = vld [vmem:[#allocation16 + $0xf0] sm:$0xff]
          %v2375 = vld [vmem:[#allocation16 + $0xf8] sm:$0xff]
          %v2376 = vpack.c.bf16 %v2336, %v2336
          %v2377 = vpack.c.bf16 %v2337, %v2337
          %s2378 = scalar_lea.vmem [#allocation16], 256
          %v2379 = vld [vmem:[%s2378] sm:$0xff]
          %v2380 = vld [vmem:[%s2378 + $0x8] sm:$0xff]
          %v2381 = vld [vmem:[%s2378 + $0x10] sm:$0xff]
          %v2382 = vld [vmem:[%s2378 + $0x18] sm:$0xff]
          %v2383 = vld [vmem:[%s2378 + $0x20] sm:$0xff]
          %v2384 = vld [vmem:[%s2378 + $0x28] sm:$0xff]
          %v2385 = vld [vmem:[%s2378 + $0x30] sm:$0xff]
          %v2386 = vld [vmem:[%s2378 + $0x38] sm:$0xff]
          %v2387 = vld [vmem:[%s2378 + $0x40] sm:$0xff]
          %v2388 = vld [vmem:[%s2378 + $0x48] sm:$0xff]
          %v2389 = vld [vmem:[%s2378 + $0x50] sm:$0xff]
          %v2390 = vld [vmem:[%s2378 + $0x58] sm:$0xff]
          %v2391 = vld [vmem:[%s2378 + $0x60] sm:$0xff]
          %v2392 = vld [vmem:[%s2378 + $0x68] sm:$0xff]
          %v2393 = vld [vmem:[%s2378 + $0x70] sm:$0xff]
          %v2394 = vld [vmem:[%s2378 + $0x78] sm:$0xff]
          %v2395 = vld [vmem:[%s2378 + $0x80] sm:$0xff]
          %v2396 = vld [vmem:[%s2378 + $0x88] sm:$0xff]
          %v2397 = vld [vmem:[%s2378 + $0x90] sm:$0xff]
          %v2398 = vld [vmem:[%s2378 + $0x98] sm:$0xff]
          %v2399 = vld [vmem:[%s2378 + $0xa0] sm:$0xff]
          %v2400 = vld [vmem:[%s2378 + $0xa8] sm:$0xff]
          %v2401 = vld [vmem:[%s2378 + $0xb0] sm:$0xff]
          %v2402 = vld [vmem:[%s2378 + $0xb8] sm:$0xff]
          %v2403 = vld [vmem:[%s2378 + $0xc0] sm:$0xff]
          %v2404 = vld [vmem:[%s2378 + $0xc8] sm:$0xff]
          %v2405 = vld [vmem:[%s2378 + $0xd0] sm:$0xff]
          %v2406 = vld [vmem:[%s2378 + $0xd8] sm:$0xff]
          %v2407 = vld [vmem:[%s2378 + $0xe0] sm:$0xff]
          %v2408 = vld [vmem:[%s2378 + $0xe8] sm:$0xff]
          %v2409 = vld [vmem:[%s2378 + $0xf0] sm:$0xff]
          %v2410 = vld [vmem:[%s2378 + $0xf8] sm:$0xff]
          %v2443 = vunpack.c.l.b16 %v2379
          %v2444 = vunpack.c.h.b16 %v2379
          %v2445 = vunpack.c.l.b16 %v2380
          %v2446 = vunpack.c.h.b16 %v2380
          %v2447 = vunpack.c.l.b16 %v2381
          %v2448 = vunpack.c.h.b16 %v2381
          %v2449 = vunpack.c.l.b16 %v2382
          %v2450 = vunpack.c.h.b16 %v2382
          %v2451 = vunpack.c.l.b16 %v2383
          %v2452 = vunpack.c.h.b16 %v2383
          %v2453 = vunpack.c.l.b16 %v2384
          %v2454 = vunpack.c.h.b16 %v2384
          %v2455 = vunpack.c.l.b16 %v2385
          %v2456 = vunpack.c.h.b16 %v2385
          %v2457 = vunpack.c.l.b16 %v2386
          %v2458 = vunpack.c.h.b16 %v2386
          %v2459 = vunpack.c.l.b16 %v2387
          %v2460 = vunpack.c.h.b16 %v2387
          %v2461 = vunpack.c.l.b16 %v2388
          %v2462 = vunpack.c.h.b16 %v2388
          %v2463 = vunpack.c.l.b16 %v2389
          %v2464 = vunpack.c.h.b16 %v2389
          %v2465 = vunpack.c.l.b16 %v2390
          %v2466 = vunpack.c.h.b16 %v2390
          %v2467 = vunpack.c.l.b16 %v2391
          %v2468 = vunpack.c.h.b16 %v2391
          %v2469 = vunpack.c.l.b16 %v2392
          %v2470 = vunpack.c.h.b16 %v2392
          %v2471 = vunpack.c.l.b16 %v2393
          %v2472 = vunpack.c.h.b16 %v2393
          %v2473 = vunpack.c.l.b16 %v2394
          %v2474 = vunpack.c.h.b16 %v2394
          %v2475 = vunpack.c.l.b16 %v2395
          %v2476 = vunpack.c.h.b16 %v2395
          %v2477 = vunpack.c.l.b16 %v2396
          %v2478 = vunpack.c.h.b16 %v2396
          %v2479 = vunpack.c.l.b16 %v2397
          %v2480 = vunpack.c.h.b16 %v2397
          %v2481 = vunpack.c.l.b16 %v2398
          %v2482 = vunpack.c.h.b16 %v2398
          %v2483 = vunpack.c.l.b16 %v2399
          %v2484 = vunpack.c.h.b16 %v2399
          %v2485 = vunpack.c.l.b16 %v2400
          %v2486 = vunpack.c.h.b16 %v2400
          %v2487 = vunpack.c.l.b16 %v2401
          %v2488 = vunpack.c.h.b16 %v2401
          %v2489 = vunpack.c.l.b16 %v2402
          %v2490 = vunpack.c.h.b16 %v2402
          %v2491 = vunpack.c.l.b16 %v2403
          %v2492 = vunpack.c.h.b16 %v2403
          %v2493 = vunpack.c.l.b16 %v2404
          %v2494 = vunpack.c.h.b16 %v2404
          %v2495 = vunpack.c.l.b16 %v2405
          %v2496 = vunpack.c.h.b16 %v2405
          %v2497 = vunpack.c.l.b16 %v2406
          %v2498 = vunpack.c.h.b16 %v2406
          %v2499 = vunpack.c.l.b16 %v2407
          %v2500 = vunpack.c.h.b16 %v2407
          %v2501 = vunpack.c.l.b16 %v2408
          %v2502 = vunpack.c.h.b16 %v2408
          %v2503 = vunpack.c.l.b16 %v2409
          %v2504 = vunpack.c.h.b16 %v2409
          %v2505 = vunpack.c.l.b16 %v2410
          %v2506 = vunpack.c.h.b16 %v2410
          %v2507 = vpack.c.b16 %v2445, %v2443
          %v2508 = vpack.c.b16 %v2446, %v2444
          %v2509 = vpack.c.b16 %v2449, %v2447
          %v2510 = vpack.c.b16 %v2450, %v2448
          %v2511 = vpack.c.b16 %v2453, %v2451
          %v2512 = vpack.c.b16 %v2454, %v2452
          %v2513 = vpack.c.b16 %v2457, %v2455
          %v2514 = vpack.c.b16 %v2458, %v2456
          %v2515 = vpack.c.b16 %v2461, %v2459
          %v2516 = vpack.c.b16 %v2462, %v2460
          %v2517 = vpack.c.b16 %v2465, %v2463
          %v2518 = vpack.c.b16 %v2466, %v2464
          %v2519 = vpack.c.b16 %v2469, %v2467
          %v2520 = vpack.c.b16 %v2470, %v2468
          %v2521 = vpack.c.b16 %v2473, %v2471
          %v2522 = vpack.c.b16 %v2474, %v2472
          %v2523 = vpack.c.b16 %v2477, %v2475
          %v2524 = vpack.c.b16 %v2478, %v2476
          %v2525 = vpack.c.b16 %v2481, %v2479
          %v2526 = vpack.c.b16 %v2482, %v2480
          %v2527 = vpack.c.b16 %v2485, %v2483
          %v2528 = vpack.c.b16 %v2486, %v2484
          %v2529 = vpack.c.b16 %v2489, %v2487
          %v2530 = vpack.c.b16 %v2490, %v2488
          %v2531 = vpack.c.b16 %v2493, %v2491
          %v2532 = vpack.c.b16 %v2494, %v2492
          %v2533 = vpack.c.b16 %v2497, %v2495
          %v2534 = vpack.c.b16 %v2498, %v2496
          %v2535 = vpack.c.b16 %v2501, %v2499
          %v2536 = vpack.c.b16 %v2502, %v2500
          %v2537 = vpack.c.b16 %v2505, %v2503
          %v2538 = vpack.c.b16 %v2506, %v2504
          %2571 = vmatpush.bf16.msra.mxu0 %v2521
          %2572 = vmatpush.bf16.msra.mxu0 %v2519
          %2573 = vmatpush.bf16.msra.mxu0 %v2517
          %2574 = vmatpush.bf16.msra.mxu0 %v2515
          %2575 = vmatpush.bf16.msra.mxu0 %v2513
          %2576 = vmatpush.bf16.msra.mxu0 %v2511
          %2577 = vmatpush.bf16.msra.mxu0 %v2509
          %2578 = vmatpush.bf16.msra.mxu0 %v2507
          %2579 = vmatmul.bf16.gmra.mxu0 %v2376
          %v2580 = vpop.f32.mrf.mxu0
          %v2581 = vadd.f32 0.0, %v2580
          %v2582 = vpop.f32.mrf.mxu0
          %2583 = vdwg.mxu0
          %2584 = vmatpush.bf16.msra.mxu0 %v2537
          %2585 = vmatpush.bf16.msra.mxu0 %v2535
          %2586 = vmatpush.bf16.msra.mxu0 %v2533
          %2587 = vmatpush.bf16.msra.mxu0 %v2531
          %2588 = vmatpush.bf16.msra.mxu0 %v2529
          %2589 = vmatpush.bf16.msra.mxu0 %v2527
          %2590 = vmatpush.bf16.msra.mxu0 %v2525
          %2591 = vmatpush.bf16.msra.mxu0 %v2523
          %2592 = vmatmul.bf16.gmra.mxu0 %v2377
          %v2593 = vpop.f32.mrf.mxu0
          %v2594 = vadd.f32 %v2581, %v2593
          %v2595 = vpop.f32.mrf.mxu0
          %2596 = vdwg.mxu0
          %2597 = vmatpush.bf16.msra.mxu0 %v2522
          %2598 = vmatpush.bf16.msra.mxu0 %v2520
          %2599 = vmatpush.bf16.msra.mxu0 %v2518
          %2600 = vmatpush.bf16.msra.mxu0 %v2516
          %2601 = vmatpush.bf16.msra.mxu0 %v2514
          %2602 = vmatpush.bf16.msra.mxu0 %v2512
          %2603 = vmatpush.bf16.msra.mxu0 %v2510
          %2604 = vmatpush.bf16.msra.mxu0 %v2508
          %2605 = vmatmul.bf16.gmra.mxu0 %v2376
          %v2606 = vpop.f32.mrf.mxu0
          %v2607 = vadd.f32 0.0, %v2606
          %v2608 = vpop.f32.mrf.mxu0
          %2609 = vdwg.mxu0
          %2610 = vmatpush.bf16.msra.mxu0 %v2538
          %2611 = vmatpush.bf16.msra.mxu0 %v2536
          %2612 = vmatpush.bf16.msra.mxu0 %v2534
          %2613 = vmatpush.bf16.msra.mxu0 %v2532
          %2614 = vmatpush.bf16.msra.mxu0 %v2530
          %2615 = vmatpush.bf16.msra.mxu0 %v2528
          %2616 = vmatpush.bf16.msra.mxu0 %v2526
          %2617 = vmatpush.bf16.msra.mxu0 %v2524
          %2618 = vmatmul.bf16.gmra.mxu0 %v2377
          %v2619 = vpop.f32.mrf.mxu0
          %v2620 = vadd.f32 %v2607, %v2619
          %v2621 = vpop.f32.mrf.mxu0
          %2622 = vdwg.mxu0
          %v2655 = vunpack.c.l.b16 %v2344
          %v2656 = vunpack.c.h.b16 %v2344
          %v2657 = vunpack.c.l.b16 %v2345
          %v2658 = vunpack.c.h.b16 %v2345
          %v2659 = vunpack.c.l.b16 %v2346
          %v2660 = vunpack.c.h.b16 %v2346
          %v2661 = vunpack.c.l.b16 %v2347
          %v2662 = vunpack.c.h.b16 %v2347
          %v2663 = vunpack.c.l.b16 %v2348
          %v2664 = vunpack.c.h.b16 %v2348
          %v2665 = vunpack.c.l.b16 %v2349
          %v2666 = vunpack.c.h.b16 %v2349
          %v2667 = vunpack.c.l.b16 %v2350
          %v2668 = vunpack.c.h.b16 %v2350
          %v2669 = vunpack.c.l.b16 %v2351
          %v2670 = vunpack.c.h.b16 %v2351
          %v2671 = vunpack.c.l.b16 %v2352
          %v2672 = vunpack.c.h.b16 %v2352
          %v2673 = vunpack.c.l.b16 %v2353
          %v2674 = vunpack.c.h.b16 %v2353
          %v2675 = vunpack.c.l.b16 %v2354
          %v2676 = vunpack.c.h.b16 %v2354
          %v2677 = vunpack.c.l.b16 %v2355
          %v2678 = vunpack.c.h.b16 %v2355
          %v2679 = vunpack.c.l.b16 %v2356
          %v2680 = vunpack.c.h.b16 %v2356
          %v2681 = vunpack.c.l.b16 %v2357
          %v2682 = vunpack.c.h.b16 %v2357
          %v2683 = vunpack.c.l.b16 %v2358
          %v2684 = vunpack.c.h.b16 %v2358
          %v2685 = vunpack.c.l.b16 %v2359
          %v2686 = vunpack.c.h.b16 %v2359
          %v2687 = vunpack.c.l.b16 %v2360
          %v2688 = vunpack.c.h.b16 %v2360
          %v2689 = vunpack.c.l.b16 %v2361
          %v2690 = vunpack.c.h.b16 %v2361
          %v2691 = vunpack.c.l.b16 %v2362
          %v2692 = vunpack.c.h.b16 %v2362
          %v2693 = vunpack.c.l.b16 %v2363
          %v2694 = vunpack.c.h.b16 %v2363
          %v2695 = vunpack.c.l.b16 %v2364
          %v2696 = vunpack.c.h.b16 %v2364
          %v2697 = vunpack.c.l.b16 %v2365
          %v2698 = vunpack.c.h.b16 %v2365
          %v2699 = vunpack.c.l.b16 %v2366
          %v2700 = vunpack.c.h.b16 %v2366
          %v2701 = vunpack.c.l.b16 %v2367
          %v2702 = vunpack.c.h.b16 %v2367
          %v2703 = vunpack.c.l.b16 %v2368
          %v2704 = vunpack.c.h.b16 %v2368
          %v2705 = vunpack.c.l.b16 %v2369
          %v2706 = vunpack.c.h.b16 %v2369
          %v2707 = vunpack.c.l.b16 %v2370
          %v2708 = vunpack.c.h.b16 %v2370
          %v2709 = vunpack.c.l.b16 %v2371
          %v2710 = vunpack.c.h.b16 %v2371
          %v2711 = vunpack.c.l.b16 %v2372
          %v2712 = vunpack.c.h.b16 %v2372
          %v2713 = vunpack.c.l.b16 %v2373
          %v2714 = vunpack.c.h.b16 %v2373
          %v2715 = vunpack.c.l.b16 %v2374
          %v2716 = vunpack.c.h.b16 %v2374
          %v2717 = vunpack.c.l.b16 %v2375
          %v2718 = vunpack.c.h.b16 %v2375
          %v2719 = vpack.c.b16 %v2657, %v2655
          %v2720 = vpack.c.b16 %v2658, %v2656
          %v2721 = vpack.c.b16 %v2661, %v2659
          %v2722 = vpack.c.b16 %v2662, %v2660
          %v2723 = vpack.c.b16 %v2665, %v2663
          %v2724 = vpack.c.b16 %v2666, %v2664
          %v2725 = vpack.c.b16 %v2669, %v2667
          %v2726 = vpack.c.b16 %v2670, %v2668
          %v2727 = vpack.c.b16 %v2673, %v2671
          %v2728 = vpack.c.b16 %v2674, %v2672
          %v2729 = vpack.c.b16 %v2677, %v2675
          %v2730 = vpack.c.b16 %v2678, %v2676
          %v2731 = vpack.c.b16 %v2681, %v2679
          %v2732 = vpack.c.b16 %v2682, %v2680
          %v2733 = vpack.c.b16 %v2685, %v2683
          %v2734 = vpack.c.b16 %v2686, %v2684
          %v2735 = vpack.c.b16 %v2689, %v2687
          %v2736 = vpack.c.b16 %v2690, %v2688
          %v2737 = vpack.c.b16 %v2693, %v2691
          %v2738 = vpack.c.b16 %v2694, %v2692
          %v2739 = vpack.c.b16 %v2697, %v2695
          %v2740 = vpack.c.b16 %v2698, %v2696
          %v2741 = vpack.c.b16 %v2701, %v2699
          %v2742 = vpack.c.b16 %v2702, %v2700
          %v2743 = vpack.c.b16 %v2705, %v2703
          %v2744 = vpack.c.b16 %v2706, %v2704
          %v2745 = vpack.c.b16 %v2709, %v2707
          %v2746 = vpack.c.b16 %v2710, %v2708
          %v2747 = vpack.c.b16 %v2713, %v2711
          %v2748 = vpack.c.b16 %v2714, %v2712
          %v2749 = vpack.c.b16 %v2717, %v2715
          %v2750 = vpack.c.b16 %v2718, %v2716
          %2783 = vmatpush.bf16.msra.mxu0 %v2733
          %2784 = vmatpush.bf16.msra.mxu0 %v2731
          %2785 = vmatpush.bf16.msra.mxu0 %v2729
          %2786 = vmatpush.bf16.msra.mxu0 %v2727
          %2787 = vmatpush.bf16.msra.mxu0 %v2725
          %2788 = vmatpush.bf16.msra.mxu0 %v2723
          %2789 = vmatpush.bf16.msra.mxu0 %v2721
          %2790 = vmatpush.bf16.msra.mxu0 %v2719
          %2791 = vmatmul.bf16.gmra.mxu0 %v2342
          %v2792 = vpop.f32.mrf.mxu0
          %v2793 = vadd.f32 %v2594, %v2792
          %v2794 = vpop.f32.mrf.mxu0
          %2795 = vdwg.mxu0
          %2796 = vmatpush.bf16.msra.mxu0 %v2749
          %2797 = vmatpush.bf16.msra.mxu0 %v2747
          %2798 = vmatpush.bf16.msra.mxu0 %v2745
          %2799 = vmatpush.bf16.msra.mxu0 %v2743
          %2800 = vmatpush.bf16.msra.mxu0 %v2741
          %2801 = vmatpush.bf16.msra.mxu0 %v2739
          %2802 = vmatpush.bf16.msra.mxu0 %v2737
          %2803 = vmatpush.bf16.msra.mxu0 %v2735
          %2804 = vmatmul.bf16.gmra.mxu0 %v2343
          %v2805 = vpop.f32.mrf.mxu0
          %v2806 = vadd.f32 %v2793, %v2805
          %v2807 = vpop.f32.mrf.mxu0
          %2808 = vdwg.mxu0
          %2809 = vmatpush.bf16.msra.mxu0 %v2734
          %2810 = vmatpush.bf16.msra.mxu0 %v2732
          %2811 = vmatpush.bf16.msra.mxu0 %v2730
          %2812 = vmatpush.bf16.msra.mxu0 %v2728
          %2813 = vmatpush.bf16.msra.mxu0 %v2726
          %2814 = vmatpush.bf16.msra.mxu0 %v2724
          %2815 = vmatpush.bf16.msra.mxu0 %v2722
          %2816 = vmatpush.bf16.msra.mxu0 %v2720
          %2817 = vmatmul.bf16.gmra.mxu0 %v2342
          %v2818 = vpop.f32.mrf.mxu0
          %v2819 = vadd.f32 %v2620, %v2818
          %v2820 = vpop.f32.mrf.mxu0
          %2821 = vdwg.mxu0
          %2822 = vmatpush.bf16.msra.mxu0 %v2750
          %2823 = vmatpush.bf16.msra.mxu0 %v2748
          %2824 = vmatpush.bf16.msra.mxu0 %v2746
          %2825 = vmatpush.bf16.msra.mxu0 %v2744
          %2826 = vmatpush.bf16.msra.mxu0 %v2742
          %2827 = vmatpush.bf16.msra.mxu0 %v2740
          %2828 = vmatpush.bf16.msra.mxu0 %v2738
          %2829 = vmatpush.bf16.msra.mxu0 %v2736
          %2830 = vmatmul.bf16.gmra.mxu0 %v2343
          %v2831 = vpop.f32.mrf.mxu0
          %v2832 = vadd.f32 %v2819, %v2831
          %v2833 = vpop.f32.mrf.mxu0
          %2834 = vdwg.mxu0
          %v2835 = vld [vmem:[%s8] sm:$0x3]
          %v2837 = vperm.slane %v2835, 0
          %v2838 = vperm.slane %v2835, 1
          %v2841 = vmul.f32 %v2341, %v2837
          %v2842 = vmul.f32 %v2341, %v2838
          %v2843 = vmul.f32 %v2841, %v2806
          %v2844 = vmul.f32 %v2842, %v2832
          %v2845 = vld [vmem:[%s9] sm:$0x3]
          %v2847 = vperm.slane %v2845, 0
          %v2848 = vperm.slane %v2845, 1
          %v2851 = vmul.f32 %v2843, %v2847
          %v2852 = vmul.f32 %v2844, %v2848
          %v2853 = vsub.f32 %v2341, 1.0
          %v2854 = vld [vmem:[#allocation18] sm:$0x3]
          %v2856 = vperm.slane %v2854, 0
          %v2857 = vperm.slane %v2854, 1
          %v2860 = vmul.f32 %v2853, %v2856
          %v2861 = vmul.f32 %v2853, %v2857
          %v2862 = vsub.f32 %v2851, %v2860
          %v2863 = vsub.f32 %v2852, %v2861
          %v2864 = vld [vmem:[%s7] sm:$0x3]
          %v2865 = vmul.f32 %v2864, 2.0
          %v2866 = vand.u32 2147483647, %v2862
          %v2867 = vand.u32 2147483647, %v2863
          %vm2868 = vcmp.lt.f32.partialorder %v2862, 0.0
          %vm2869 = vcmp.lt.f32.partialorder %v2863, 0.0
          %v2870 = vsel %vm2868, -1.0, 1.0
          %v2871 = vsel %vm2869, -1.0, 1.0
          %v2872 = vmul.f32 %v2866, %v2866
          %v2873 = vmul.f32 %v2867, %v2867
          %v2874 = vadd.f32 %v2872, 1.0
          %v2875 = vadd.f32 %v2873, 1.0
          %v2876 = vrsqrt.pop %v2874
          %v2877 = vmul.f32 %v2876, %v2874
          %v2878 = vmul.f32 %v2877, %v2876
          %v2879 = vmul.f32 0.5, %v2878
          %v2880 = vsub.f32 1.5, %v2879
          %v2881 = vmul.f32 %v2876, %v2880
          %v2882 = vmul.f32 %v2874, %v2881
          %vm2883 = vcmp.eq.f32.partialorder %v2874, inf
          %v2884 = vsel %vm2883, %v2874, %v2882
          %vm2885 = vcmp.eq.f32.partialorder %v2874, 0.0
          %v2886 = vand.u32 %v2874, 2147483648
          %v2887 = vsel %vm2885, %v2886, %v2884
          %v2888 = vrsqrt.pop %v2875
          %v2889 = vmul.f32 %v2888, %v2875
          %v2890 = vmul.f32 %v2889, %v2888
          %v2891 = vmul.f32 0.5, %v2890
          %v2892 = vsub.f32 1.5, %v2891
          %v2893 = vmul.f32 %v2888, %v2892
          %v2894 = vmul.f32 %v2875, %v2893
          %vm2895 = vcmp.eq.f32.partialorder %v2875, inf
          %v2896 = vsel %vm2895, %v2875, %v2894
          %vm2897 = vcmp.eq.f32.partialorder %v2875, 0.0
          %v2898 = vand.u32 %v2875, 2147483648
          %v2899 = vsel %vm2897, %v2898, %v2896
          %v2900 = vadd.f32 %v2866, %v2887
          %v2901 = vadd.f32 %v2867, %v2899
          %v2902 = vlog2.pop %v2900
          %v2903 = vmul.f32 %v2902, 0.6931472
          %v2904 = vlog2.pop %v2901
          %v2905 = vmul.f32 %v2904, 0.6931472
          %v2906 = vmul.f32 %v2870, %v2903
          %v2907 = vmul.f32 %v2871, %v2905
          %v2909 = vperm.slane %v2865, 0
          %v2910 = vperm.slane %v2865, 1
          %v2913 = vmul.f32 %v2909, %v2906
          %v2914 = vmul.f32 %v2910, %v2907
          %v2915 = vmax.f32 %v2913, -32.0
          %v2916 = vmax.f32 %v2914, -32.0
          %v2917 = vmin.f32 %v2915, 32.0
          %v2918 = vmin.f32 %v2916, 32.0
          %v2919 = vmul.f32 %v2917, 1.442695
          %v2920 = vpow.pop %v2919
          %v2921 = vmul.f32 %v2918, 1.442695
          %v2922 = vpow.pop %v2921
          %v2923 = vrcp.pop %v2920
          %v2924 = vrcp.pop %v2922
          %v2925 = vsub.f32 %v2920, %v2923
          %v2926 = vsub.f32 %v2922, %v2924
          %v2927 = vmul.f32 %v2925, 0.5
          %v2928 = vmul.f32 %v2926, 0.5
          %v2929 = vmul.f32 %v2927, %v2927
          %v2930 = vmul.f32 %v2928, %v2928
          %v2931 = vsel %vm1863, %v2929, 0.0
          %v2932 = vsel %vm1863, %v2930, 0.0
          %v2933 = vadd.f32 %v2931, %v2932
          %2934 = vadd.xlane.f32.xlu0 %v2933
          %v2935 = vpop.xlane.xlu0 %2934
          %v2936 = vadd.f32 %v2935, 1.0
          %v2937 = vrsqrt.pop %v2936
          %v2938 = vmul.f32 %v2937, %v2936
          %v2939 = vmul.f32 %v2938, %v2937
          %v2940 = vmul.f32 0.5, %v2939
          %v2941 = vsub.f32 1.5, %v2940
          %v2942 = vmul.f32 %v2937, %v2941
          %v2943 = vmul.f32 %v2936, %v2942
          %vm2944 = vcmp.eq.f32.partialorder %v2936, inf
          %v2945 = vsel %vm2944, %v2936, %v2943
          %vm2946 = vcmp.eq.f32.partialorder %v2936, 0.0
          %v2947 = vand.u32 %v2936, 2147483648
          %v2948 = vsel %vm2946, %v2947, %v2945
          %v2949 = vadd.f32 %v2948, 1.0
          %v2950 = vrcp.pop %v2949
          %v2951 = vmax.f32 %v2935, 1e-15
          %v2952 = vrsqrt.pop %v2951
          %v2953 = vmul.f32 %v2952, %v2951
          %v2954 = vmul.f32 %v2953, %v2952
          %v2955 = vmul.f32 0.5, %v2954
          %v2956 = vsub.f32 1.5, %v2955
          %v2957 = vmul.f32 %v2952, %v2956
          %v2958 = vmul.f32 %v2951, %v2957
          %vm2959 = vcmp.eq.f32.partialorder %v2951, inf
          %v2960 = vsel %vm2959, %v2951, %v2958
          %vm2961 = vcmp.eq.f32.partialorder %v2951, 0.0
          %v2962 = vand.u32 %v2951, 2147483648
          %v2963 = vsel %vm2961, %v2962, %v2960
          %v2964 = vmul.f32 %v2963, %v2950
          %vm2965 = vcmp.gt.f32.partialorder %v2964, 0.99999
          %v2966 = vrcp.pop %v2964
          %v2967 = vmul.f32 %v2964, %v2966
          %v2968 = vsub.f32 1.0, %v2967
          %v2969 = vmul.f32 %v2966, %v2968
          %v2970 = vadd.f32 %v2966, %v2969
          %vm2971 = vweird.f32 %v2964
          %vm2972 = vweird.f32 %v2966
          %vm2973 = vmor %vm2971, %vm2972
          %v2974 = vsel %vm2973, %v2966, %v2970
          %v2975 = vand.u32 2147483647, %v2964
          %vm2976 = vcmp.eq.f32.partialorder %v2975, 8.507059e+37
          %v2977 = vand.u32 %v2964, 2147483648
          %v2978 = vor.u32 1.1754944e-38, %v2977
          %v2979 = vsel %vm2976, %v2978, %v2974
          %v2980 = vmul.f32 0.99999, %v2979
          %v2981 = vsel %vm2965, %v2980, 1.0
          %v2982 = vmul.f32 %v2950, %v2981
          %v2983 = vmul.f32 %v2927, %v2982
          %v2984 = vmul.f32 %v2928, %v2982
          %v2987 = vrot.slane %v2984, 6
          %v2988 = vsel %vm1863, %v2983, %v2987
          %2990 = vst [vmem:[#allocation19] sm:$0xf] %v2988
        $region104: #{tpu_custom_call.1} parent=67 // pred_fallthru
          _
        // Predicated region
        $region105: #{tpu_custom_call.1} parent=67 // pred_check
          %p2991 = pneg %p323
        $region106: #{tpu_custom_call.1} parent=67 // pred_check_branch
          %2993 = sbr.rel (%p2991) target = $region108
        $region107: #{tpu_custom_call.1} parent=67 // pred_region
          %2995 = vsyncadd [#allocation9], 0
          %s2997 = sshll.u32 [#allocation19], 4
          %s2998 = int_to_ptr.vmem [resolvable:$true] %s2997
          %s2999 = sshll.u32 %s12, 4
          %s3000 = int_to_ptr.hbm [resolvable:$true] %s2999
          %3002 = dma.vmem_to_hbm [thread:$0]  %s2998, 64, %s3000, [#allocation9]
        $region108: #{tpu_custom_call.1} parent=67 // pred_fallthru
          _
        // Predicated region
        $region109: #{tpu_custom_call.1} parent=67 // pred_check
          %p3003 = pneg %p323
        $region110: #{tpu_custom_call.1} parent=67 // pred_check_branch
          %3005 = sbr.rel (%p3003) target = $region112
        $region111: #{tpu_custom_call.1} parent=67 // pred_region
          %3007 = dma.done [#allocation9], 64
        $region112: #{tpu_custom_call.1} parent=67 // pred_fallthru
          _
      $region68: #{tpu_custom_call.1} parent=5 // pred_fallthru
        _
      %p3008 = scmp.le.s32.totalorder 2, %s28
      // Predicated region
      $region113: #{tpu_custom_call.1} parent=5 // pred_check
        %p3009 = pneg %p3008
      $region114: #{tpu_custom_call.1} parent=5 // pred_check_branch
        %3011 = sbr.rel (%p3009) target = $region116
      $region115: #{tpu_custom_call.1} parent=5 // pred_region
        %s3012 = ssub.s32 %s28, 2
      $region116: #{tpu_custom_call.1} parent=5 // pred_fallthru
        _
    $region6: #{tpu_custom_call.1} parent=1 // loop_footer
      %s32 = sadd.s32 1, %s28
    $region7: #{tpu_custom_call.1} parent=1 // loop_footer_branch
      %27 = sbr.rel target = $region3
    $region8: #{tpu_custom_call.1} parent=1 // loop_exit
      _
    %3013 = vsyncpa [#allocation8], 1
    %s3014 = scalar_lea.sflag [#allocation8], 1
    %3015 = vsyncpa %s3014, 1
    %3016 = vsyncpa [#allocation11], 1
    %s3017 = scalar_lea.sflag [#allocation11], 1
    %3018 = vsyncpa %s3017, 1
    %3019 = vsyncpa [#allocation14], 1
    %s3020 = scalar_lea.sflag [#allocation14], 1
    %3021 = vsyncpa %s3020, 1
    %3022 = vsyncpa [#allocation17], 1
    %3023 = vsyncpa [#allocation9], 1
    %s3024 = scalar_lea.sflag [#allocation9], 1
    %3025 = vsyncpa %s3024, 1

</llo_original>
